<compile_context>
chip_gen: v7x
topology: tpu7x:2x2x1
jax: 0.10.0
libtpu: 0.0.40
codegen_flags: <defaults>
</compile_context>

<pallas_src>
import math
import functools

import jax
import jax.numpy as jnp
from jax.experimental import pallas as pl
from jax.experimental.pallas import tpu as pltpu

_NEG = -1e30          # finite "-inf": avoids inf-inf NaN; fully-masked rows yield mean(V)
_LN_EPS = 1e-5


def _vmem_limit_bytes():
    """~75% of per-core physical VMEM (48 MiB on v7x, 96 MiB on v5e/v6e)."""
    cap = 128 * 1024 * 1024
    try:
        cap = int(pltpu.get_tpu_info().vmem_capacity_bytes)
    except Exception:
        pass
    return int(0.75 * cap)


def _layernorm(v, gamma, beta):
    mu = jnp.mean(v, axis=-1, keepdims=True)
    var = jnp.mean((v - mu) ** 2, axis=-1, keepdims=True)
    return (v - mu) * jax.lax.rsqrt(var + _LN_EPS) * gamma + beta


# ---------------- call 1: LN1 + fused QKV projection ----------------
# Emits q (pre-scaled by 1/sqrt(d_k)) and v as (B, S, D) bf16, and K already
# transposed as (B, D, S) bf16 so attention never transposes K per kv step.
def qkv_kernel(x_ref, g1_ref, be1_ref, wqkv_ref, bqkv_ref,
               q_ref, kt_ref, v_ref, *, d_model, scale):
    x = x_ref[0].astype(jnp.float32)                                  # (ts, D)
    xn = _layernorm(x, g1_ref[...], be1_ref[...])                     # f32 VPU math
    xb = xn.astype(jnp.bfloat16)
    qkv = jnp.dot(xb, wqkv_ref[...],                                  # one MXU pass, wide N
                  preferred_element_type=jnp.float32) + bqkv_ref[...] # (ts, 3D) f32
    q = qkv[:, :d_model] * scale                                      # fold softmax scale into q
    k = qkv[:, d_model:2 * d_model]
    v = qkv[:, 2 * d_model:]
    q_ref[0] = q.astype(q_ref.dtype)
    kt_ref[0] = k.T.astype(kt_ref.dtype)                              # (D, ts): K pre-transposed
    v_ref[0] = v.astype(v_ref.dtype)


# ---------------- call 2: flash-style attention, per-head inner loop ----------------
def attn_kernel(q_ref, kt_ref, v_ref, mask_ref, ctx_ref,
                m_sc, l_sc, acc_sc, *, num_heads, d_k):
    ki = pl.program_id(2)

    @pl.when(ki == 0)
    def _():
        m_sc[...] = jnp.full_like(m_sc, _NEG)
        l_sc[...] = jnp.zeros_like(l_sc)
        acc_sc[...] = jnp.zeros_like(acc_sc)

    q = q_ref[0]                                                      # (tq, D)  bf16, pre-scaled
    kt = kt_ref[0]                                                    # (D, tk)  bf16 (K^T)
    v = v_ref[0]                                                      # (tk, D)  bf16

    # Additive mask bias, shared across heads; computed once per kv step.
    bias = jnp.where(mask_ref[...] != 0, 0.0, _NEG)                   # (tq, tk) f32

    # Per-head loop (statically unrolled): bounds the live score tensor to
    # (tq, tk) instead of (H, tq, tk), so the vreg file never spills.
    for h in range(num_heads):
        lo = h * d_k
        q_h = q[:, lo:lo + d_k]                                       # (tq, d_k)  lane slice
        kt_h = kt[lo:lo + d_k, :]                                     # (d_k, tk)  sublane slice
        v_h = v[:, lo:lo + d_k]                                       # (tk, d_k)  lane slice

        # Plain MXU contraction (no K transpose in the inner loop).
        s = jnp.dot(q_h, kt_h, preferred_element_type=jnp.float32) + bias   # (tq, tk) f32

        m_prev = m_sc[h]                                              # (tq, 1)
        m_new = jnp.maximum(m_prev, s.max(axis=-1, keepdims=True))
        alpha = jnp.exp(m_prev - m_new)
        p = jnp.exp(s - m_new)
        l_sc[h] = alpha * l_sc[h] + p.sum(axis=-1, keepdims=True)
        acc_sc[h] = alpha * acc_sc[h] + jnp.dot(
            p.astype(jnp.bfloat16), v_h, preferred_element_type=jnp.float32)
        m_sc[h] = m_new

    @pl.when(ki == pl.num_programs(2) - 1)
    def _():
        # In-kernel head merge: normalize per head, concat along lanes, then a
        # single lane-dense (tq, D) store.  No wrapper-side transpose/reshape
        # pass over HBM and no masked partial stores on a d_k-wide output.
        pieces = []
        for h in range(num_heads):
            inv_l = pl.reciprocal(l_sc[h], approx=False)              # (tq, 1), once per tile
            pieces.append(acc_sc[h] * inv_l)                          # (tq, d_k) f32
        ctx_ref[0] = jnp.concatenate(pieces, axis=-1).astype(ctx_ref.dtype)


# ---------------- call 3: out-proj + residual1 + LN2 + FFN + residual2 ----------------
def ffn_kernel(x_ref, ctx_ref, wo_ref, bo_ref,
               g2_ref, be2_ref, w1_ref, b1_ref, w2_ref, b2_ref, out_ref):
    x = x_ref[0].astype(jnp.float32)                                  # (ts, D) original input
    ctx = ctx_ref[0]                                                  # (ts, D) bf16, heads merged
    attn_out = jnp.dot(ctx, wo_ref[...],
                       preferred_element_type=jnp.float32) + bo_ref[...]
    x1 = x + attn_out                                                 # residual 1 (dropout == id)

    xn = _layernorm(x1, g2_ref[...], be2_ref[...])
    h1 = jnp.dot(xn.astype(jnp.bfloat16), w1_ref[...],
                 preferred_element_type=jnp.float32) + b1_ref[...]
    h1 = jnp.maximum(h1, 0.0)
    ff = jnp.dot(h1.astype(jnp.bfloat16), w2_ref[...],
                 preferred_element_type=jnp.float32) + b2_ref[...]
    out_ref[0] = (x1 + ff).astype(out_ref.dtype)                      # residual 2 (dropout == id)


def encoder_layer(x, mask, params, *, num_heads, ts=512, tq=512, tk=128):
    B, S, D = x.shape
    d_ff = params["w1"].shape[1]
    assert D % num_heads == 0
    H = num_heads
    d_k = D // H
    ts, tq, tk = min(ts, S), min(tq, S), min(tk, S)
    assert S % ts == 0 and S % tq == 0 and S % tk == 0
    scale = 1.0 / math.sqrt(d_k)
    vmem_limit = _vmem_limit_bytes()
    bf16 = jnp.bfloat16

    # Fused QKV weights (bf16) + biases (f32).
    wqkv = jnp.concatenate([params["wq"], params["wk"], params["wv"]], axis=1).astype(bf16)
    bqkv = jnp.concatenate([params["bq"], params["bk"], params["bv"]], axis=1)
    wo = params["wo"].astype(bf16)
    w1 = params["w1"].astype(bf16)
    w2 = params["w2"].astype(bf16)

    w_spec = lambda shp: pl.BlockSpec(shp, lambda b, i: (0, 0))       # constant weight/bias block
    row_spec = lambda: pl.BlockSpec((1, ts, D), lambda b, i: (b, i, 0))

    # ---------- call 1: LN1 + fused QKV, grid (B, S//ts) ----------
    q, kt, v = pl.pallas_call(
        functools.partial(qkv_kernel, d_model=D, scale=scale),
        out_shape=(jax.ShapeDtypeStruct((B, S, D), bf16),             # q  (pre-scaled)
                   jax.ShapeDtypeStruct((B, D, S), bf16),             # K^T
                   jax.ShapeDtypeStruct((B, S, D), bf16)),            # v
        grid_spec=pltpu.PrefetchScalarGridSpec(
            num_scalar_prefetch=0,
            grid=(B, S // ts),
            in_specs=[row_spec(),
                      w_spec((1, D)), w_spec((1, D)),
                      w_spec((D, 3 * D)), w_spec((1, 3 * D))],
            out_specs=(row_spec(),
                       pl.BlockSpec((1, D, ts), lambda b, i: (b, 0, i)),
                       row_spec())),
        compiler_params=pltpu.CompilerParams(
            dimension_semantics=("parallel", "parallel"),
            vmem_limit_bytes=vmem_limit),
        cost_estimate=pl.CostEstimate(
            flops=6 * B * S * D * D,
            transcendentals=B * S,
            bytes_accessed=B * S * D * 4 + 3 * D * D * 2 + 3 * B * S * D * 2),
    )(x, params["g1"], params["be1"], wqkv, bqkv)

    # ---------- mask: (S, S) shared across batch (no per-b re-DMA); (B, S, S) supported ----------
    if mask.ndim == 3 and mask.shape[0] == 1:
        mask = mask[0]
    mask_arr = mask.astype(jnp.int8)
    if mask_arr.ndim == 2:
        mask_spec = pl.BlockSpec((tq, tk), lambda b, qi, ki: (qi, ki))
    else:
        mask_spec = pl.BlockSpec((pl.Squeezed(), tq, tk), lambda b, qi, ki: (b, qi, ki))

    # ---------- call 2: attention, grid (B, S//tq, S//tk), kv axis innermost ----------
    ctx = pl.pallas_call(
        functools.partial(attn_kernel, num_heads=H, d_k=d_k),
        out_shape=jax.ShapeDtypeStruct((B, S, D), bf16),
        grid_spec=pltpu.PrefetchScalarGridSpec(
            num_scalar_prefetch=0,
            grid=(B, S // tq, S // tk),
            in_specs=[pl.BlockSpec((1, tq, D), lambda b, qi, ki: (b, qi, 0)),
                      pl.BlockSpec((1, D, tk), lambda b, qi, ki: (b, 0, ki)),
                      pl.BlockSpec((1, tk, D), lambda b, qi, ki: (b, ki, 0)),
                      mask_spec],
            out_specs=pl.BlockSpec((1, tq, D), lambda b, qi, ki: (b, qi, 0)),
            scratch_shapes=[pltpu.VMEM((H, tq, 1), jnp.float32),      # m (running max)
                            pltpu.VMEM((H, tq, 1), jnp.float32),      # l (running sum)
                            pltpu.VMEM((H, tq, d_k), jnp.float32)]),  # acc
        compiler_params=pltpu.CompilerParams(
            dimension_semantics=("parallel", "parallel", "arbitrary"),
            vmem_limit_bytes=vmem_limit),
        cost_estimate=pl.CostEstimate(
            flops=4 * B * S * S * D,
            transcendentals=2 * B * H * S * S,
            bytes_accessed=(B * S * D * 2) * (2 + 2 * (S // tq)) + B * S * S),
    )(q, kt, v, mask_arr)

    # ---------- call 3: out-proj + residuals + LN2 + FFN, grid (B, S//ts) ----------
    out = pl.pallas_call(
        ffn_kernel,
        out_shape=jax.ShapeDtypeStruct((B, S, D), x.dtype),
        grid_spec=pltpu.PrefetchScalarGridSpec(
            num_scalar_prefetch=0,
            grid=(B, S // ts),
            in_specs=[row_spec(),                                     # x
                      row_spec(),                                     # ctx (heads already merged)
                      w_spec((D, D)), w_spec((1, D)),                 # wo, bo
                      w_spec((1, D)), w_spec((1, D)),                 # g2, be2
                      w_spec((D, d_ff)), w_spec((1, d_ff)),           # w1, b1
                      w_spec((d_ff, D)), w_spec((1, D))],             # w2, b2
            out_specs=row_spec()),
        compiler_params=pltpu.CompilerParams(
            dimension_semantics=("parallel", "parallel"),
            vmem_limit_bytes=vmem_limit),
        cost_estimate=pl.CostEstimate(
            flops=2 * B * S * D * D + 4 * B * S * D * d_ff,
            transcendentals=B * S,
            bytes_accessed=B * S * D * (4 + 2 + 4) + (D * D + 2 * D * d_ff) * 2),
    )(x, ctx, wo, params["bo"], params["g2"], params["be2"],
      w1, params["b1"], w2, params["b2"])
    return out


def _ref_forward(x, mask, params, num_heads):
    """Pure-JAX f32 reference mirroring the PyTorch module (eval mode)."""
    B, S, D = x.shape
    d_k = D // num_heads

    def ln(v, g, b):
        mu = v.mean(-1, keepdims=True)
        var = ((v - mu) ** 2).mean(-1, keepdims=True)
        return (v - mu) / jnp.sqrt(var + _LN_EPS) * g + b

    x2 = ln(x, params["g1"], params["be1"])
    q = x2 @ params["wq"] + params["bq"]
    k = x2 @ params["wk"] + params["bk"]
    v = x2 @ params["wv"] + params["bv"]
    q = q.reshape(B, S, num_heads, d_k).transpose(0, 2, 1, 3)
    k = k.reshape(B, S, num_heads, d_k).transpose(0, 2, 1, 3)
    v = v.reshape(B, S, num_heads, d_k).transpose(0, 2, 1, 3)
    s = jnp.einsum("bhqd,bhkd->bhqk", q, k) / math.sqrt(d_k)
    m = mask if mask.ndim == 3 else mask[None, :, :]
    s = jnp.where(m[:, None, :, :] == 0, -jnp.inf, s)
    p = jax.nn.softmax(s, axis=-1)
    o = jnp.einsum("bhqk,bhkd->bhqd", p, v).transpose(0, 2, 1, 3).reshape(B, S, D)
    o = o @ params["wo"] + params["bo"]
    x = x + o
    x2 = ln(x, params["g2"], params["be2"])
    ff = jnp.maximum(x2 @ params["w1"] + params["b1"], 0.0) @ params["w2"] + params["b2"]
    return x + ff


def init_params(key, d_model, d_ff):
    ks = jax.random.split(key, 12)

    def linear(kw, kb, fan_in, fan_out):
        bound = 1.0 / math.sqrt(fan_in)
        w = jax.random.uniform(kw, (fan_in, fan_out), jnp.float32, -bound, bound)
        b = jax.random.uniform(kb, (1, fan_out), jnp.float32, -bound, bound)
        return w, b

    wq, bq = linear(ks[0], ks[1], d_model, d_model)
    wk, bk = linear(ks[2], ks[3], d_model, d_model)
    wv, bv = linear(ks[4], ks[5], d_model, d_model)
    wo, bo = linear(ks[6], ks[7], d_model, d_model)
    w1, b1 = linear(ks[8], ks[9], d_model, d_ff)
    w2, b2 = linear(ks[10], ks[11], d_ff, d_model)
    ones = jnp.ones((1, d_model), jnp.float32)
    zeros = jnp.zeros((1, d_model), jnp.float32)
    return dict(wq=wq, bq=bq, wk=wk, bk=bk, wv=wv, bv=bv, wo=wo, bo=bo,
                w1=w1, b1=b1, w2=w2, b2=b2,
                g1=ones, be1=zeros, g2=ones, be2=zeros)


if __name__ == "__main__":
    B, S, D, H, DFF = 2, 512, 128, 4, 256

    key = jax.random.PRNGKey(0)
    kx, kp = jax.random.split(key)
    x = jax.random.normal(kx, (B, S, D), jnp.float32)
    # Causal mask (1 = attend, 0 = masked), int8, a single (S, S) array shared
    # across batch (no per-batch duplication in HBM).
    mask = jnp.tril(jnp.ones((S, S), jnp.int8))
    params = init_params(kp, D, DFF)

    out = encoder_layer(x, mask, params, num_heads=H)
    out = jax.block_until_ready(out)

    ref = _ref_forward(x, mask, params, H)
    assert out.shape == (B, S, D)
    max_err = float(jnp.max(jnp.abs(out - ref)))
    # bf16 MXU operands (f32 accumulate) -> relaxed tolerance vs the f32 reference.
    assert jnp.allclose(out, ref, atol=3e-2, rtol=3e-2), \
        f"mismatch vs reference (max abs err {max_err})"

    print("KERNEL_OK")
</pallas_src>

<mosaic_0001>
module attributes {stable_mosaic.version = 11 : i64} {
  func.func @qkv_kernel(%arg0: i32, %arg1: i32, %arg2: memref<1x512x128xf32, #tpu.memory_space<vmem>>, %arg3: memref<1x128xf32, #tpu.memory_space<vmem>>, %arg4: memref<1x128xf32, #tpu.memory_space<vmem>>, %arg5: memref<128x384xbf16, #tpu.memory_space<vmem>>, %arg6: memref<1x384xf32, #tpu.memory_space<vmem>>, %arg7: memref<1x512x128xbf16, #tpu.memory_space<vmem>>, %arg8: memref<1x128x512xbf16, #tpu.memory_space<vmem>>, %arg9: memref<1x512x128xbf16, #tpu.memory_space<vmem>>) attributes {dimension_semantics = [#tpu.dimension_semantics<parallel>, #tpu.dimension_semantics<parallel>], iteration_bounds = array<i64: 2, 1>, scalar_prefetch = 0 : i64, scratch_operands = 0 : i64, tpu.core_type = #tpu.core_type<tc>, window_params = [{transform_indices = @transform_0, window_bounds = array<i64: 1, 512, 128>}, {pipeline_mode = #tpu.pipeline_mode<synchronous>, transform_indices = @transform_1, window_bounds = array<i64: 1, 128>}, {pipeline_mode = #tpu.pipeline_mode<synchronous>, transform_indices = @transform_2, window_bounds = array<i64: 1, 128>}, {pipeline_mode = #tpu.pipeline_mode<synchronous>, transform_indices = @transform_3, window_bounds = array<i64: 128, 384>}, {pipeline_mode = #tpu.pipeline_mode<synchronous>, transform_indices = @transform_4, window_bounds = array<i64: 1, 384>}, {transform_indices = @transform_5, window_bounds = array<i64: 1, 512, 128>}, {transform_indices = @transform_6, window_bounds = array<i64: 1, 128, 512>}, {transform_indices = @transform_7, window_bounds = array<i64: 1, 512, 128>}]} {
    %c0 = arith.constant 0 : index
    %c0_0 = arith.constant 0 : index
    %c0_1 = arith.constant 0 : index
    %0 = vector.load %arg2[%c0, %c0_0, %c0_1] : memref<1x512x128xf32, #tpu.memory_space<vmem>>, vector<1x512x128xf32>
    %1 = vector.shape_cast %0 : vector<1x512x128xf32> to vector<512x128xf32>
    %c0_2 = arith.constant 0 : index
    %c0_3 = arith.constant 0 : index
    %2 = vector.load %arg3[%c0_2, %c0_3] : memref<1x128xf32, #tpu.memory_space<vmem>>, vector<1x128xf32>
    %c0_4 = arith.constant 0 : index
    %c0_5 = arith.constant 0 : index
    %3 = vector.load %arg4[%c0_4, %c0_5] : memref<1x128xf32, #tpu.memory_space<vmem>>, vector<1x128xf32>
    %cst = arith.constant dense<0.000000e+00> : vector<512xf32>
    %4 = vector.multi_reduction <add>, %1, %cst [1] : vector<512x128xf32> to vector<512xf32>
    %5 = vector.shape_cast %4 : vector<512xf32> to vector<512x1xf32>
    %cst_6 = arith.constant 1.280000e+02 : f32
    %6 = vector.broadcast %cst_6 : f32 to vector<512x1xf32>
    %7 = arith.divf %5, %6 : vector<512x1xf32>
    %8 = vector.broadcast %7 : vector<512x1xf32> to vector<512x128xf32>
    %9 = arith.subf %1, %8 : vector<512x128xf32>
    %10 = arith.mulf %9, %9 : vector<512x128xf32>
    %cst_7 = arith.constant dense<0.000000e+00> : vector<512xf32>
    %11 = vector.multi_reduction <add>, %10, %cst_7 [1] : vector<512x128xf32> to vector<512xf32>
    %12 = vector.shape_cast %11 : vector<512xf32> to vector<512x1xf32>
    %cst_8 = arith.constant 1.280000e+02 : f32
    %13 = vector.broadcast %cst_8 : f32 to vector<512x1xf32>
    %14 = arith.divf %12, %13 : vector<512x1xf32>
    %15 = vector.broadcast %7 : vector<512x1xf32> to vector<512x128xf32>
    %16 = arith.subf %1, %15 : vector<512x128xf32>
    %cst_9 = arith.constant 9.99999974E-6 : f32
    %17 = vector.broadcast %cst_9 : f32 to vector<512x1xf32>
    %18 = arith.addf %14, %17 : vector<512x1xf32>
    %19 = math.rsqrt %18 : vector<512x1xf32>
    %20 = vector.broadcast %19 : vector<512x1xf32> to vector<512x128xf32>
    %21 = arith.mulf %16, %20 : vector<512x128xf32>
    %22 = vector.broadcast %2 : vector<1x128xf32> to vector<512x128xf32>
    %23 = arith.mulf %21, %22 : vector<512x128xf32>
    %24 = vector.broadcast %3 : vector<1x128xf32> to vector<512x128xf32>
    %25 = arith.addf %23, %24 : vector<512x128xf32>
    %26 = arith.truncf %25 : vector<512x128xf32> to vector<512x128xbf16>
    %c0_10 = arith.constant 0 : index
    %c0_11 = arith.constant 0 : index
    %27 = vector.load %arg5[%c0_10, %c0_11] : memref<128x384xbf16, #tpu.memory_space<vmem>>, vector<128x384xbf16>
    %cst_12 = arith.constant dense<0.000000e+00> : vector<512x384xf32>
    %28 = tpu.matmul %26, %27, %cst_12 {dimension_numbers = #tpu.dot_dimension_numbers<[1], [0], [0], [1], [0, 0, 1, 1], [], []>} : vector<512x128xbf16>, vector<128x384xbf16>, vector<512x384xf32> -> vector<512x384xf32>
    %c0_13 = arith.constant 0 : index
    %c0_14 = arith.constant 0 : index
    %29 = vector.load %arg6[%c0_13, %c0_14] : memref<1x384xf32, #tpu.memory_space<vmem>>, vector<1x384xf32>
    %30 = vector.broadcast %29 : vector<1x384xf32> to vector<512x384xf32>
    %31 = arith.addf %28, %30 : vector<512x384xf32>
    %32 = vector.extract_strided_slice %31 {offsets = [0, 0], sizes = [512, 128], strides = [1, 1]} : vector<512x384xf32> to vector<512x128xf32>
    %cst_15 = arith.constant 0.176776692 : f32
    %33 = vector.broadcast %cst_15 : f32 to vector<512x128xf32>
    %34 = arith.mulf %32, %33 : vector<512x128xf32>
    %35 = vector.extract_strided_slice %31 {offsets = [0, 128], sizes = [512, 128], strides = [1, 1]} : vector<512x384xf32> to vector<512x128xf32>
    %36 = vector.extract_strided_slice %31 {offsets = [0, 256], sizes = [512, 128], strides = [1, 1]} : vector<512x384xf32> to vector<512x128xf32>
    %37 = arith.truncf %34 : vector<512x128xf32> to vector<512x128xbf16>
    %c0_16 = arith.constant 0 : index
    %c0_17 = arith.constant 0 : index
    %c0_18 = arith.constant 0 : index
    %38 = vector.load %arg7[%c0_16, %c0_17, %c0_18] : memref<1x512x128xbf16, #tpu.memory_space<vmem>>, vector<1x512x128xbf16>
    %39 = vector.shape_cast %38 : vector<1x512x128xbf16> to vector<512x128xbf16>
    %40 = vector.shape_cast %37 : vector<512x128xbf16> to vector<1x512x128xbf16>
    tpu.vector_store %arg7[%c0_16, %c0_17, %c0_18], %40 {strides = array<i32>} : memref<1x512x128xbf16, #tpu.memory_space<vmem>>, vector<1x512x128xbf16>,
    %41 = tpu.transpose %35, [1, 0] : vector<512x128xf32> -> vector<128x512xf32>
    %42 = arith.truncf %41 : vector<128x512xf32> to vector<128x512xbf16>
    %c0_19 = arith.constant 0 : index
    %c0_20 = arith.constant 0 : index
    %c0_21 = arith.constant 0 : index
    %43 = vector.load %arg8[%c0_19, %c0_20, %c0_21] : memref<1x128x512xbf16, #tpu.memory_space<vmem>>, vector<1x128x512xbf16>
    %44 = vector.shape_cast %43 : vector<1x128x512xbf16> to vector<128x512xbf16>
    %45 = vector.shape_cast %42 : vector<128x512xbf16> to vector<1x128x512xbf16>
    tpu.vector_store %arg8[%c0_19, %c0_20, %c0_21], %45 {strides = array<i32>} : memref<1x128x512xbf16, #tpu.memory_space<vmem>>, vector<1x128x512xbf16>,
    %46 = arith.truncf %36 : vector<512x128xf32> to vector<512x128xbf16>
    %c0_22 = arith.constant 0 : index
    %c0_23 = arith.constant 0 : index
    %c0_24 = arith.constant 0 : index
    %47 = vector.load %arg9[%c0_22, %c0_23, %c0_24] : memref<1x512x128xbf16, #tpu.memory_space<vmem>>, vector<1x512x128xbf16>
    %48 = vector.shape_cast %47 : vector<1x512x128xbf16> to vector<512x128xbf16>
    %49 = vector.shape_cast %46 : vector<512x128xbf16> to vector<1x512x128xbf16>
    tpu.vector_store %arg9[%c0_22, %c0_23, %c0_24], %49 {strides = array<i32>} : memref<1x512x128xbf16, #tpu.memory_space<vmem>>, vector<1x512x128xbf16>,
    return
  }
  func.func @transform_0(%arg0: i32, %arg1: i32) -> (i32, i32, i32) {
    %c0_i32 = arith.constant 0 : i32
    %c0_i32_0 = arith.constant 0 : i32
    return %arg0, %arg1, %c0_i32 : i32, i32, i32
  }
  func.func @transform_1(%arg0: i32, %arg1: i32) -> (i32, i32) {
    %c0_i32 = arith.constant 0 : i32
    %c0_i32_0 = arith.constant 0 : i32
    %c0_i32_1 = arith.constant 0 : i32
    return %c0_i32, %c0_i32_0 : i32, i32
  }
  func.func @transform_2(%arg0: i32, %arg1: i32) -> (i32, i32) {
    %c0_i32 = arith.constant 0 : i32
    %c0_i32_0 = arith.constant 0 : i32
    %c0_i32_1 = arith.constant 0 : i32
    return %c0_i32, %c0_i32_0 : i32, i32
  }
  func.func @transform_3(%arg0: i32, %arg1: i32) -> (i32, i32) {
    %c0_i32 = arith.constant 0 : i32
    %c0_i32_0 = arith.constant 0 : i32
    %c0_i32_1 = arith.constant 0 : i32
    return %c0_i32, %c0_i32_0 : i32, i32
  }
  func.func @transform_4(%arg0: i32, %arg1: i32) -> (i32, i32) {
    %c0_i32 = arith.constant 0 : i32
    %c0_i32_0 = arith.constant 0 : i32
    %c0_i32_1 = arith.constant 0 : i32
    return %c0_i32, %c0_i32_0 : i32, i32
  }
  func.func @transform_5(%arg0: i32, %arg1: i32) -> (i32, i32, i32) {
    %c0_i32 = arith.constant 0 : i32
    %c0_i32_0 = arith.constant 0 : i32
    return %arg0, %arg1, %c0_i32 : i32, i32, i32
  }
  func.func @transform_6(%arg0: i32, %arg1: i32) -> (i32, i32, i32) {
    %c0_i32 = arith.constant 0 : i32
    %c0_i32_0 = arith.constant 0 : i32
    return %arg0, %c0_i32, %arg1 : i32, i32, i32
  }
  func.func @transform_7(%arg0: i32, %arg1: i32) -> (i32, i32, i32) {
    %c0_i32 = arith.constant 0 : i32
    %c0_i32_0 = arith.constant 0 : i32
    return %arg0, %arg1, %c0_i32 : i32, i32, i32
  }
}

</mosaic_0001>

<llo_original>
// kernel: tpu_custom_call.1
$region0: #{tpu_custom_call.1}
  #allocation0 [shape = 'u32[]', space=smem, size = 0x4, offset = 0x4, fixed_abs, tag = 'smem constant byte address 0x4 - core index']
  #allocation1 [shape = 'u32[144,128]{1,0:T(1,128)}', space=vmem, size = 0x12000, scoped, tag = 'internal scratch']
  %s0 = inlined_call_operand.hbm [shape: f32[2,512,128], index: 0, kind: input, shape index: {}]
  %s1 = inlined_call_operand.hbm [shape: f32[1,128], index: 1, kind: input, shape index: {}]
  %s2 = inlined_call_operand.hbm [shape: f32[1,128], index: 2, kind: input, shape index: {}]
  %s3 = inlined_call_operand.hbm [shape: bf16[128,384], index: 3, kind: input, shape index: {}]
  %s4 = inlined_call_operand.hbm [shape: f32[1,384], index: 4, kind: input, shape index: {}]
  %s5 = inlined_call_operand.hbm [shape: bf16[2,512,128], index: 5, kind: output, shape index: {0}]
  %s6 = inlined_call_operand.hbm [shape: bf16[2,128,512], index: 6, kind: output, shape index: {1}]
  %s7 = inlined_call_operand.hbm [shape: bf16[2,512,128], index: 7, kind: output, shape index: {2}]
  %8 = xla_tuple %s5, %s6, %s7
  %s9 = sld [smem:[#allocation0]]
  $region89: #{tpu_custom_call.1} parent=0
    _
  %s11 = ssub.s32 1, %s9
  %s12 = scalar_select 0, %s11, %s9
  $region1: #{tpu_custom_call.1} parent=0
    #allocation2 [shape = 'u8[524288]{0}', space=vmem, size = 0x80000, scoped, tag = 'input window, operand 0']
    #allocation3 [shape = 's32[2]{0}', space=sflag, size = 0x8, scoped, tag = 'scoped memory for tpu_custom_call.1']
    #allocation4 [shape = 's32[2]{0}', space=sflag, size = 0x8, scoped, tag = 'scoped memory for tpu_custom_call.1']
    #allocation5 [shape = 'u8[512]{0}', space=vmem, size = 0x400, scoped, tag = 'input window, operand 1, single buffered']
    #allocation6 [shape = 's32[1]{0}', space=sflag, size = 0x4, scoped, tag = 'scoped memory for tpu_custom_call.1']
    #allocation7 [shape = 'u8[512]{0}', space=vmem, size = 0x400, scoped, tag = 'input window, operand 2, single buffered']
    #allocation8 [shape = 'u8[98304]{0}', space=vmem, size = 0x18000, scoped, tag = 'input window, operand 3, single buffered']
    #allocation9 [shape = 's32[1]{0}', space=sflag, size = 0x4, scoped, tag = 'scoped memory for tpu_custom_call.1']
    #allocation10 [shape = 'u8[1536]{0}', space=vmem, size = 0x800, scoped, tag = 'input window, operand 4, single buffered']
    #allocation11 [shape = 'u8[262144]{0}', space=vmem, size = 0x40000, scoped, tag = 'output window, operand 0']
    #allocation12 [shape = 'u8[262144]{0}', space=vmem, size = 0x40000, scoped, tag = 'output window, operand 1']
    #allocation13 [shape = 's32[2]{0}', space=sflag, size = 0x8, scoped, tag = 'scoped memory for tpu_custom_call.1']
    #allocation14 [shape = 'u8[262144]{0}', space=vmem, size = 0x40000, scoped, tag = 'output window, operand 2']
    %13 = vsyncpa [#allocation3], 0
    %s14 = scalar_lea.sflag [#allocation3], 1
    %15 = vsyncpa %s14, 0
    %16 = vsyncpa [#allocation6], 0
    %17 = vsyncpa [#allocation9], 0
    %18 = vsyncpa [#allocation4], 0
    %s19 = scalar_lea.sflag [#allocation4], 1
    %20 = vsyncpa %s19, 0
    %21 = vsyncpa [#allocation13], 0
    %s22 = scalar_lea.sflag [#allocation13], 1
    %23 = vsyncpa %s22, 0
    loop: start=0, step=1, limit=4
    $region2: #{tpu_custom_call.1} parent=1 // loop_pre_header
      _
    $region3: #{tpu_custom_call.1} parent=1 // loop_header
      %s25 = sphi 0, %s29
      %p26 = scmp.ge.s32.totalorder %s25, 4
      %s32 = sphi 0, %s44
      %s33 = sphi 0, %s40
      %s34 = sphi 0, %s32
      %s35 = sphi 0, %s33
      %s36 = sphi 0, %s34
      %s37 = sphi 0, %s35
      %s49 = sphi 0, %s51
      %s52 = sphi 0, %s49
      %s53 = sphi 0, %s52
      %s69 = sphi 0, %s53
      %s73 = sphi 0, %s73
      %s75 = sphi 0, %s73
      %s76 = sphi 0, %s75
      %s90 = sphi 0, %s76
      %s94 = sphi 0, %s94
      %s96 = sphi 0, %s94
      %s97 = sphi 0, %s96
      %s111 = sphi 0, %s97
      %s115 = sphi 0, %s115
      %s117 = sphi 0, %s115
      %s118 = sphi 0, %s117
      %s132 = sphi 0, %s118
      %s136 = sphi 0, %s136
      %s138 = sphi 0, %s136
      %s139 = sphi 0, %s138
      %s153 = sphi 0, %s139
      %s161 = sphi 0, %s163
      %s164 = sphi 0, %s161
      %s165 = sphi 0, %s164
      %s181 = sphi 0, %s165
      %s189 = sphi 0, %s191
      %s192 = sphi 0, %s189
      %s193 = sphi 0, %s192
      %s209 = sphi 0, %s193
      %s217 = sphi 0, %s219
      %s220 = sphi 0, %s217
      %s221 = sphi 0, %s220
      %s237 = sphi 0, %s221
    $region4: #{tpu_custom_call.1} parent=1 // loop_header_branch
      %28 = sbr.rel (%p26) target = $region8
    $region5: #{tpu_custom_call.1} parent=1 // loop_body
      %s30 = ssub.s32 %s25, 1
      %s31 = ssub.s32 %s25, 2
      %s38 = sadd.s32 1, %s33
      %p39 = scmp.ge.s32.totalorder %s38, 1
      %s40 = scalar_select %p39, 0, %s38
      %s41 = sadd.s32 1, %s32
      %s42 = scalar_select %p39, %s41, %s32
      %p43 = scmp.ge.s32.totalorder %s42, 2
      %s44 = scalar_select %p43, 0, %s42
      %s45 = ssub.s32 %s32, %s44
      %s46 = ssub.s32 %s33, %s40
      %s47 = sor.u32 %s45, %s46
      %p48 = scmp.eq.s32.totalorder %s47, 0
      %s50 = sadd.s32 %s49, 1
      %s51 = scalar_select %p48, %s49, %s50
      %p54 = pneg %p48
      %p55 = scmp.eq.s32.totalorder %s25, 1
      %p56 = por %p54, %p55
      %p57 = scmp.ne.s32.totalorder %s49, %s52
      %p58 = scmp.eq.s32.totalorder %s25, 0
      %p59 = por %p57, %p58
      %p60 = scmp.ne.s32.totalorder %s49, %s52
      %p61 = scmp.eq.s32.totalorder %s30, 1
      %p62 = por %p60, %p61
      %p63 = scmp.ne.s32.totalorder %s52, %s53
      %p64 = scmp.eq.s32.totalorder %s30, 0
      %p65 = por %p63, %p64
      %p66 = scmp.ne.s32.totalorder %s52, %s53
      %p67 = scmp.eq.s32.totalorder %s31, 1
      %p68 = por %p66, %p67
      %p70 = scmp.ne.s32.totalorder %s53, %s69
      %p71 = scmp.eq.s32.totalorder %s31, 0
      %p72 = por %p70, %p71
      %s74 = sadd.s32 %s73, 1
      %p77 = scmp.eq.s32.totalorder %s25, 1
      %p78 = scmp.ne.s32.totalorder %s73, %s75
      %p79 = scmp.eq.s32.totalorder %s25, 0
      %p80 = por %p78, %p79
      %p81 = scmp.ne.s32.totalorder %s73, %s75
      %p82 = scmp.eq.s32.totalorder %s30, 1
      %p83 = por %p81, %p82
      %p84 = scmp.ne.s32.totalorder %s75, %s76
      %p85 = scmp.eq.s32.totalorder %s30, 0
      %p86 = por %p84, %p85
      %p87 = scmp.ne.s32.totalorder %s75, %s76
      %p88 = scmp.eq.s32.totalorder %s31, 1
      %p89 = por %p87, %p88
      %p91 = scmp.ne.s32.totalorder %s76, %s90
      %p92 = scmp.eq.s32.totalorder %s31, 0
      %p93 = por %p91, %p92
      %s95 = sadd.s32 %s94, 1
      %p98 = scmp.eq.s32.totalorder %s25, 1
      %p99 = scmp.ne.s32.totalorder %s94, %s96
      %p100 = scmp.eq.s32.totalorder %s25, 0
      %p101 = por %p99, %p100
      %p102 = scmp.ne.s32.totalorder %s94, %s96
      %p103 = scmp.eq.s32.totalorder %s30, 1
      %p104 = por %p102, %p103
      %p105 = scmp.ne.s32.totalorder %s96, %s97
      %p106 = scmp.eq.s32.totalorder %s30, 0
      %p107 = por %p105, %p106
      %p108 = scmp.ne.s32.totalorder %s96, %s97
      %p109 = scmp.eq.s32.totalorder %s31, 1
      %p110 = por %p108, %p109
      %p112 = scmp.ne.s32.totalorder %s97, %s111
      %p113 = scmp.eq.s32.totalorder %s31, 0
      %p114 = por %p112, %p113
      %s116 = sadd.s32 %s115, 1
      %p119 = scmp.eq.s32.totalorder %s25, 1
      %p120 = scmp.ne.s32.totalorder %s115, %s117
      %p121 = scmp.eq.s32.totalorder %s25, 0
      %p122 = por %p120, %p121
      %p123 = scmp.ne.s32.totalorder %s115, %s117
      %p124 = scmp.eq.s32.totalorder %s30, 1
      %p125 = por %p123, %p124
      %p126 = scmp.ne.s32.totalorder %s117, %s118
      %p127 = scmp.eq.s32.totalorder %s30, 0
      %p128 = por %p126, %p127
      %p129 = scmp.ne.s32.totalorder %s117, %s118
      %p130 = scmp.eq.s32.totalorder %s31, 1
      %p131 = por %p129, %p130
      %p133 = scmp.ne.s32.totalorder %s118, %s132
      %p134 = scmp.eq.s32.totalorder %s31, 0
      %p135 = por %p133, %p134
      %s137 = sadd.s32 %s136, 1
      %p140 = scmp.eq.s32.totalorder %s25, 1
      %p141 = scmp.ne.s32.totalorder %s136, %s138
      %p142 = scmp.eq.s32.totalorder %s25, 0
      %p143 = por %p141, %p142
      %p144 = scmp.ne.s32.totalorder %s136, %s138
      %p145 = scmp.eq.s32.totalorder %s30, 1
      %p146 = por %p144, %p145
      %p147 = scmp.ne.s32.totalorder %s138, %s139
      %p148 = scmp.eq.s32.totalorder %s30, 0
      %p149 = por %p147, %p148
      %p150 = scmp.ne.s32.totalorder %s138, %s139
      %p151 = scmp.eq.s32.totalorder %s31, 1
      %p152 = por %p150, %p151
      %p154 = scmp.ne.s32.totalorder %s139, %s153
      %p155 = scmp.eq.s32.totalorder %s31, 0
      %p156 = por %p154, %p155
      %s157 = ssub.s32 %s32, %s44
      %s158 = ssub.s32 %s33, %s40
      %s159 = sor.u32 %s157, %s158
      %p160 = scmp.eq.s32.totalorder %s159, 0
      %s162 = sadd.s32 %s161, 1
      %s163 = scalar_select %p160, %s161, %s162
      %p166 = pneg %p160
      %p167 = scmp.eq.s32.totalorder %s25, 1
      %p168 = por %p166, %p167
      %p169 = scmp.ne.s32.totalorder %s161, %s164
      %p170 = scmp.eq.s32.totalorder %s25, 0
      %p171 = por %p169, %p170
      %p172 = scmp.ne.s32.totalorder %s161, %s164
      %p173 = scmp.eq.s32.totalorder %s30, 1
      %p174 = por %p172, %p173
      %p175 = scmp.ne.s32.totalorder %s164, %s165
      %p176 = scmp.eq.s32.totalorder %s30, 0
      %p177 = por %p175, %p176
      %p178 = scmp.ne.s32.totalorder %s164, %s165
      %p179 = scmp.eq.s32.totalorder %s31, 1
      %p180 = por %p178, %p179
      %p182 = scmp.ne.s32.totalorder %s165, %s181
      %p183 = scmp.eq.s32.totalorder %s31, 0
      %p184 = por %p182, %p183
      %s185 = ssub.s32 %s32, %s44
      %s186 = ssub.s32 %s33, %s40
      %s187 = sor.u32 %s185, %s186
      %p188 = scmp.eq.s32.totalorder %s187, 0
      %s190 = sadd.s32 %s189, 1
      %s191 = scalar_select %p188, %s189, %s190
      %p194 = pneg %p188
      %p195 = scmp.eq.s32.totalorder %s25, 1
      %p196 = por %p194, %p195
      %p197 = scmp.ne.s32.totalorder %s189, %s192
      %p198 = scmp.eq.s32.totalorder %s25, 0
      %p199 = por %p197, %p198
      %p200 = scmp.ne.s32.totalorder %s189, %s192
      %p201 = scmp.eq.s32.totalorder %s30, 1
      %p202 = por %p200, %p201
      %p203 = scmp.ne.s32.totalorder %s192, %s193
      %p204 = scmp.eq.s32.totalorder %s30, 0
      %p205 = por %p203, %p204
      %p206 = scmp.ne.s32.totalorder %s192, %s193
      %p207 = scmp.eq.s32.totalorder %s31, 1
      %p208 = por %p206, %p207
      %p210 = scmp.ne.s32.totalorder %s193, %s209
      %p211 = scmp.eq.s32.totalorder %s31, 0
      %p212 = por %p210, %p211
      %s213 = ssub.s32 %s32, %s44
      %s214 = ssub.s32 %s33, %s40
      %s215 = sor.u32 %s213, %s214
      %p216 = scmp.eq.s32.totalorder %s215, 0
      %s218 = sadd.s32 %s217, 1
      %s219 = scalar_select %p216, %s217, %s218
      %p222 = pneg %p216
      %p223 = scmp.eq.s32.totalorder %s25, 1
      %p224 = por %p222, %p223
      %p225 = scmp.ne.s32.totalorder %s217, %s220
      %p226 = scmp.eq.s32.totalorder %s25, 0
      %p227 = por %p225, %p226
      %p228 = scmp.ne.s32.totalorder %s217, %s220
      %p229 = scmp.eq.s32.totalorder %s30, 1
      %p230 = por %p228, %p229
      %p231 = scmp.ne.s32.totalorder %s220, %s221
      %p232 = scmp.eq.s32.totalorder %s30, 0
      %p233 = por %p231, %p232
      %p234 = scmp.ne.s32.totalorder %s220, %s221
      %p235 = scmp.eq.s32.totalorder %s31, 1
      %p236 = por %p234, %p235
      %p238 = scmp.ne.s32.totalorder %s221, %s237
      %p239 = scmp.eq.s32.totalorder %s31, 0
      %p240 = por %p238, %p239
      %p241 = scmp.le.s32.totalorder 1, %s25
      %p242 = scmp.lt.s32.totalorder %s25, 3
      %p243 = pnand %p241, %p242
      %p244 = pneg %p243
      // Predicated region
      $region9: #{tpu_custom_call.1} parent=5 // pred_check
        _
      $region10: #{tpu_custom_call.1} parent=5 // pred_check_branch
        %246 = sbr.rel (%p243) target = $region12
      $region11: #{tpu_custom_call.1} parent=5 // pred_region
        %s247 = ssub.s32 %s25, 1
        // Predicated region
        $region13: #{tpu_custom_call.1} parent=11 // pred_check
          %p248 = pneg %p86
        $region14: #{tpu_custom_call.1} parent=11 // pred_check_branch
          %250 = sbr.rel (%p248) target = $region16
        $region15: #{tpu_custom_call.1} parent=11 // pred_region
          %s252 = ssub.s32 16, 16
          %253 = vsyncadd [#allocation6], %s252
          %s255 = sshll.u32 [#allocation5], 4
          %s256 = int_to_ptr.vmem [resolvable:$true] %s255
          %258 = dma.hbm_to_vmem [thread:$0]  %s1, 16, %s256, [#allocation6]
        $region16: #{tpu_custom_call.1} parent=11 // pred_fallthru
          _
        // Predicated region
        $region17: #{tpu_custom_call.1} parent=11 // pred_check
          %p259 = pneg %p107
        $region18: #{tpu_custom_call.1} parent=11 // pred_check_branch
          %261 = sbr.rel (%p259) target = $region20
        $region19: #{tpu_custom_call.1} parent=11 // pred_region
          %s263 = ssub.s32 16, 16
          %264 = vsyncadd [#allocation6], %s263
          %s266 = sshll.u32 [#allocation7], 4
          %s267 = int_to_ptr.vmem [resolvable:$true] %s266
          %269 = dma.hbm_to_vmem [thread:$0]  %s2, 16, %s267, [#allocation6]
        $region20: #{tpu_custom_call.1} parent=11 // pred_fallthru
          _
        // Predicated region
        $region21: #{tpu_custom_call.1} parent=11 // pred_check
          %p270 = pneg %p128
        $region22: #{tpu_custom_call.1} parent=11 // pred_check_branch
          %272 = sbr.rel (%p270) target = $region24
        $region23: #{tpu_custom_call.1} parent=11 // pred_region
          %s274 = ssub.s32 3072, 3072
          %275 = vsyncadd [#allocation9], %s274
          %s276 = sshll.u32 [#allocation8], 4
          %s277 = int_to_ptr.vmem [resolvable:$true] %s276
          %282 = dma.hbm_to_vmem [thread:$0]  %s3, 3072, %s277, [#allocation9], 192, 192, 12
        $region24: #{tpu_custom_call.1} parent=11 // pred_fallthru
          _
        // Predicated region
        $region25: #{tpu_custom_call.1} parent=11 // pred_check
          %p283 = pneg %p149
        $region26: #{tpu_custom_call.1} parent=11 // pred_check_branch
          %285 = sbr.rel (%p283) target = $region28
        $region27: #{tpu_custom_call.1} parent=11 // pred_region
          %s287 = ssub.s32 48, 48
          %288 = vsyncadd [#allocation9], %s287
          %s290 = sshll.u32 [#allocation10], 4
          %s291 = int_to_ptr.vmem [resolvable:$true] %s290
          %293 = dma.hbm_to_vmem [thread:$0]  %s4, 48, %s291, [#allocation9]
        $region28: #{tpu_custom_call.1} parent=11 // pred_fallthru
          _
      $region12: #{tpu_custom_call.1} parent=5 // pred_fallthru
        _
      %p294 = scmp.lt.s32.totalorder %s25, 2
      // Predicated region
      $region29: #{tpu_custom_call.1} parent=5 // pred_check
        %p295 = pneg %p294
      $region30: #{tpu_custom_call.1} parent=5 // pred_check_branch
        %297 = sbr.rel (%p295) target = $region32
      $region31: #{tpu_custom_call.1} parent=5 // pred_region
        // Predicated region
        $region33: #{tpu_custom_call.1} parent=31 // pred_check
          %p298 = pneg %p59
        $region34: #{tpu_custom_call.1} parent=31 // pred_check_branch
          %300 = sbr.rel (%p298) target = $region36
        $region35: #{tpu_custom_call.1} parent=31 // pred_region
          %s301 = sand.u32 %s49, 1
          %s302 = scalar_lea.sflag [#allocation3], %s301
          %s303 = sand.u32 %s49, 1
          %s304 = smul.addr %s303, 512
          %s305 = scalar_lea.vmem [#allocation2], %s304
          %s306 = smul.u32 64, %s33
          %s308 = ssub.s32 8192, 8192
          %309 = vsyncadd %s302, %s308
          %s310 = smul.addr %s32, 64
          %s311 = sadd.s32 %s306, %s310
          %s312 = smul.addr %s311, 128
          %s313 = scalar_lea.hbm %s0, %s312
          %s314 = sshll.u32 %s305, 4
          %s315 = int_to_ptr.vmem [resolvable:$true] %s314
          %320 = dma.hbm_to_vmem [thread:$0]  %s313, 8192, %s315, %s302, 128, 128, 8
        $region36: #{tpu_custom_call.1} parent=31 // pred_fallthru
          _
      $region32: #{tpu_custom_call.1} parent=5 // pred_fallthru
        _
      %p321 = scmp.le.s32.totalorder 1, %s25
      %p322 = scmp.lt.s32.totalorder %s25, 3
      %p323 = pnand %p321, %p322
      %p324 = pneg %p323
      // Predicated region
      $region37: #{tpu_custom_call.1} parent=5 // pred_check
        _
      $region38: #{tpu_custom_call.1} parent=5 // pred_check_branch
        %326 = sbr.rel (%p323) target = $region40
      $region39: #{tpu_custom_call.1} parent=5 // pred_region
        %s327 = ssub.s32 %s25, 1
        %s328 = sand.u32 %s52, 1
        %s329 = scalar_lea.sflag [#allocation3], %s328
        %s330 = sand.u32 %s52, 1
        %s331 = smul.addr %s330, 512
        %s332 = scalar_lea.vmem [#allocation2], %s331
        // Predicated region
        $region41: #{tpu_custom_call.1} parent=39 // pred_check
          %p333 = pneg %p65
        $region42: #{tpu_custom_call.1} parent=39 // pred_check_branch
          %335 = sbr.rel (%p333) target = $region44
        $region43: #{tpu_custom_call.1} parent=39 // pred_region
          %336 = dma.done %s329, 8192
        $region44: #{tpu_custom_call.1} parent=39 // pred_fallthru
          _
        // Predicated region
        $region45: #{tpu_custom_call.1} parent=39 // pred_check
          %p337 = pneg %p86
        $region46: #{tpu_custom_call.1} parent=39 // pred_check_branch
          %339 = sbr.rel (%p337) target = $region48
        $region47: #{tpu_custom_call.1} parent=39 // pred_region
          %340 = dma.done [#allocation6], 16
        $region48: #{tpu_custom_call.1} parent=39 // pred_fallthru
          _
        // Predicated region
        $region49: #{tpu_custom_call.1} parent=39 // pred_check
          %p341 = pneg %p107
        $region50: #{tpu_custom_call.1} parent=39 // pred_check_branch
          %343 = sbr.rel (%p341) target = $region52
        $region51: #{tpu_custom_call.1} parent=39 // pred_region
          %344 = dma.done [#allocation6], 16
        $region52: #{tpu_custom_call.1} parent=39 // pred_fallthru
          _
        // Predicated region
        $region53: #{tpu_custom_call.1} parent=39 // pred_check
          %p345 = pneg %p128
        $region54: #{tpu_custom_call.1} parent=39 // pred_check_branch
          %347 = sbr.rel (%p345) target = $region56
        $region55: #{tpu_custom_call.1} parent=39 // pred_region
          %348 = dma.done [#allocation9], 3072
        $region56: #{tpu_custom_call.1} parent=39 // pred_fallthru
          _
        // Predicated region
        $region57: #{tpu_custom_call.1} parent=39 // pred_check
          %p349 = pneg %p149
        $region58: #{tpu_custom_call.1} parent=39 // pred_check_branch
          %351 = sbr.rel (%p349) target = $region60
        $region59: #{tpu_custom_call.1} parent=39 // pred_region
          %352 = dma.done [#allocation9], 48
        $region60: #{tpu_custom_call.1} parent=39 // pred_fallthru
          _
        %s353 = sand.u32 %s52, 1
        %s354 = scalar_lea.sflag [#allocation3], %s353
        %s355 = sand.u32 %s52, 1
        %s356 = smul.addr %s355, 512
        %s357 = scalar_lea.vmem [#allocation2], %s356
        %p358 = pneg %p65
        %p359 = pneg %p62
        %p360 = pneg %p86
        %p361 = pneg %p83
        %p362 = pneg %p107
        %p363 = pneg %p104
        %p364 = pneg %p128
        %p365 = pneg %p125
        %p366 = pneg %p149
        %p367 = pneg %p146
        %p368 = pneg %p177
        %p369 = pneg %p174
        %s370 = sand.u32 %s164, 1
        %s371 = scalar_lea.sflag [#allocation4], %s370
        %s372 = sand.u32 %s164, 1
        %s373 = smul.addr %s372, 256
        %s374 = scalar_lea.vmem [#allocation11], %s373
        %p375 = pneg %p205
        %p376 = pneg %p202
        %s377 = sand.u32 %s30, 1
        %s378 = scalar_lea.sflag [#allocation13], %s377
        %s379 = sand.u32 %s192, 1
        %s380 = smul.addr %s379, 256
        %s381 = scalar_lea.vmem [#allocation12], %s380
        %p382 = pneg %p233
        %p383 = pneg %p230
        %s384 = sand.u32 %s30, 1
        %s385 = scalar_lea.sflag [#allocation13], %s384
        %s386 = sand.u32 %s220, 1
        %s387 = smul.addr %s386, 256
        %s388 = scalar_lea.vmem [#allocation14], %s387
        %s389 = smul.u32 64, %s35
        %s390 = smul.u32 64, %s35
        %s391 = smul.u32 4, %s35
        %s392 = smul.u32 64, %s35
        %v394 = vld [vmem:[%s332] sm:$0xff]
        %v395 = vld [vmem:[%s332 + $0x8] sm:$0xff]
        %v396 = vld [vmem:[%s332 + $0x10] sm:$0xff]
        %v397 = vld [vmem:[%s332 + $0x18] sm:$0xff]
        %v398 = vld [vmem:[%s332 + $0x20] sm:$0xff]
        %v399 = vld [vmem:[%s332 + $0x28] sm:$0xff]
        %v400 = vld [vmem:[%s332 + $0x30] sm:$0xff]
        %v401 = vld [vmem:[%s332 + $0x38] sm:$0xff]
        %v402 = vld [vmem:[%s332 + $0x40] sm:$0xff]
        %v403 = vld [vmem:[%s332 + $0x48] sm:$0xff]
        %v404 = vld [vmem:[%s332 + $0x50] sm:$0xff]
        %v405 = vld [vmem:[%s332 + $0x58] sm:$0xff]
        %v406 = vld [vmem:[%s332 + $0x60] sm:$0xff]
        %v407 = vld [vmem:[%s332 + $0x68] sm:$0xff]
        %v408 = vld [vmem:[%s332 + $0x70] sm:$0xff]
        %v409 = vld [vmem:[%s332 + $0x78] sm:$0xff]
        %v410 = vld [vmem:[%s332 + $0x80] sm:$0xff]
        %v411 = vld [vmem:[%s332 + $0x88] sm:$0xff]
        %v412 = vld [vmem:[%s332 + $0x90] sm:$0xff]
        %v413 = vld [vmem:[%s332 + $0x98] sm:$0xff]
        %v414 = vld [vmem:[%s332 + $0xa0] sm:$0xff]
        %v415 = vld [vmem:[%s332 + $0xa8] sm:$0xff]
        %v416 = vld [vmem:[%s332 + $0xb0] sm:$0xff]
        %v417 = vld [vmem:[%s332 + $0xb8] sm:$0xff]
        %v418 = vld [vmem:[%s332 + $0xc0] sm:$0xff]
        %v419 = vld [vmem:[%s332 + $0xc8] sm:$0xff]
        %v420 = vld [vmem:[%s332 + $0xd0] sm:$0xff]
        %v421 = vld [vmem:[%s332 + $0xd8] sm:$0xff]
        %v422 = vld [vmem:[%s332 + $0xe0] sm:$0xff]
        %v423 = vld [vmem:[%s332 + $0xe8] sm:$0xff]
        %v424 = vld [vmem:[%s332 + $0xf0] sm:$0xff]
        %v425 = vld [vmem:[%s332 + $0xf8] sm:$0xff]
        %v426 = vld [vmem:[%s332 + $0x100] sm:$0xff]
        %v427 = vld [vmem:[%s332 + $0x108] sm:$0xff]
        %v428 = vld [vmem:[%s332 + $0x110] sm:$0xff]
        %v429 = vld [vmem:[%s332 + $0x118] sm:$0xff]
        %v430 = vld [vmem:[%s332 + $0x120] sm:$0xff]
        %v431 = vld [vmem:[%s332 + $0x128] sm:$0xff]
        %v432 = vld [vmem:[%s332 + $0x130] sm:$0xff]
        %v433 = vld [vmem:[%s332 + $0x138] sm:$0xff]
        %v434 = vld [vmem:[%s332 + $0x140] sm:$0xff]
        %v435 = vld [vmem:[%s332 + $0x148] sm:$0xff]
        %v436 = vld [vmem:[%s332 + $0x150] sm:$0xff]
        %v437 = vld [vmem:[%s332 + $0x158] sm:$0xff]
        %v438 = vld [vmem:[%s332 + $0x160] sm:$0xff]
        %v439 = vld [vmem:[%s332 + $0x168] sm:$0xff]
        %v440 = vld [vmem:[%s332 + $0x170] sm:$0xff]
        %v441 = vld [vmem:[%s332 + $0x178] sm:$0xff]
        %v442 = vld [vmem:[%s332 + $0x180] sm:$0xff]
        %v443 = vld [vmem:[%s332 + $0x188] sm:$0xff]
        %v444 = vld [vmem:[%s332 + $0x190] sm:$0xff]
        %v445 = vld [vmem:[%s332 + $0x198] sm:$0xff]
        %v446 = vld [vmem:[%s332 + $0x1a0] sm:$0xff]
        %v447 = vld [vmem:[%s332 + $0x1a8] sm:$0xff]
        %v448 = vld [vmem:[%s332 + $0x1b0] sm:$0xff]
        %v449 = vld [vmem:[%s332 + $0x1b8] sm:$0xff]
        %v450 = vld [vmem:[%s332 + $0x1c0] sm:$0xff]
        %v451 = vld [vmem:[%s332 + $0x1c8] sm:$0xff]
        %v452 = vld [vmem:[%s332 + $0x1d0] sm:$0xff]
        %v453 = vld [vmem:[%s332 + $0x1d8] sm:$0xff]
        %v454 = vld [vmem:[%s332 + $0x1e0] sm:$0xff]
        %v455 = vld [vmem:[%s332 + $0x1e8] sm:$0xff]
        %v456 = vld [vmem:[%s332 + $0x1f0] sm:$0xff]
        %v457 = vld [vmem:[%s332 + $0x1f8] sm:$0xff]
        %v458 = vld [vmem:[#allocation5] sm:$0x1]
        %v459 = vld [vmem:[#allocation7] sm:$0x1]
        %460 = vadd.xlane.f32.xlu0 %v394
        %v461 = vpop.xlane.xlu0 %460
        %462 = vadd.xlane.f32.xlu0 %v395
        %v463 = vpop.xlane.xlu0 %462
        %464 = vadd.xlane.f32.xlu0 %v396
        %v465 = vpop.xlane.xlu0 %464
        %466 = vadd.xlane.f32.xlu0 %v397
        %v467 = vpop.xlane.xlu0 %466
        %468 = vadd.xlane.f32.xlu0 %v398
        %v469 = vpop.xlane.xlu0 %468
        %470 = vadd.xlane.f32.xlu0 %v399
        %v471 = vpop.xlane.xlu0 %470
        %472 = vadd.xlane.f32.xlu0 %v400
        %v473 = vpop.xlane.xlu0 %472
        %474 = vadd.xlane.f32.xlu0 %v401
        %v475 = vpop.xlane.xlu0 %474
        %476 = vadd.xlane.f32.xlu0 %v402
        %v477 = vpop.xlane.xlu0 %476
        %478 = vadd.xlane.f32.xlu0 %v403
        %v479 = vpop.xlane.xlu0 %478
        %480 = vadd.xlane.f32.xlu0 %v404
        %v481 = vpop.xlane.xlu0 %480
        %482 = vadd.xlane.f32.xlu0 %v405
        %v483 = vpop.xlane.xlu0 %482
        %484 = vadd.xlane.f32.xlu0 %v406
        %v485 = vpop.xlane.xlu0 %484
        %486 = vadd.xlane.f32.xlu0 %v407
        %v487 = vpop.xlane.xlu0 %486
        %488 = vadd.xlane.f32.xlu0 %v408
        %v489 = vpop.xlane.xlu0 %488
        %490 = vadd.xlane.f32.xlu0 %v409
        %v491 = vpop.xlane.xlu0 %490
        %492 = vadd.xlane.f32.xlu0 %v410
        %v493 = vpop.xlane.xlu0 %492
        %494 = vadd.xlane.f32.xlu0 %v411
        %v495 = vpop.xlane.xlu0 %494
        %496 = vadd.xlane.f32.xlu0 %v412
        %v497 = vpop.xlane.xlu0 %496
        %498 = vadd.xlane.f32.xlu0 %v413
        %v499 = vpop.xlane.xlu0 %498
        %500 = vadd.xlane.f32.xlu0 %v414
        %v501 = vpop.xlane.xlu0 %500
        %502 = vadd.xlane.f32.xlu0 %v415
        %v503 = vpop.xlane.xlu0 %502
        %504 = vadd.xlane.f32.xlu0 %v416
        %v505 = vpop.xlane.xlu0 %504
        %506 = vadd.xlane.f32.xlu0 %v417
        %v507 = vpop.xlane.xlu0 %506
        %508 = vadd.xlane.f32.xlu0 %v418
        %v509 = vpop.xlane.xlu0 %508
        %510 = vadd.xlane.f32.xlu0 %v419
        %v511 = vpop.xlane.xlu0 %510
        %512 = vadd.xlane.f32.xlu0 %v420
        %v513 = vpop.xlane.xlu0 %512
        %514 = vadd.xlane.f32.xlu0 %v421
        %v515 = vpop.xlane.xlu0 %514
        %516 = vadd.xlane.f32.xlu0 %v422
        %v517 = vpop.xlane.xlu0 %516
        %518 = vadd.xlane.f32.xlu0 %v423
        %v519 = vpop.xlane.xlu0 %518
        %520 = vadd.xlane.f32.xlu0 %v424
        %v521 = vpop.xlane.xlu0 %520
        %522 = vadd.xlane.f32.xlu0 %v425
        %v523 = vpop.xlane.xlu0 %522
        %524 = vadd.xlane.f32.xlu0 %v426
        %v525 = vpop.xlane.xlu0 %524
        %526 = vadd.xlane.f32.xlu0 %v427
        %v527 = vpop.xlane.xlu0 %526
        %528 = vadd.xlane.f32.xlu0 %v428
        %v529 = vpop.xlane.xlu0 %528
        %530 = vadd.xlane.f32.xlu0 %v429
        %v531 = vpop.xlane.xlu0 %530
        %532 = vadd.xlane.f32.xlu0 %v430
        %v533 = vpop.xlane.xlu0 %532
        %534 = vadd.xlane.f32.xlu0 %v431
        %v535 = vpop.xlane.xlu0 %534
        %536 = vadd.xlane.f32.xlu0 %v432
        %v537 = vpop.xlane.xlu0 %536
        %538 = vadd.xlane.f32.xlu0 %v433
        %v539 = vpop.xlane.xlu0 %538
        %540 = vadd.xlane.f32.xlu0 %v434
        %v541 = vpop.xlane.xlu0 %540
        %542 = vadd.xlane.f32.xlu0 %v435
        %v543 = vpop.xlane.xlu0 %542
        %544 = vadd.xlane.f32.xlu0 %v436
        %v545 = vpop.xlane.xlu0 %544
        %546 = vadd.xlane.f32.xlu0 %v437
        %v547 = vpop.xlane.xlu0 %546
        %548 = vadd.xlane.f32.xlu0 %v438
        %v549 = vpop.xlane.xlu0 %548
        %550 = vadd.xlane.f32.xlu0 %v439
        %v551 = vpop.xlane.xlu0 %550
        %552 = vadd.xlane.f32.xlu0 %v440
        %v553 = vpop.xlane.xlu0 %552
        %554 = vadd.xlane.f32.xlu0 %v441
        %v555 = vpop.xlane.xlu0 %554
        %556 = vadd.xlane.f32.xlu0 %v442
        %v557 = vpop.xlane.xlu0 %556
        %558 = vadd.xlane.f32.xlu0 %v443
        %v559 = vpop.xlane.xlu0 %558
        %560 = vadd.xlane.f32.xlu0 %v444
        %v561 = vpop.xlane.xlu0 %560
        %562 = vadd.xlane.f32.xlu0 %v445
        %v563 = vpop.xlane.xlu0 %562
        %564 = vadd.xlane.f32.xlu0 %v446
        %v565 = vpop.xlane.xlu0 %564
        %566 = vadd.xlane.f32.xlu0 %v447
        %v567 = vpop.xlane.xlu0 %566
        %568 = vadd.xlane.f32.xlu0 %v448
        %v569 = vpop.xlane.xlu0 %568
        %570 = vadd.xlane.f32.xlu0 %v449
        %v571 = vpop.xlane.xlu0 %570
        %572 = vadd.xlane.f32.xlu0 %v450
        %v573 = vpop.xlane.xlu0 %572
        %574 = vadd.xlane.f32.xlu0 %v451
        %v575 = vpop.xlane.xlu0 %574
        %576 = vadd.xlane.f32.xlu0 %v452
        %v577 = vpop.xlane.xlu0 %576
        %578 = vadd.xlane.f32.xlu0 %v453
        %v579 = vpop.xlane.xlu0 %578
        %580 = vadd.xlane.f32.xlu0 %v454
        %v581 = vpop.xlane.xlu0 %580
        %582 = vadd.xlane.f32.xlu0 %v455
        %v583 = vpop.xlane.xlu0 %582
        %584 = vadd.xlane.f32.xlu0 %v456
        %v585 = vpop.xlane.xlu0 %584
        %586 = vadd.xlane.f32.xlu0 %v457
        %v587 = vpop.xlane.xlu0 %586
        %v588 = vrcp.pop 128.0
        %v589 = vmul.f32 %v461, %v588
        %v590 = vmul.f32 %v463, %v588
        %v591 = vmul.f32 %v465, %v588
        %v592 = vmul.f32 %v467, %v588
        %v593 = vmul.f32 %v469, %v588
        %v594 = vmul.f32 %v471, %v588
        %v595 = vmul.f32 %v473, %v588
        %v596 = vmul.f32 %v475, %v588
        %v597 = vmul.f32 %v477, %v588
        %v598 = vmul.f32 %v479, %v588
        %v599 = vmul.f32 %v481, %v588
        %v600 = vmul.f32 %v483, %v588
        %v601 = vmul.f32 %v485, %v588
        %v602 = vmul.f32 %v487, %v588
        %v603 = vmul.f32 %v489, %v588
        %v604 = vmul.f32 %v491, %v588
        %v605 = vmul.f32 %v493, %v588
        %v606 = vmul.f32 %v495, %v588
        %v607 = vmul.f32 %v497, %v588
        %v608 = vmul.f32 %v499, %v588
        %v609 = vmul.f32 %v501, %v588
        %v610 = vmul.f32 %v503, %v588
        %v611 = vmul.f32 %v505, %v588
        %v612 = vmul.f32 %v507, %v588
        %v613 = vmul.f32 %v509, %v588
        %v614 = vmul.f32 %v511, %v588
        %v615 = vmul.f32 %v513, %v588
        %v616 = vmul.f32 %v515, %v588
        %v617 = vmul.f32 %v517, %v588
        %v618 = vmul.f32 %v519, %v588
        %v619 = vmul.f32 %v521, %v588
        %v620 = vmul.f32 %v523, %v588
        %v621 = vmul.f32 %v525, %v588
        %v622 = vmul.f32 %v527, %v588
        %v623 = vmul.f32 %v529, %v588
        %v624 = vmul.f32 %v531, %v588
        %v625 = vmul.f32 %v533, %v588
        %v626 = vmul.f32 %v535, %v588
        %v627 = vmul.f32 %v537, %v588
        %v628 = vmul.f32 %v539, %v588
        %v629 = vmul.f32 %v541, %v588
        %v630 = vmul.f32 %v543, %v588
        %v631 = vmul.f32 %v545, %v588
        %v632 = vmul.f32 %v547, %v588
        %v633 = vmul.f32 %v549, %v588
        %v634 = vmul.f32 %v551, %v588
        %v635 = vmul.f32 %v553, %v588
        %v636 = vmul.f32 %v555, %v588
        %v637 = vmul.f32 %v557, %v588
        %v638 = vmul.f32 %v559, %v588
        %v639 = vmul.f32 %v561, %v588
        %v640 = vmul.f32 %v563, %v588
        %v641 = vmul.f32 %v565, %v588
        %v642 = vmul.f32 %v567, %v588
        %v643 = vmul.f32 %v569, %v588
        %v644 = vmul.f32 %v571, %v588
        %v645 = vmul.f32 %v573, %v588
        %v646 = vmul.f32 %v575, %v588
        %v647 = vmul.f32 %v577, %v588
        %v648 = vmul.f32 %v579, %v588
        %v649 = vmul.f32 %v581, %v588
        %v650 = vmul.f32 %v583, %v588
        %v651 = vmul.f32 %v585, %v588
        %v652 = vmul.f32 %v587, %v588
        %v653 = vsub.f32 %v394, %v589
        %v654 = vsub.f32 %v395, %v590
        %v655 = vsub.f32 %v396, %v591
        %v656 = vsub.f32 %v397, %v592
        %v657 = vsub.f32 %v398, %v593
        %v658 = vsub.f32 %v399, %v594
        %v659 = vsub.f32 %v400, %v595
        %v660 = vsub.f32 %v401, %v596
        %v661 = vsub.f32 %v402, %v597
        %v662 = vsub.f32 %v403, %v598
        %v663 = vsub.f32 %v404, %v599
        %v664 = vsub.f32 %v405, %v600
        %v665 = vsub.f32 %v406, %v601
        %v666 = vsub.f32 %v407, %v602
        %v667 = vsub.f32 %v408, %v603
        %v668 = vsub.f32 %v409, %v604
        %v669 = vsub.f32 %v410, %v605
        %v670 = vsub.f32 %v411, %v606
        %v671 = vsub.f32 %v412, %v607
        %v672 = vsub.f32 %v413, %v608
        %v673 = vsub.f32 %v414, %v609
        %v674 = vsub.f32 %v415, %v610
        %v675 = vsub.f32 %v416, %v611
        %v676 = vsub.f32 %v417, %v612
        %v677 = vsub.f32 %v418, %v613
        %v678 = vsub.f32 %v419, %v614
        %v679 = vsub.f32 %v420, %v615
        %v680 = vsub.f32 %v421, %v616
        %v681 = vsub.f32 %v422, %v617
        %v682 = vsub.f32 %v423, %v618
        %v683 = vsub.f32 %v424, %v619
        %v684 = vsub.f32 %v425, %v620
        %v685 = vsub.f32 %v426, %v621
        %v686 = vsub.f32 %v427, %v622
        %v687 = vsub.f32 %v428, %v623
        %v688 = vsub.f32 %v429, %v624
        %v689 = vsub.f32 %v430, %v625
        %v690 = vsub.f32 %v431, %v626
        %v691 = vsub.f32 %v432, %v627
        %v692 = vsub.f32 %v433, %v628
        %v693 = vsub.f32 %v434, %v629
        %v694 = vsub.f32 %v435, %v630
        %v695 = vsub.f32 %v436, %v631
        %v696 = vsub.f32 %v437, %v632
        %v697 = vsub.f32 %v438, %v633
        %v698 = vsub.f32 %v439, %v634
        %v699 = vsub.f32 %v440, %v635
        %v700 = vsub.f32 %v441, %v636
        %v701 = vsub.f32 %v442, %v637
        %v702 = vsub.f32 %v443, %v638
        %v703 = vsub.f32 %v444, %v639
        %v704 = vsub.f32 %v445, %v640
        %v705 = vsub.f32 %v446, %v641
        %v706 = vsub.f32 %v447, %v642
        %v707 = vsub.f32 %v448, %v643
        %v708 = vsub.f32 %v449, %v644
        %v709 = vsub.f32 %v450, %v645
        %v710 = vsub.f32 %v451, %v646
        %v711 = vsub.f32 %v452, %v647
        %v712 = vsub.f32 %v453, %v648
        %v713 = vsub.f32 %v454, %v649
        %v714 = vsub.f32 %v455, %v650
        %v715 = vsub.f32 %v456, %v651
        %v716 = vsub.f32 %v457, %v652
        %v717 = vmul.f32 %v653, %v653
        %v718 = vmul.f32 %v654, %v654
        %v719 = vmul.f32 %v655, %v655
        %v720 = vmul.f32 %v656, %v656
        %v721 = vmul.f32 %v657, %v657
        %v722 = vmul.f32 %v658, %v658
        %v723 = vmul.f32 %v659, %v659
        %v724 = vmul.f32 %v660, %v660
        %v725 = vmul.f32 %v661, %v661
        %v726 = vmul.f32 %v662, %v662
        %v727 = vmul.f32 %v663, %v663
        %v728 = vmul.f32 %v664, %v664
        %v729 = vmul.f32 %v665, %v665
        %v730 = vmul.f32 %v666, %v666
        %v731 = vmul.f32 %v667, %v667
        %v732 = vmul.f32 %v668, %v668
        %v733 = vmul.f32 %v669, %v669
        %v734 = vmul.f32 %v670, %v670
        %v735 = vmul.f32 %v671, %v671
        %v736 = vmul.f32 %v672, %v672
        %v737 = vmul.f32 %v673, %v673
        %v738 = vmul.f32 %v674, %v674
        %v739 = vmul.f32 %v675, %v675
        %v740 = vmul.f32 %v676, %v676
        %v741 = vmul.f32 %v677, %v677
        %v742 = vmul.f32 %v678, %v678
        %v743 = vmul.f32 %v679, %v679
        %v744 = vmul.f32 %v680, %v680
        %v745 = vmul.f32 %v681, %v681
        %v746 = vmul.f32 %v682, %v682
        %v747 = vmul.f32 %v683, %v683
        %v748 = vmul.f32 %v684, %v684
        %v749 = vmul.f32 %v685, %v685
        %v750 = vmul.f32 %v686, %v686
        %v751 = vmul.f32 %v687, %v687
        %v752 = vmul.f32 %v688, %v688
        %v753 = vmul.f32 %v689, %v689
        %v754 = vmul.f32 %v690, %v690
        %v755 = vmul.f32 %v691, %v691
        %v756 = vmul.f32 %v692, %v692
        %v757 = vmul.f32 %v693, %v693
        %v758 = vmul.f32 %v694, %v694
        %v759 = vmul.f32 %v695, %v695
        %v760 = vmul.f32 %v696, %v696
        %v761 = vmul.f32 %v697, %v697
        %v762 = vmul.f32 %v698, %v698
        %v763 = vmul.f32 %v699, %v699
        %v764 = vmul.f32 %v700, %v700
        %v765 = vmul.f32 %v701, %v701
        %v766 = vmul.f32 %v702, %v702
        %v767 = vmul.f32 %v703, %v703
        %v768 = vmul.f32 %v704, %v704
        %v769 = vmul.f32 %v705, %v705
        %v770 = vmul.f32 %v706, %v706
        %v771 = vmul.f32 %v707, %v707
        %v772 = vmul.f32 %v708, %v708
        %v773 = vmul.f32 %v709, %v709
        %v774 = vmul.f32 %v710, %v710
        %v775 = vmul.f32 %v711, %v711
        %v776 = vmul.f32 %v712, %v712
        %v777 = vmul.f32 %v713, %v713
        %v778 = vmul.f32 %v714, %v714
        %v779 = vmul.f32 %v715, %v715
        %v780 = vmul.f32 %v716, %v716
        %781 = vadd.xlane.f32.xlu0 %v717
        %v782 = vpop.xlane.xlu0 %781
        %783 = vadd.xlane.f32.xlu0 %v718
        %v784 = vpop.xlane.xlu0 %783
        %785 = vadd.xlane.f32.xlu0 %v719
        %v786 = vpop.xlane.xlu0 %785
        %787 = vadd.xlane.f32.xlu0 %v720
        %v788 = vpop.xlane.xlu0 %787
        %789 = vadd.xlane.f32.xlu0 %v721
        %v790 = vpop.xlane.xlu0 %789
        %791 = vadd.xlane.f32.xlu0 %v722
        %v792 = vpop.xlane.xlu0 %791
        %793 = vadd.xlane.f32.xlu0 %v723
        %v794 = vpop.xlane.xlu0 %793
        %795 = vadd.xlane.f32.xlu0 %v724
        %v796 = vpop.xlane.xlu0 %795
        %797 = vadd.xlane.f32.xlu0 %v725
        %v798 = vpop.xlane.xlu0 %797
        %799 = vadd.xlane.f32.xlu0 %v726
        %v800 = vpop.xlane.xlu0 %799
        %801 = vadd.xlane.f32.xlu0 %v727
        %v802 = vpop.xlane.xlu0 %801
        %803 = vadd.xlane.f32.xlu0 %v728
        %v804 = vpop.xlane.xlu0 %803
        %805 = vadd.xlane.f32.xlu0 %v729
        %v806 = vpop.xlane.xlu0 %805
        %807 = vadd.xlane.f32.xlu0 %v730
        %v808 = vpop.xlane.xlu0 %807
        %809 = vadd.xlane.f32.xlu0 %v731
        %v810 = vpop.xlane.xlu0 %809
        %811 = vadd.xlane.f32.xlu0 %v732
        %v812 = vpop.xlane.xlu0 %811
        %813 = vadd.xlane.f32.xlu0 %v733
        %v814 = vpop.xlane.xlu0 %813
        %815 = vadd.xlane.f32.xlu0 %v734
        %v816 = vpop.xlane.xlu0 %815
        %817 = vadd.xlane.f32.xlu0 %v735
        %v818 = vpop.xlane.xlu0 %817
        %819 = vadd.xlane.f32.xlu0 %v736
        %v820 = vpop.xlane.xlu0 %819
        %821 = vadd.xlane.f32.xlu0 %v737
        %v822 = vpop.xlane.xlu0 %821
        %823 = vadd.xlane.f32.xlu0 %v738
        %v824 = vpop.xlane.xlu0 %823
        %825 = vadd.xlane.f32.xlu0 %v739
        %v826 = vpop.xlane.xlu0 %825
        %827 = vadd.xlane.f32.xlu0 %v740
        %v828 = vpop.xlane.xlu0 %827
        %829 = vadd.xlane.f32.xlu0 %v741
        %v830 = vpop.xlane.xlu0 %829
        %831 = vadd.xlane.f32.xlu0 %v742
        %v832 = vpop.xlane.xlu0 %831
        %833 = vadd.xlane.f32.xlu0 %v743
        %v834 = vpop.xlane.xlu0 %833
        %835 = vadd.xlane.f32.xlu0 %v744
        %v836 = vpop.xlane.xlu0 %835
        %837 = vadd.xlane.f32.xlu0 %v745
        %v838 = vpop.xlane.xlu0 %837
        %839 = vadd.xlane.f32.xlu0 %v746
        %v840 = vpop.xlane.xlu0 %839
        %841 = vadd.xlane.f32.xlu0 %v747
        %v842 = vpop.xlane.xlu0 %841
        %843 = vadd.xlane.f32.xlu0 %v748
        %v844 = vpop.xlane.xlu0 %843
        %845 = vadd.xlane.f32.xlu0 %v749
        %v846 = vpop.xlane.xlu0 %845
        %847 = vadd.xlane.f32.xlu0 %v750
        %v848 = vpop.xlane.xlu0 %847
        %849 = vadd.xlane.f32.xlu0 %v751
        %v850 = vpop.xlane.xlu0 %849
        %851 = vadd.xlane.f32.xlu0 %v752
        %v852 = vpop.xlane.xlu0 %851
        %853 = vadd.xlane.f32.xlu0 %v753
        %v854 = vpop.xlane.xlu0 %853
        %855 = vadd.xlane.f32.xlu0 %v754
        %v856 = vpop.xlane.xlu0 %855
        %857 = vadd.xlane.f32.xlu0 %v755
        %v858 = vpop.xlane.xlu0 %857
        %859 = vadd.xlane.f32.xlu0 %v756
        %v860 = vpop.xlane.xlu0 %859
        %861 = vadd.xlane.f32.xlu0 %v757
        %v862 = vpop.xlane.xlu0 %861
        %863 = vadd.xlane.f32.xlu0 %v758
        %v864 = vpop.xlane.xlu0 %863
        %865 = vadd.xlane.f32.xlu0 %v759
        %v866 = vpop.xlane.xlu0 %865
        %867 = vadd.xlane.f32.xlu0 %v760
        %v868 = vpop.xlane.xlu0 %867
        %869 = vadd.xlane.f32.xlu0 %v761
        %v870 = vpop.xlane.xlu0 %869
        %871 = vadd.xlane.f32.xlu0 %v762
        %v872 = vpop.xlane.xlu0 %871
        %873 = vadd.xlane.f32.xlu0 %v763
        %v874 = vpop.xlane.xlu0 %873
        %875 = vadd.xlane.f32.xlu0 %v764
        %v876 = vpop.xlane.xlu0 %875
        %877 = vadd.xlane.f32.xlu0 %v765
        %v878 = vpop.xlane.xlu0 %877
        %879 = vadd.xlane.f32.xlu0 %v766
        %v880 = vpop.xlane.xlu0 %879
        %881 = vadd.xlane.f32.xlu0 %v767
        %v882 = vpop.xlane.xlu0 %881
        %883 = vadd.xlane.f32.xlu0 %v768
        %v884 = vpop.xlane.xlu0 %883
        %885 = vadd.xlane.f32.xlu0 %v769
        %v886 = vpop.xlane.xlu0 %885
        %887 = vadd.xlane.f32.xlu0 %v770
        %v888 = vpop.xlane.xlu0 %887
        %889 = vadd.xlane.f32.xlu0 %v771
        %v890 = vpop.xlane.xlu0 %889
        %891 = vadd.xlane.f32.xlu0 %v772
        %v892 = vpop.xlane.xlu0 %891
        %893 = vadd.xlane.f32.xlu0 %v773
        %v894 = vpop.xlane.xlu0 %893
        %895 = vadd.xlane.f32.xlu0 %v774
        %v896 = vpop.xlane.xlu0 %895
        %897 = vadd.xlane.f32.xlu0 %v775
        %v898 = vpop.xlane.xlu0 %897
        %899 = vadd.xlane.f32.xlu0 %v776
        %v900 = vpop.xlane.xlu0 %899
        %901 = vadd.xlane.f32.xlu0 %v777
        %v902 = vpop.xlane.xlu0 %901
        %903 = vadd.xlane.f32.xlu0 %v778
        %v904 = vpop.xlane.xlu0 %903
        %905 = vadd.xlane.f32.xlu0 %v779
        %v906 = vpop.xlane.xlu0 %905
        %907 = vadd.xlane.f32.xlu0 %v780
        %v908 = vpop.xlane.xlu0 %907
        %v909 = vmul.f32 %v782, %v588
        %v910 = vmul.f32 %v784, %v588
        %v911 = vmul.f32 %v786, %v588
        %v912 = vmul.f32 %v788, %v588
        %v913 = vmul.f32 %v790, %v588
        %v914 = vmul.f32 %v792, %v588
        %v915 = vmul.f32 %v794, %v588
        %v916 = vmul.f32 %v796, %v588
        %v917 = vmul.f32 %v798, %v588
        %v918 = vmul.f32 %v800, %v588
        %v919 = vmul.f32 %v802, %v588
        %v920 = vmul.f32 %v804, %v588
        %v921 = vmul.f32 %v806, %v588
        %v922 = vmul.f32 %v808, %v588
        %v923 = vmul.f32 %v810, %v588
        %v924 = vmul.f32 %v812, %v588
        %v925 = vmul.f32 %v814, %v588
        %v926 = vmul.f32 %v816, %v588
        %v927 = vmul.f32 %v818, %v588
        %v928 = vmul.f32 %v820, %v588
        %v929 = vmul.f32 %v822, %v588
        %v930 = vmul.f32 %v824, %v588
        %v931 = vmul.f32 %v826, %v588
        %v932 = vmul.f32 %v828, %v588
        %v933 = vmul.f32 %v830, %v588
        %v934 = vmul.f32 %v832, %v588
        %v935 = vmul.f32 %v834, %v588
        %v936 = vmul.f32 %v836, %v588
        %v937 = vmul.f32 %v838, %v588
        %v938 = vmul.f32 %v840, %v588
        %v939 = vmul.f32 %v842, %v588
        %v940 = vmul.f32 %v844, %v588
        %v941 = vmul.f32 %v846, %v588
        %v942 = vmul.f32 %v848, %v588
        %v943 = vmul.f32 %v850, %v588
        %v944 = vmul.f32 %v852, %v588
        %v945 = vmul.f32 %v854, %v588
        %v946 = vmul.f32 %v856, %v588
        %v947 = vmul.f32 %v858, %v588
        %v948 = vmul.f32 %v860, %v588
        %v949 = vmul.f32 %v862, %v588
        %v950 = vmul.f32 %v864, %v588
        %v951 = vmul.f32 %v866, %v588
        %v952 = vmul.f32 %v868, %v588
        %v953 = vmul.f32 %v870, %v588
        %v954 = vmul.f32 %v872, %v588
        %v955 = vmul.f32 %v874, %v588
        %v956 = vmul.f32 %v876, %v588
        %v957 = vmul.f32 %v878, %v588
        %v958 = vmul.f32 %v880, %v588
        %v959 = vmul.f32 %v882, %v588
        %v960 = vmul.f32 %v884, %v588
        %v961 = vmul.f32 %v886, %v588
        %v962 = vmul.f32 %v888, %v588
        %v963 = vmul.f32 %v890, %v588
        %v964 = vmul.f32 %v892, %v588
        %v965 = vmul.f32 %v894, %v588
        %v966 = vmul.f32 %v896, %v588
        %v967 = vmul.f32 %v898, %v588
        %v968 = vmul.f32 %v900, %v588
        %v969 = vmul.f32 %v902, %v588
        %v970 = vmul.f32 %v904, %v588
        %v971 = vmul.f32 %v906, %v588
        %v972 = vmul.f32 %v908, %v588
        %v973 = vadd.f32 %v909, 1e-05
        %v974 = vadd.f32 %v910, 1e-05
        %v975 = vadd.f32 %v911, 1e-05
        %v976 = vadd.f32 %v912, 1e-05
        %v977 = vadd.f32 %v913, 1e-05
        %v978 = vadd.f32 %v914, 1e-05
        %v979 = vadd.f32 %v915, 1e-05
        %v980 = vadd.f32 %v916, 1e-05
        %v981 = vadd.f32 %v917, 1e-05
        %v982 = vadd.f32 %v918, 1e-05
        %v983 = vadd.f32 %v919, 1e-05
        %v984 = vadd.f32 %v920, 1e-05
        %v985 = vadd.f32 %v921, 1e-05
        %v986 = vadd.f32 %v922, 1e-05
        %v987 = vadd.f32 %v923, 1e-05
        %v988 = vadd.f32 %v924, 1e-05
        %v989 = vadd.f32 %v925, 1e-05
        %v990 = vadd.f32 %v926, 1e-05
        %v991 = vadd.f32 %v927, 1e-05
        %v992 = vadd.f32 %v928, 1e-05
        %v993 = vadd.f32 %v929, 1e-05
        %v994 = vadd.f32 %v930, 1e-05
        %v995 = vadd.f32 %v931, 1e-05
        %v996 = vadd.f32 %v932, 1e-05
        %v997 = vadd.f32 %v933, 1e-05
        %v998 = vadd.f32 %v934, 1e-05
        %v999 = vadd.f32 %v935, 1e-05
        %v1000 = vadd.f32 %v936, 1e-05
        %v1001 = vadd.f32 %v937, 1e-05
        %v1002 = vadd.f32 %v938, 1e-05
        %v1003 = vadd.f32 %v939, 1e-05
        %v1004 = vadd.f32 %v940, 1e-05
        %v1005 = vadd.f32 %v941, 1e-05
        %v1006 = vadd.f32 %v942, 1e-05
        %v1007 = vadd.f32 %v943, 1e-05
        %v1008 = vadd.f32 %v944, 1e-05
        %v1009 = vadd.f32 %v945, 1e-05
        %v1010 = vadd.f32 %v946, 1e-05
        %v1011 = vadd.f32 %v947, 1e-05
        %v1012 = vadd.f32 %v948, 1e-05
        %v1013 = vadd.f32 %v949, 1e-05
        %v1014 = vadd.f32 %v950, 1e-05
        %v1015 = vadd.f32 %v951, 1e-05
        %v1016 = vadd.f32 %v952, 1e-05
        %v1017 = vadd.f32 %v953, 1e-05
        %v1018 = vadd.f32 %v954, 1e-05
        %v1019 = vadd.f32 %v955, 1e-05
        %v1020 = vadd.f32 %v956, 1e-05
        %v1021 = vadd.f32 %v957, 1e-05
        %v1022 = vadd.f32 %v958, 1e-05
        %v1023 = vadd.f32 %v959, 1e-05
        %v1024 = vadd.f32 %v960, 1e-05
        %v1025 = vadd.f32 %v961, 1e-05
        %v1026 = vadd.f32 %v962, 1e-05
        %v1027 = vadd.f32 %v963, 1e-05
        %v1028 = vadd.f32 %v964, 1e-05
        %v1029 = vadd.f32 %v965, 1e-05
        %v1030 = vadd.f32 %v966, 1e-05
        %v1031 = vadd.f32 %v967, 1e-05
        %v1032 = vadd.f32 %v968, 1e-05
        %v1033 = vadd.f32 %v969, 1e-05
        %v1034 = vadd.f32 %v970, 1e-05
        %v1035 = vadd.f32 %v971, 1e-05
        %v1036 = vadd.f32 %v972, 1e-05
        %v1037 = vrsqrt.pop %v973
        %v1038 = vrsqrt.pop %v974
        %v1039 = vrsqrt.pop %v975
        %v1040 = vrsqrt.pop %v976
        %v1041 = vrsqrt.pop %v977
        %v1042 = vrsqrt.pop %v978
        %v1043 = vrsqrt.pop %v979
        %v1044 = vrsqrt.pop %v980
        %v1045 = vrsqrt.pop %v981
        %v1046 = vrsqrt.pop %v982
        %v1047 = vrsqrt.pop %v983
        %v1048 = vrsqrt.pop %v984
        %v1049 = vrsqrt.pop %v985
        %v1050 = vrsqrt.pop %v986
        %v1051 = vrsqrt.pop %v987
        %v1052 = vrsqrt.pop %v988
        %v1053 = vrsqrt.pop %v989
        %v1054 = vrsqrt.pop %v990
        %v1055 = vrsqrt.pop %v991
        %v1056 = vrsqrt.pop %v992
        %v1057 = vrsqrt.pop %v993
        %v1058 = vrsqrt.pop %v994
        %v1059 = vrsqrt.pop %v995
        %v1060 = vrsqrt.pop %v996
        %v1061 = vrsqrt.pop %v997
        %v1062 = vrsqrt.pop %v998
        %v1063 = vrsqrt.pop %v999
        %v1064 = vrsqrt.pop %v1000
        %v1065 = vrsqrt.pop %v1001
        %v1066 = vrsqrt.pop %v1002
        %v1067 = vrsqrt.pop %v1003
        %v1068 = vrsqrt.pop %v1004
        %v1069 = vrsqrt.pop %v1005
        %v1070 = vrsqrt.pop %v1006
        %v1071 = vrsqrt.pop %v1007
        %v1072 = vrsqrt.pop %v1008
        %v1073 = vrsqrt.pop %v1009
        %v1074 = vrsqrt.pop %v1010
        %v1075 = vrsqrt.pop %v1011
        %v1076 = vrsqrt.pop %v1012
        %v1077 = vrsqrt.pop %v1013
        %v1078 = vrsqrt.pop %v1014
        %v1079 = vrsqrt.pop %v1015
        %v1080 = vrsqrt.pop %v1016
        %v1081 = vrsqrt.pop %v1017
        %v1082 = vrsqrt.pop %v1018
        %v1083 = vrsqrt.pop %v1019
        %v1084 = vrsqrt.pop %v1020
        %v1085 = vrsqrt.pop %v1021
        %v1086 = vrsqrt.pop %v1022
        %v1087 = vrsqrt.pop %v1023
        %v1088 = vrsqrt.pop %v1024
        %v1089 = vrsqrt.pop %v1025
        %v1090 = vrsqrt.pop %v1026
        %v1091 = vrsqrt.pop %v1027
        %v1092 = vrsqrt.pop %v1028
        %v1093 = vrsqrt.pop %v1029
        %v1094 = vrsqrt.pop %v1030
        %v1095 = vrsqrt.pop %v1031
        %v1096 = vrsqrt.pop %v1032
        %v1097 = vrsqrt.pop %v1033
        %v1098 = vrsqrt.pop %v1034
        %v1099 = vrsqrt.pop %v1035
        %v1100 = vrsqrt.pop %v1036
        %v1101 = vmul.f32 %v653, %v1037
        %v1102 = vmul.f32 %v654, %v1038
        %v1103 = vmul.f32 %v655, %v1039
        %v1104 = vmul.f32 %v656, %v1040
        %v1105 = vmul.f32 %v657, %v1041
        %v1106 = vmul.f32 %v658, %v1042
        %v1107 = vmul.f32 %v659, %v1043
        %v1108 = vmul.f32 %v660, %v1044
        %v1109 = vmul.f32 %v661, %v1045
        %v1110 = vmul.f32 %v662, %v1046
        %v1111 = vmul.f32 %v663, %v1047
        %v1112 = vmul.f32 %v664, %v1048
        %v1113 = vmul.f32 %v665, %v1049
        %v1114 = vmul.f32 %v666, %v1050
        %v1115 = vmul.f32 %v667, %v1051
        %v1116 = vmul.f32 %v668, %v1052
        %v1117 = vmul.f32 %v669, %v1053
        %v1118 = vmul.f32 %v670, %v1054
        %v1119 = vmul.f32 %v671, %v1055
        %v1120 = vmul.f32 %v672, %v1056
        %v1121 = vmul.f32 %v673, %v1057
        %v1122 = vmul.f32 %v674, %v1058
        %v1123 = vmul.f32 %v675, %v1059
        %v1124 = vmul.f32 %v676, %v1060
        %v1125 = vmul.f32 %v677, %v1061
        %v1126 = vmul.f32 %v678, %v1062
        %v1127 = vmul.f32 %v679, %v1063
        %v1128 = vmul.f32 %v680, %v1064
        %v1129 = vmul.f32 %v681, %v1065
        %v1130 = vmul.f32 %v682, %v1066
        %v1131 = vmul.f32 %v683, %v1067
        %v1132 = vmul.f32 %v684, %v1068
        %v1133 = vmul.f32 %v685, %v1069
        %v1134 = vmul.f32 %v686, %v1070
        %v1135 = vmul.f32 %v687, %v1071
        %v1136 = vmul.f32 %v688, %v1072
        %v1137 = vmul.f32 %v689, %v1073
        %v1138 = vmul.f32 %v690, %v1074
        %v1139 = vmul.f32 %v691, %v1075
        %v1140 = vmul.f32 %v692, %v1076
        %v1141 = vmul.f32 %v693, %v1077
        %v1142 = vmul.f32 %v694, %v1078
        %v1143 = vmul.f32 %v695, %v1079
        %v1144 = vmul.f32 %v696, %v1080
        %v1145 = vmul.f32 %v697, %v1081
        %v1146 = vmul.f32 %v698, %v1082
        %v1147 = vmul.f32 %v699, %v1083
        %v1148 = vmul.f32 %v700, %v1084
        %v1149 = vmul.f32 %v701, %v1085
        %v1150 = vmul.f32 %v702, %v1086
        %v1151 = vmul.f32 %v703, %v1087
        %v1152 = vmul.f32 %v704, %v1088
        %v1153 = vmul.f32 %v705, %v1089
        %v1154 = vmul.f32 %v706, %v1090
        %v1155 = vmul.f32 %v707, %v1091
        %v1156 = vmul.f32 %v708, %v1092
        %v1157 = vmul.f32 %v709, %v1093
        %v1158 = vmul.f32 %v710, %v1094
        %v1159 = vmul.f32 %v711, %v1095
        %v1160 = vmul.f32 %v712, %v1096
        %v1161 = vmul.f32 %v713, %v1097
        %v1162 = vmul.f32 %v714, %v1098
        %v1163 = vmul.f32 %v715, %v1099
        %v1164 = vmul.f32 %v716, %v1100
        %v1166 = vlaneseq
        %v1167 = vshrl.u32 %v1166, 7
        %v1168 = vsub.s32 0, %v1167
        %v1169 = vrot.slane %v458, %v1168
        %v1171 = vmul.f32 %v1101, %v1169
        %v1172 = vmul.f32 %v1102, %v1169
        %v1173 = vmul.f32 %v1103, %v1169
        %v1174 = vmul.f32 %v1104, %v1169
        %v1175 = vmul.f32 %v1105, %v1169
        %v1176 = vmul.f32 %v1106, %v1169
        %v1177 = vmul.f32 %v1107, %v1169
        %v1178 = vmul.f32 %v1108, %v1169
        %v1179 = vmul.f32 %v1109, %v1169
        %v1180 = vmul.f32 %v1110, %v1169
        %v1181 = vmul.f32 %v1111, %v1169
        %v1182 = vmul.f32 %v1112, %v1169
        %v1183 = vmul.f32 %v1113, %v1169
        %v1184 = vmul.f32 %v1114, %v1169
        %v1185 = vmul.f32 %v1115, %v1169
        %v1186 = vmul.f32 %v1116, %v1169
        %v1187 = vmul.f32 %v1117, %v1169
        %v1188 = vmul.f32 %v1118, %v1169
        %v1189 = vmul.f32 %v1119, %v1169
        %v1190 = vmul.f32 %v1120, %v1169
        %v1191 = vmul.f32 %v1121, %v1169
        %v1192 = vmul.f32 %v1122, %v1169
        %v1193 = vmul.f32 %v1123, %v1169
        %v1194 = vmul.f32 %v1124, %v1169
        %v1195 = vmul.f32 %v1125, %v1169
        %v1196 = vmul.f32 %v1126, %v1169
        %v1197 = vmul.f32 %v1127, %v1169
        %v1198 = vmul.f32 %v1128, %v1169
        %v1199 = vmul.f32 %v1129, %v1169
        %v1200 = vmul.f32 %v1130, %v1169
        %v1201 = vmul.f32 %v1131, %v1169
        %v1202 = vmul.f32 %v1132, %v1169
        %v1203 = vmul.f32 %v1133, %v1169
        %v1204 = vmul.f32 %v1134, %v1169
        %v1205 = vmul.f32 %v1135, %v1169
        %v1206 = vmul.f32 %v1136, %v1169
        %v1207 = vmul.f32 %v1137, %v1169
        %v1208 = vmul.f32 %v1138, %v1169
        %v1209 = vmul.f32 %v1139, %v1169
        %v1210 = vmul.f32 %v1140, %v1169
        %v1211 = vmul.f32 %v1141, %v1169
        %v1212 = vmul.f32 %v1142, %v1169
        %v1213 = vmul.f32 %v1143, %v1169
        %v1214 = vmul.f32 %v1144, %v1169
        %v1215 = vmul.f32 %v1145, %v1169
        %v1216 = vmul.f32 %v1146, %v1169
        %v1217 = vmul.f32 %v1147, %v1169
        %v1218 = vmul.f32 %v1148, %v1169
        %v1219 = vmul.f32 %v1149, %v1169
        %v1220 = vmul.f32 %v1150, %v1169
        %v1221 = vmul.f32 %v1151, %v1169
        %v1222 = vmul.f32 %v1152, %v1169
        %v1223 = vmul.f32 %v1153, %v1169
        %v1224 = vmul.f32 %v1154, %v1169
        %v1225 = vmul.f32 %v1155, %v1169
        %v1226 = vmul.f32 %v1156, %v1169
        %v1227 = vmul.f32 %v1157, %v1169
        %v1228 = vmul.f32 %v1158, %v1169
        %v1229 = vmul.f32 %v1159, %v1169
        %v1230 = vmul.f32 %v1160, %v1169
        %v1231 = vmul.f32 %v1161, %v1169
        %v1232 = vmul.f32 %v1162, %v1169
        %v1233 = vmul.f32 %v1163, %v1169
        %v1234 = vmul.f32 %v1164, %v1169
        %v1236 = vlaneseq
        %v1237 = vshrl.u32 %v1236, 7
        %v1238 = vsub.s32 0, %v1237
        %v1239 = vrot.slane %v459, %v1238
        %v1241 = vadd.f32 %v1171, %v1239
        %v1242 = vadd.f32 %v1172, %v1239
        %v1243 = vadd.f32 %v1173, %v1239
        %v1244 = vadd.f32 %v1174, %v1239
        %v1245 = vadd.f32 %v1175, %v1239
        %v1246 = vadd.f32 %v1176, %v1239
        %v1247 = vadd.f32 %v1177, %v1239
        %v1248 = vadd.f32 %v1178, %v1239
        %v1249 = vadd.f32 %v1179, %v1239
        %v1250 = vadd.f32 %v1180, %v1239
        %v1251 = vadd.f32 %v1181, %v1239
        %v1252 = vadd.f32 %v1182, %v1239
        %v1253 = vadd.f32 %v1183, %v1239
        %v1254 = vadd.f32 %v1184, %v1239
        %v1255 = vadd.f32 %v1185, %v1239
        %v1256 = vadd.f32 %v1186, %v1239
        %v1257 = vadd.f32 %v1187, %v1239
        %v1258 = vadd.f32 %v1188, %v1239
        %v1259 = vadd.f32 %v1189, %v1239
        %v1260 = vadd.f32 %v1190, %v1239
        %v1261 = vadd.f32 %v1191, %v1239
        %v1262 = vadd.f32 %v1192, %v1239
        %v1263 = vadd.f32 %v1193, %v1239
        %v1264 = vadd.f32 %v1194, %v1239
        %v1265 = vadd.f32 %v1195, %v1239
        %v1266 = vadd.f32 %v1196, %v1239
        %v1267 = vadd.f32 %v1197, %v1239
        %v1268 = vadd.f32 %v1198, %v1239
        %v1269 = vadd.f32 %v1199, %v1239
        %v1270 = vadd.f32 %v1200, %v1239
        %v1271 = vadd.f32 %v1201, %v1239
        %v1272 = vadd.f32 %v1202, %v1239
        %v1273 = vadd.f32 %v1203, %v1239
        %v1274 = vadd.f32 %v1204, %v1239
        %v1275 = vadd.f32 %v1205, %v1239
        %v1276 = vadd.f32 %v1206, %v1239
        %v1277 = vadd.f32 %v1207, %v1239
        %v1278 = vadd.f32 %v1208, %v1239
        %v1279 = vadd.f32 %v1209, %v1239
        %v1280 = vadd.f32 %v1210, %v1239
        %v1281 = vadd.f32 %v1211, %v1239
        %v1282 = vadd.f32 %v1212, %v1239
        %v1283 = vadd.f32 %v1213, %v1239
        %v1284 = vadd.f32 %v1214, %v1239
        %v1285 = vadd.f32 %v1215, %v1239
        %v1286 = vadd.f32 %v1216, %v1239
        %v1287 = vadd.f32 %v1217, %v1239
        %v1288 = vadd.f32 %v1218, %v1239
        %v1289 = vadd.f32 %v1219, %v1239
        %v1290 = vadd.f32 %v1220, %v1239
        %v1291 = vadd.f32 %v1221, %v1239
        %v1292 = vadd.f32 %v1222, %v1239
        %v1293 = vadd.f32 %v1223, %v1239
        %v1294 = vadd.f32 %v1224, %v1239
        %v1295 = vadd.f32 %v1225, %v1239
        %v1296 = vadd.f32 %v1226, %v1239
        %v1297 = vadd.f32 %v1227, %v1239
        %v1298 = vadd.f32 %v1228, %v1239
        %v1299 = vadd.f32 %v1229, %v1239
        %v1300 = vadd.f32 %v1230, %v1239
        %v1301 = vadd.f32 %v1231, %v1239
        %v1302 = vadd.f32 %v1232, %v1239
        %v1303 = vadd.f32 %v1233, %v1239
        %v1304 = vadd.f32 %v1234, %v1239
        %v1305 = vpack.c.bf16 %v1242, %v1241
        %v1306 = vpack.c.bf16 %v1244, %v1243
        %v1307 = vpack.c.bf16 %v1246, %v1245
        %v1308 = vpack.c.bf16 %v1248, %v1247
        %v1309 = vpack.c.bf16 %v1250, %v1249
        %v1310 = vpack.c.bf16 %v1252, %v1251
        %v1311 = vpack.c.bf16 %v1254, %v1253
        %v1312 = vpack.c.bf16 %v1256, %v1255
        %v1313 = vpack.c.bf16 %v1258, %v1257
        %v1314 = vpack.c.bf16 %v1260, %v1259
        %v1315 = vpack.c.bf16 %v1262, %v1261
        %v1316 = vpack.c.bf16 %v1264, %v1263
        %v1317 = vpack.c.bf16 %v1266, %v1265
        %v1318 = vpack.c.bf16 %v1268, %v1267
        %v1319 = vpack.c.bf16 %v1270, %v1269
        %v1320 = vpack.c.bf16 %v1272, %v1271
        %v1321 = vpack.c.bf16 %v1274, %v1273
        %v1322 = vpack.c.bf16 %v1276, %v1275
        %v1323 = vpack.c.bf16 %v1278, %v1277
        %v1324 = vpack.c.bf16 %v1280, %v1279
        %v1325 = vpack.c.bf16 %v1282, %v1281
        %v1326 = vpack.c.bf16 %v1284, %v1283
        %v1327 = vpack.c.bf16 %v1286, %v1285
        %v1328 = vpack.c.bf16 %v1288, %v1287
        %v1329 = vpack.c.bf16 %v1290, %v1289
        %v1330 = vpack.c.bf16 %v1292, %v1291
        %v1331 = vpack.c.bf16 %v1294, %v1293
        %v1332 = vpack.c.bf16 %v1296, %v1295
        %v1333 = vpack.c.bf16 %v1298, %v1297
        %v1334 = vpack.c.bf16 %v1300, %v1299
        %v1335 = vpack.c.bf16 %v1302, %v1301
        %v1336 = vpack.c.bf16 %v1304, %v1303
        %v1337 = vld [vmem:[#allocation8] sm:$0xff]
        %v1338 = vld [vmem:[#allocation8 + $0x8] sm:$0xf]
        %v1339 = vld [vmem:[#allocation8 + $0xc] sm:$0xff]
        %v1340 = vld [vmem:[#allocation8 + $0x14] sm:$0xf]
        %v1341 = vld [vmem:[#allocation8 + $0x18] sm:$0xff]
        %v1342 = vld [vmem:[#allocation8 + $0x20] sm:$0xf]
        %v1343 = vld [vmem:[#allocation8 + $0x24] sm:$0xff]
        %v1344 = vld [vmem:[#allocation8 + $0x2c] sm:$0xf]
        %v1345 = vld [vmem:[#allocation8 + $0x30] sm:$0xff]
        %v1346 = vld [vmem:[#allocation8 + $0x38] sm:$0xf]
        %v1347 = vld [vmem:[#allocation8 + $0x3c] sm:$0xff]
        %v1348 = vld [vmem:[#allocation8 + $0x44] sm:$0xf]
        %v1349 = vld [vmem:[#allocation8 + $0x48] sm:$0xff]
        %v1350 = vld [vmem:[#allocation8 + $0x50] sm:$0xf]
        %v1351 = vld [vmem:[#allocation8 + $0x54] sm:$0xff]
        %v1352 = vld [vmem:[#allocation8 + $0x5c] sm:$0xf]
        %v1353 = vld [vmem:[#allocation8 + $0x60] sm:$0xff]
        %v1354 = vld [vmem:[#allocation8 + $0x68] sm:$0xf]
        %v1355 = vld [vmem:[#allocation8 + $0x6c] sm:$0xff]
        %v1356 = vld [vmem:[#allocation8 + $0x74] sm:$0xf]
        %v1357 = vld [vmem:[#allocation8 + $0x78] sm:$0xff]
        %v1358 = vld [vmem:[#allocation8 + $0x80] sm:$0xf]
        %v1359 = vld [vmem:[#allocation8 + $0x84] sm:$0xff]
        %v1360 = vld [vmem:[#allocation8 + $0x8c] sm:$0xf]
        %v1361 = vld [vmem:[#allocation8 + $0x90] sm:$0xff]
        %v1362 = vld [vmem:[#allocation8 + $0x98] sm:$0xf]
        %v1363 = vld [vmem:[#allocation8 + $0x9c] sm:$0xff]
        %v1364 = vld [vmem:[#allocation8 + $0xa4] sm:$0xf]
        %v1365 = vld [vmem:[#allocation8 + $0xa8] sm:$0xff]
        %v1366 = vld [vmem:[#allocation8 + $0xb0] sm:$0xf]
        %v1367 = vld [vmem:[#allocation8 + $0xb4] sm:$0xff]
        %v1368 = vld [vmem:[#allocation8 + $0xbc] sm:$0xf]
        %v1369 = vld [vmem:[#allocation10] sm:$0x7]
        %v1371 = vlaneseq
        %v1372 = vshrl.u32 %v1371, 7
        %v1373 = vsub.s32 0, %v1372
        %v1374 = vrot.slane %v1369, %v1373
        %v1375 = vlaneseq
        %v1376 = vshrl.u32 %v1375, 7
        %v1377 = vsub.s32 1, %v1376
        %v1378 = vrot.slane %v1369, %v1377
        %v1379 = vlaneseq
        %v1380 = vshrl.u32 %v1379, 7
        %v1381 = vsub.s32 2, %v1380
        %v1382 = vrot.slane %v1369, %v1381
        %v1418 = vunpack.c.l.b16 %v1337
        %v1419 = vunpack.c.h.b16 %v1337
        %v1420 = vunpack.c.l.b16 %v1338
        %v1421 = vunpack.c.l.b16 %v1339
        %v1422 = vunpack.c.h.b16 %v1339
        %v1423 = vunpack.c.l.b16 %v1340
        %v1424 = vunpack.c.l.b16 %v1341
        %v1425 = vunpack.c.h.b16 %v1341
        %v1426 = vunpack.c.l.b16 %v1342
        %v1427 = vunpack.c.l.b16 %v1343
        %v1428 = vunpack.c.h.b16 %v1343
        %v1429 = vunpack.c.l.b16 %v1344
        %v1430 = vunpack.c.l.b16 %v1345
        %v1431 = vunpack.c.h.b16 %v1345
        %v1432 = vunpack.c.l.b16 %v1346
        %v1433 = vunpack.c.l.b16 %v1347
        %v1434 = vunpack.c.h.b16 %v1347
        %v1435 = vunpack.c.l.b16 %v1348
        %v1436 = vunpack.c.l.b16 %v1349
        %v1437 = vunpack.c.h.b16 %v1349
        %v1438 = vunpack.c.l.b16 %v1350
        %v1439 = vunpack.c.l.b16 %v1351
        %v1440 = vunpack.c.h.b16 %v1351
        %v1441 = vunpack.c.l.b16 %v1352
        %v1442 = vunpack.c.l.b16 %v1353
        %v1443 = vunpack.c.h.b16 %v1353
        %v1444 = vunpack.c.l.b16 %v1354
        %v1445 = vunpack.c.l.b16 %v1355
        %v1446 = vunpack.c.h.b16 %v1355
        %v1447 = vunpack.c.l.b16 %v1356
        %v1448 = vunpack.c.l.b16 %v1357
        %v1449 = vunpack.c.h.b16 %v1357
        %v1450 = vunpack.c.l.b16 %v1358
        %v1451 = vunpack.c.l.b16 %v1359
        %v1452 = vunpack.c.h.b16 %v1359
        %v1453 = vunpack.c.l.b16 %v1360
        %v1454 = vunpack.c.l.b16 %v1361
        %v1455 = vunpack.c.h.b16 %v1361
        %v1456 = vunpack.c.l.b16 %v1362
        %v1457 = vunpack.c.l.b16 %v1363
        %v1458 = vunpack.c.h.b16 %v1363
        %v1459 = vunpack.c.l.b16 %v1364
        %v1460 = vunpack.c.l.b16 %v1365
        %v1461 = vunpack.c.h.b16 %v1365
        %v1462 = vunpack.c.l.b16 %v1366
        %v1463 = vunpack.c.l.b16 %v1367
        %v1464 = vunpack.c.h.b16 %v1367
        %v1465 = vunpack.c.l.b16 %v1368
        %v1466 = vpack.c.b16 %v1421, %v1418
        %v1467 = vpack.c.b16 %v1422, %v1419
        %v1468 = vpack.c.b16 %v1423, %v1420
        %v1469 = vpack.c.b16 %v1427, %v1424
        %v1470 = vpack.c.b16 %v1428, %v1425
        %v1471 = vpack.c.b16 %v1429, %v1426
        %v1472 = vpack.c.b16 %v1433, %v1430
        %v1473 = vpack.c.b16 %v1434, %v1431
        %v1474 = vpack.c.b16 %v1435, %v1432
        %v1475 = vpack.c.b16 %v1439, %v1436
        %v1476 = vpack.c.b16 %v1440, %v1437
        %v1477 = vpack.c.b16 %v1441, %v1438
        %v1478 = vpack.c.b16 %v1445, %v1442
        %v1479 = vpack.c.b16 %v1446, %v1443
        %v1480 = vpack.c.b16 %v1447, %v1444
        %v1481 = vpack.c.b16 %v1451, %v1448
        %v1482 = vpack.c.b16 %v1452, %v1449
        %v1483 = vpack.c.b16 %v1453, %v1450
        %v1484 = vpack.c.b16 %v1457, %v1454
        %v1485 = vpack.c.b16 %v1458, %v1455
        %v1486 = vpack.c.b16 %v1459, %v1456
        %v1487 = vpack.c.b16 %v1463, %v1460
        %v1488 = vpack.c.b16 %v1464, %v1461
        %v1489 = vpack.c.b16 %v1465, %v1462
        %1514 = vmatprep.subr.bf16.mxu0 %v1467
        %1515 = vmatpush1.bf16.msra.mxu0 %v1466
        %1516 = vmatprep.subr.bf16.mxu0 %v1470
        %1517 = vmatpush1.bf16.msra.mxu0 %v1469
        %1518 = vmatprep.subr.bf16.mxu0 %v1473
        %1519 = vmatpush1.bf16.msra.mxu0 %v1472
        %1520 = vmatprep.subr.bf16.mxu0 %v1476
        %1521 = vmatpush1.bf16.msra.mxu0 %v1475
        %1522 = vmatprep.subr.bf16.mxu0 %v1479
        %1523 = vmatpush1.bf16.msra.mxu0 %v1478
        %1524 = vmatprep.subr.bf16.mxu0 %v1482
        %1525 = vmatpush1.bf16.msra.mxu0 %v1481
        %1526 = vmatprep.subr.bf16.mxu0 %v1485
        %1527 = vmatpush1.bf16.msra.mxu0 %v1484
        %1528 = vmatprep.subr.bf16.mxu0 %v1488
        %1529 = vmatpush1.bf16.msra.mxu0 %v1487
        %1530 = vmatprep.subr.bf16.mxu0 0
        %1531 = vmatpush1.bf16.msra.mxu0 0
        %1532 = vmatprep.subr.bf16.mxu0 0
        %1533 = vmatpush1.bf16.msra.mxu0 0
        %1534 = vmatprep.subr.bf16.mxu0 0
        %1535 = vmatpush1.bf16.msra.mxu0 0
        %1536 = vmatprep.subr.bf16.mxu0 0
        %1537 = vmatpush1.bf16.msra.mxu0 0
        %1538 = vmatprep.subr.bf16.mxu0 0
        %1539 = vmatpush1.bf16.msra.mxu0 0
        %1540 = vmatprep.subr.bf16.mxu0 0
        %1541 = vmatpush1.bf16.msra.mxu0 0
        %1542 = vmatprep.subr.bf16.mxu0 0
        %1543 = vmatpush1.bf16.msra.mxu0 0
        %1544 = vmatprep.subr.bf16.mxu0 0
        %1545 = vmatpush1.bf16.msra.mxu0 0
        %1546 = vmatprep.mubr.bf16.mxu0 0
        %1547 = vmatmul.mubr.bf16.gmra.mrb[0].mxu0 %v1305
        %v1548 = vpop.f32.mrb[0].mxu0
        %v1549 = vadd.f32 %v1374, %v1548
        %v1550 = vpop.f32.mrb[0].mxu0
        %v1551 = vadd.f32 %v1378, %v1550
        %v1552 = vpop.f32.mrb[0].mxu0
        %v1553 = vadd.f32 %v1374, %v1552
        %v1554 = vpop.f32.mrb[0].mxu0
        %v1555 = vadd.f32 %v1378, %v1554
        %1556 = vmatprep.mubr.bf16.mxu0 0
        %1557 = vmatmul.mubr.bf16.gmra.mrb[0].mxu0 %v1306
        %v1558 = vpop.f32.mrb[0].mxu0
        %v1559 = vadd.f32 %v1374, %v1558
        %v1560 = vpop.f32.mrb[0].mxu0
        %v1561 = vadd.f32 %v1378, %v1560
        %v1562 = vpop.f32.mrb[0].mxu0
        %v1563 = vadd.f32 %v1374, %v1562
        %v1564 = vpop.f32.mrb[0].mxu0
        %v1565 = vadd.f32 %v1378, %v1564
        %1566 = vmatprep.mubr.bf16.mxu0 0
        %1567 = vmatmul.mubr.bf16.gmra.mrb[0].mxu0 %v1307
        %v1568 = vpop.f32.mrb[0].mxu0
        %v1569 = vadd.f32 %v1374, %v1568
        %v1570 = vpop.f32.mrb[0].mxu0
        %v1571 = vadd.f32 %v1378, %v1570
        %v1572 = vpop.f32.mrb[0].mxu0
        %v1573 = vadd.f32 %v1374, %v1572
        %v1574 = vpop.f32.mrb[0].mxu0
        %v1575 = vadd.f32 %v1378, %v1574
        %1576 = vmatprep.mubr.bf16.mxu0 0
        %1577 = vmatmul.mubr.bf16.gmra.mrb[0].mxu0 %v1308
        %v1578 = vpop.f32.mrb[0].mxu0
        %v1579 = vadd.f32 %v1374, %v1578
        %v1580 = vpop.f32.mrb[0].mxu0
        %v1581 = vadd.f32 %v1378, %v1580
        %v1582 = vpop.f32.mrb[0].mxu0
        %v1583 = vadd.f32 %v1374, %v1582
        %v1584 = vpop.f32.mrb[0].mxu0
        %v1585 = vadd.f32 %v1378, %v1584
        %1586 = vmatprep.mubr.bf16.mxu0 0
        %1587 = vmatmul.mubr.bf16.gmra.mrb[0].mxu0 %v1309
        %v1588 = vpop.f32.mrb[0].mxu0
        %v1589 = vadd.f32 %v1374, %v1588
        %v1590 = vpop.f32.mrb[0].mxu0
        %v1591 = vadd.f32 %v1378, %v1590
        %v1592 = vpop.f32.mrb[0].mxu0
        %v1593 = vadd.f32 %v1374, %v1592
        %v1594 = vpop.f32.mrb[0].mxu0
        %v1595 = vadd.f32 %v1378, %v1594
        %1596 = vmatprep.mubr.bf16.mxu0 0
        %1597 = vmatmul.mubr.bf16.gmra.mrb[0].mxu0 %v1310
        %v1598 = vpop.f32.mrb[0].mxu0
        %v1599 = vadd.f32 %v1374, %v1598
        %v1600 = vpop.f32.mrb[0].mxu0
        %v1601 = vadd.f32 %v1378, %v1600
        %v1602 = vpop.f32.mrb[0].mxu0
        %v1603 = vadd.f32 %v1374, %v1602
        %v1604 = vpop.f32.mrb[0].mxu0
        %v1605 = vadd.f32 %v1378, %v1604
        %1606 = vmatprep.mubr.bf16.mxu0 0
        %1607 = vmatmul.mubr.bf16.gmra.mrb[0].mxu0 %v1311
        %v1608 = vpop.f32.mrb[0].mxu0
        %v1609 = vadd.f32 %v1374, %v1608
        %v1610 = vpop.f32.mrb[0].mxu0
        %v1611 = vadd.f32 %v1378, %v1610
        %v1612 = vpop.f32.mrb[0].mxu0
        %v1613 = vadd.f32 %v1374, %v1612
        %v1614 = vpop.f32.mrb[0].mxu0
        %v1615 = vadd.f32 %v1378, %v1614
        %1616 = vmatprep.mubr.bf16.mxu0 0
        %1617 = vmatmul.mubr.bf16.gmra.mrb[0].mxu0 %v1312
        %v1618 = vpop.f32.mrb[0].mxu0
        %v1619 = vadd.f32 %v1374, %v1618
        %v1620 = vpop.f32.mrb[0].mxu0
        %v1621 = vadd.f32 %v1378, %v1620
        %v1622 = vpop.f32.mrb[0].mxu0
        %v1623 = vadd.f32 %v1374, %v1622
        %v1624 = vpop.f32.mrb[0].mxu0
        %v1625 = vadd.f32 %v1378, %v1624
        %1626 = vmatprep.mubr.bf16.mxu0 0
        %1627 = vmatmul.mubr.bf16.gmra.mrb[0].mxu0 %v1313
        %v1628 = vpop.f32.mrb[0].mxu0
        %v1629 = vadd.f32 %v1374, %v1628
        %v1630 = vpop.f32.mrb[0].mxu0
        %v1631 = vadd.f32 %v1378, %v1630
        %v1632 = vpop.f32.mrb[0].mxu0
        %v1633 = vadd.f32 %v1374, %v1632
        %v1634 = vpop.f32.mrb[0].mxu0
        %v1635 = vadd.f32 %v1378, %v1634
        %1636 = vmatprep.mubr.bf16.mxu0 0
        %1637 = vmatmul.mubr.bf16.gmra.mrb[0].mxu0 %v1314
        %v1638 = vpop.f32.mrb[0].mxu0
        %v1639 = vadd.f32 %v1374, %v1638
        %v1640 = vpop.f32.mrb[0].mxu0
        %v1641 = vadd.f32 %v1378, %v1640
        %v1642 = vpop.f32.mrb[0].mxu0
        %v1643 = vadd.f32 %v1374, %v1642
        %v1644 = vpop.f32.mrb[0].mxu0
        %v1645 = vadd.f32 %v1378, %v1644
        %1646 = vmatprep.mubr.bf16.mxu0 0
        %1647 = vmatmul.mubr.bf16.gmra.mrb[0].mxu0 %v1315
        %v1648 = vpop.f32.mrb[0].mxu0
        %v1649 = vadd.f32 %v1374, %v1648
        %v1650 = vpop.f32.mrb[0].mxu0
        %v1651 = vadd.f32 %v1378, %v1650
        %v1652 = vpop.f32.mrb[0].mxu0
        %v1653 = vadd.f32 %v1374, %v1652
        %v1654 = vpop.f32.mrb[0].mxu0
        %v1655 = vadd.f32 %v1378, %v1654
        %1656 = vmatprep.mubr.bf16.mxu0 0
        %1657 = vmatmul.mubr.bf16.gmra.mrb[0].mxu0 %v1316
        %v1658 = vpop.f32.mrb[0].mxu0
        %v1659 = vadd.f32 %v1374, %v1658
        %v1660 = vpop.f32.mrb[0].mxu0
        %v1661 = vadd.f32 %v1378, %v1660
        %v1662 = vpop.f32.mrb[0].mxu0
        %v1663 = vadd.f32 %v1374, %v1662
        %v1664 = vpop.f32.mrb[0].mxu0
        %v1665 = vadd.f32 %v1378, %v1664
        %1666 = vmatprep.mubr.bf16.mxu0 0
        %1667 = vmatmul.mubr.bf16.gmra.mrb[0].mxu0 %v1317
        %v1668 = vpop.f32.mrb[0].mxu0
        %v1669 = vadd.f32 %v1374, %v1668
        %v1670 = vpop.f32.mrb[0].mxu0
        %v1671 = vadd.f32 %v1378, %v1670
        %v1672 = vpop.f32.mrb[0].mxu0
        %v1673 = vadd.f32 %v1374, %v1672
        %v1674 = vpop.f32.mrb[0].mxu0
        %v1675 = vadd.f32 %v1378, %v1674
        %1676 = vmatprep.mubr.bf16.mxu0 0
        %1677 = vmatmul.mubr.bf16.gmra.mrb[0].mxu0 %v1318
        %v1678 = vpop.f32.mrb[0].mxu0
        %v1679 = vadd.f32 %v1374, %v1678
        %v1680 = vpop.f32.mrb[0].mxu0
        %v1681 = vadd.f32 %v1378, %v1680
        %v1682 = vpop.f32.mrb[0].mxu0
        %v1683 = vadd.f32 %v1374, %v1682
        %v1684 = vpop.f32.mrb[0].mxu0
        %v1685 = vadd.f32 %v1378, %v1684
        %1686 = vmatprep.mubr.bf16.mxu0 0
        %1687 = vmatmul.mubr.bf16.gmra.mrb[0].mxu0 %v1319
        %v1688 = vpop.f32.mrb[0].mxu0
        %v1689 = vadd.f32 %v1374, %v1688
        %v1690 = vpop.f32.mrb[0].mxu0
        %v1691 = vadd.f32 %v1378, %v1690
        %v1692 = vpop.f32.mrb[0].mxu0
        %v1693 = vadd.f32 %v1374, %v1692
        %v1694 = vpop.f32.mrb[0].mxu0
        %v1695 = vadd.f32 %v1378, %v1694
        %1696 = vmatprep.mubr.bf16.mxu0 0
        %1697 = vmatmul.mubr.bf16.gmra.mrb[0].mxu0 %v1320
        %v1698 = vpop.f32.mrb[0].mxu0
        %v1699 = vadd.f32 %v1374, %v1698
        %v1700 = vpop.f32.mrb[0].mxu0
        %v1701 = vadd.f32 %v1378, %v1700
        %v1702 = vpop.f32.mrb[0].mxu0
        %v1703 = vadd.f32 %v1374, %v1702
        %v1704 = vpop.f32.mrb[0].mxu0
        %v1705 = vadd.f32 %v1378, %v1704
        %1706 = vmatprep.mubr.bf16.mxu0 0
        %1707 = vmatmul.mubr.bf16.gmra.mrb[0].mxu0 %v1321
        %v1708 = vpop.f32.mrb[0].mxu0
        %v1709 = vadd.f32 %v1374, %v1708
        %v1710 = vpop.f32.mrb[0].mxu0
        %v1711 = vadd.f32 %v1378, %v1710
        %v1712 = vpop.f32.mrb[0].mxu0
        %v1713 = vadd.f32 %v1374, %v1712
        %v1714 = vpop.f32.mrb[0].mxu0
        %v1715 = vadd.f32 %v1378, %v1714
        %1716 = vmatprep.mubr.bf16.mxu0 0
        %1717 = vmatmul.mubr.bf16.gmra.mrb[0].mxu0 %v1322
        %v1718 = vpop.f32.mrb[0].mxu0
        %v1719 = vadd.f32 %v1374, %v1718
        %v1720 = vpop.f32.mrb[0].mxu0
        %v1721 = vadd.f32 %v1378, %v1720
        %v1722 = vpop.f32.mrb[0].mxu0
        %v1723 = vadd.f32 %v1374, %v1722
        %v1724 = vpop.f32.mrb[0].mxu0
        %v1725 = vadd.f32 %v1378, %v1724
        %1726 = vmatprep.mubr.bf16.mxu0 0
        %1727 = vmatmul.mubr.bf16.gmra.mrb[0].mxu0 %v1323
        %v1728 = vpop.f32.mrb[0].mxu0
        %v1729 = vadd.f32 %v1374, %v1728
        %v1730 = vpop.f32.mrb[0].mxu0
        %v1731 = vadd.f32 %v1378, %v1730
        %v1732 = vpop.f32.mrb[0].mxu0
        %v1733 = vadd.f32 %v1374, %v1732
        %v1734 = vpop.f32.mrb[0].mxu0
        %v1735 = vadd.f32 %v1378, %v1734
        %1736 = vmatprep.mubr.bf16.mxu0 0
        %1737 = vmatmul.mubr.bf16.gmra.mrb[0].mxu0 %v1324
        %v1738 = vpop.f32.mrb[0].mxu0
        %v1739 = vadd.f32 %v1374, %v1738
        %v1740 = vpop.f32.mrb[0].mxu0
        %v1741 = vadd.f32 %v1378, %v1740
        %v1742 = vpop.f32.mrb[0].mxu0
        %v1743 = vadd.f32 %v1374, %v1742
        %v1744 = vpop.f32.mrb[0].mxu0
        %v1745 = vadd.f32 %v1378, %v1744
        %1746 = vmatprep.mubr.bf16.mxu0 0
        %1747 = vmatmul.mubr.bf16.gmra.mrb[0].mxu0 %v1325
        %v1748 = vpop.f32.mrb[0].mxu0
        %v1749 = vadd.f32 %v1374, %v1748
        %v1750 = vpop.f32.mrb[0].mxu0
        %v1751 = vadd.f32 %v1378, %v1750
        %v1752 = vpop.f32.mrb[0].mxu0
        %v1753 = vadd.f32 %v1374, %v1752
        %v1754 = vpop.f32.mrb[0].mxu0
        %v1755 = vadd.f32 %v1378, %v1754
        %1756 = vmatprep.mubr.bf16.mxu0 0
        %1757 = vmatmul.mubr.bf16.gmra.mrb[0].mxu0 %v1326
        %v1758 = vpop.f32.mrb[0].mxu0
        %v1759 = vadd.f32 %v1374, %v1758
        %v1760 = vpop.f32.mrb[0].mxu0
        %v1761 = vadd.f32 %v1378, %v1760
        %v1762 = vpop.f32.mrb[0].mxu0
        %v1763 = vadd.f32 %v1374, %v1762
        %v1764 = vpop.f32.mrb[0].mxu0
        %v1765 = vadd.f32 %v1378, %v1764
        %1766 = vmatprep.mubr.bf16.mxu0 0
        %1767 = vmatmul.mubr.bf16.gmra.mrb[0].mxu0 %v1327
        %v1768 = vpop.f32.mrb[0].mxu0
        %v1769 = vadd.f32 %v1374, %v1768
        %v1770 = vpop.f32.mrb[0].mxu0
        %v1771 = vadd.f32 %v1378, %v1770
        %v1772 = vpop.f32.mrb[0].mxu0
        %v1773 = vadd.f32 %v1374, %v1772
        %v1774 = vpop.f32.mrb[0].mxu0
        %v1775 = vadd.f32 %v1378, %v1774
        %1776 = vmatprep.mubr.bf16.mxu0 0
        %1777 = vmatmul.mubr.bf16.gmra.mrb[0].mxu0 %v1328
        %v1778 = vpop.f32.mrb[0].mxu0
        %v1779 = vadd.f32 %v1374, %v1778
        %v1780 = vpop.f32.mrb[0].mxu0
        %v1781 = vadd.f32 %v1378, %v1780
        %v1782 = vpop.f32.mrb[0].mxu0
        %v1783 = vadd.f32 %v1374, %v1782
        %v1784 = vpop.f32.mrb[0].mxu0
        %v1785 = vadd.f32 %v1378, %v1784
        %1786 = vmatprep.mubr.bf16.mxu0 0
        %1787 = vmatmul.mubr.bf16.gmra.mrb[0].mxu0 %v1329
        %v1788 = vpop.f32.mrb[0].mxu0
        %v1789 = vadd.f32 %v1374, %v1788
        %v1790 = vpop.f32.mrb[0].mxu0
        %v1791 = vadd.f32 %v1378, %v1790
        %v1792 = vpop.f32.mrb[0].mxu0
        %v1793 = vadd.f32 %v1374, %v1792
        %v1794 = vpop.f32.mrb[0].mxu0
        %v1795 = vadd.f32 %v1378, %v1794
        %1796 = vmatprep.mubr.bf16.mxu0 0
        %1797 = vmatmul.mubr.bf16.gmra.mrb[0].mxu0 %v1330
        %v1798 = vpop.f32.mrb[0].mxu0
        %v1799 = vadd.f32 %v1374, %v1798
        %v1800 = vpop.f32.mrb[0].mxu0
        %v1801 = vadd.f32 %v1378, %v1800
        %v1802 = vpop.f32.mrb[0].mxu0
        %v1803 = vadd.f32 %v1374, %v1802
        %v1804 = vpop.f32.mrb[0].mxu0
        %v1805 = vadd.f32 %v1378, %v1804
        %1806 = vmatprep.mubr.bf16.mxu0 0
        %1807 = vmatmul.mubr.bf16.gmra.mrb[0].mxu0 %v1331
        %v1808 = vpop.f32.mrb[0].mxu0
        %v1809 = vadd.f32 %v1374, %v1808
        %v1810 = vpop.f32.mrb[0].mxu0
        %v1811 = vadd.f32 %v1378, %v1810
        %v1812 = vpop.f32.mrb[0].mxu0
        %v1813 = vadd.f32 %v1374, %v1812
        %v1814 = vpop.f32.mrb[0].mxu0
        %v1815 = vadd.f32 %v1378, %v1814
        %1816 = vmatprep.mubr.bf16.mxu0 0
        %1817 = vmatmul.mubr.bf16.gmra.mrb[0].mxu0 %v1332
        %v1818 = vpop.f32.mrb[0].mxu0
        %v1819 = vadd.f32 %v1374, %v1818
        %v1820 = vpop.f32.mrb[0].mxu0
        %v1821 = vadd.f32 %v1378, %v1820
        %v1822 = vpop.f32.mrb[0].mxu0
        %v1823 = vadd.f32 %v1374, %v1822
        %v1824 = vpop.f32.mrb[0].mxu0
        %v1825 = vadd.f32 %v1378, %v1824
        %1826 = vmatprep.mubr.bf16.mxu0 0
        %1827 = vmatmul.mubr.bf16.gmra.mrb[0].mxu0 %v1333
        %v1828 = vpop.f32.mrb[0].mxu0
        %v1829 = vadd.f32 %v1374, %v1828
        %v1830 = vpop.f32.mrb[0].mxu0
        %v1831 = vadd.f32 %v1378, %v1830
        %v1832 = vpop.f32.mrb[0].mxu0
        %v1833 = vadd.f32 %v1374, %v1832
        %v1834 = vpop.f32.mrb[0].mxu0
        %v1835 = vadd.f32 %v1378, %v1834
        %1836 = vmatprep.mubr.bf16.mxu0 0
        %1837 = vmatmul.mubr.bf16.gmra.mrb[0].mxu0 %v1334
        %v1838 = vpop.f32.mrb[0].mxu0
        %v1839 = vadd.f32 %v1374, %v1838
        %v1840 = vpop.f32.mrb[0].mxu0
        %v1841 = vadd.f32 %v1378, %v1840
        %v1842 = vpop.f32.mrb[0].mxu0
        %v1843 = vadd.f32 %v1374, %v1842
        %v1844 = vpop.f32.mrb[0].mxu0
        %v1845 = vadd.f32 %v1378, %v1844
        %1846 = vmatprep.mubr.bf16.mxu0 0
        %1847 = vmatmul.mubr.bf16.gmra.mrb[0].mxu0 %v1335
        %v1848 = vpop.f32.mrb[0].mxu0
        %v1849 = vadd.f32 %v1374, %v1848
        %v1850 = vpop.f32.mrb[0].mxu0
        %v1851 = vadd.f32 %v1378, %v1850
        %v1852 = vpop.f32.mrb[0].mxu0
        %v1853 = vadd.f32 %v1374, %v1852
        %v1854 = vpop.f32.mrb[0].mxu0
        %v1855 = vadd.f32 %v1378, %v1854
        %1856 = vmatprep.mubr.bf16.mxu0 0
        %1857 = vmatmul.mubr.bf16.gmra.mrb[0].mxu0 %v1336
        %v1858 = vpop.f32.mrb[0].mxu0
        %v1859 = vadd.f32 %v1374, %v1858
        %v1860 = vpop.f32.mrb[0].mxu0
        %v1861 = vadd.f32 %v1378, %v1860
        %v1862 = vpop.f32.mrb[0].mxu0
        %v1863 = vadd.f32 %v1374, %v1862
        %v1864 = vpop.f32.mrb[0].mxu0
        %v1865 = vadd.f32 %v1378, %v1864
        %1866 = vdwg.mxu0
        %1867 = vmatprep.subr.bf16.mxu0 0
        %1868 = vmatpush1.bf16.msra.mxu0 %v1468
        %1869 = vmatprep.subr.bf16.mxu0 0
        %1870 = vmatpush1.bf16.msra.mxu0 %v1471
        %1871 = vmatprep.subr.bf16.mxu0 0
        %1872 = vmatpush1.bf16.msra.mxu0 %v1474
        %1873 = vmatprep.subr.bf16.mxu0 0
        %1874 = vmatpush1.bf16.msra.mxu0 %v1477
        %1875 = vmatprep.subr.bf16.mxu0 0
        %1876 = vmatpush1.bf16.msra.mxu0 %v1480
        %1877 = vmatprep.subr.bf16.mxu0 0
        %1878 = vmatpush1.bf16.msra.mxu0 %v1483
        %1879 = vmatprep.subr.bf16.mxu0 0
        %1880 = vmatpush1.bf16.msra.mxu0 %v1486
        %1881 = vmatprep.subr.bf16.mxu0 0
        %1882 = vmatpush1.bf16.msra.mxu0 %v1489
        %1883 = vmatprep.subr.bf16.mxu0 0
        %1884 = vmatpush1.bf16.msra.mxu0 0
        %1885 = vmatprep.subr.bf16.mxu0 0
        %1886 = vmatpush1.bf16.msra.mxu0 0
        %1887 = vmatprep.subr.bf16.mxu0 0
        %1888 = vmatpush1.bf16.msra.mxu0 0
        %1889 = vmatprep.subr.bf16.mxu0 0
        %1890 = vmatpush1.bf16.msra.mxu0 0
        %1891 = vmatprep.subr.bf16.mxu0 0
        %1892 = vmatpush1.bf16.msra.mxu0 0
        %1893 = vmatprep.subr.bf16.mxu0 0
        %1894 = vmatpush1.bf16.msra.mxu0 0
        %1895 = vmatprep.subr.bf16.mxu0 0
        %1896 = vmatpush1.bf16.msra.mxu0 0
        %1897 = vmatprep.subr.bf16.mxu0 0
        %1898 = vmatpush1.bf16.msra.mxu0 0
        %1899 = vmatprep.mubr.bf16.mxu0 0
        %1900 = vmatmul.mubr.bf16.gmra.mrb[0].mxu0 %v1305
        %v1901 = vpop.f32.mrb[0].mxu0
        %v1902 = vadd.f32 %v1382, %v1901
        %v1903 = vpop.f32.mrb[0].mxu0
        %v1904 = vpop.f32.mrb[0].mxu0
        %v1905 = vadd.f32 %v1382, %v1904
        %v1906 = vpop.f32.mrb[0].mxu0
        %1907 = vmatprep.mubr.bf16.mxu0 0
        %1908 = vmatmul.mubr.bf16.gmra.mrb[0].mxu0 %v1306
        %v1909 = vpop.f32.mrb[0].mxu0
        %v1910 = vadd.f32 %v1382, %v1909
        %v1911 = vpop.f32.mrb[0].mxu0
        %v1912 = vpop.f32.mrb[0].mxu0
        %v1913 = vadd.f32 %v1382, %v1912
        %v1914 = vpop.f32.mrb[0].mxu0
        %1915 = vmatprep.mubr.bf16.mxu0 0
        %1916 = vmatmul.mubr.bf16.gmra.mrb[0].mxu0 %v1307
        %v1917 = vpop.f32.mrb[0].mxu0
        %v1918 = vadd.f32 %v1382, %v1917
        %v1919 = vpop.f32.mrb[0].mxu0
        %v1920 = vpop.f32.mrb[0].mxu0
        %v1921 = vadd.f32 %v1382, %v1920
        %v1922 = vpop.f32.mrb[0].mxu0
        %1923 = vmatprep.mubr.bf16.mxu0 0
        %1924 = vmatmul.mubr.bf16.gmra.mrb[0].mxu0 %v1308
        %v1925 = vpop.f32.mrb[0].mxu0
        %v1926 = vadd.f32 %v1382, %v1925
        %v1927 = vpop.f32.mrb[0].mxu0
        %v1928 = vpop.f32.mrb[0].mxu0
        %v1929 = vadd.f32 %v1382, %v1928
        %v1930 = vpop.f32.mrb[0].mxu0
        %1931 = vmatprep.mubr.bf16.mxu0 0
        %1932 = vmatmul.mubr.bf16.gmra.mrb[0].mxu0 %v1309
        %v1933 = vpop.f32.mrb[0].mxu0
        %v1934 = vadd.f32 %v1382, %v1933
        %v1935 = vpop.f32.mrb[0].mxu0
        %v1936 = vpop.f32.mrb[0].mxu0
        %v1937 = vadd.f32 %v1382, %v1936
        %v1938 = vpop.f32.mrb[0].mxu0
        %1939 = vmatprep.mubr.bf16.mxu0 0
        %1940 = vmatmul.mubr.bf16.gmra.mrb[0].mxu0 %v1310
        %v1941 = vpop.f32.mrb[0].mxu0
        %v1942 = vadd.f32 %v1382, %v1941
        %v1943 = vpop.f32.mrb[0].mxu0
        %v1944 = vpop.f32.mrb[0].mxu0
        %v1945 = vadd.f32 %v1382, %v1944
        %v1946 = vpop.f32.mrb[0].mxu0
        %1947 = vmatprep.mubr.bf16.mxu0 0
        %1948 = vmatmul.mubr.bf16.gmra.mrb[0].mxu0 %v1311
        %v1949 = vpop.f32.mrb[0].mxu0
        %v1950 = vadd.f32 %v1382, %v1949
        %v1951 = vpop.f32.mrb[0].mxu0
        %v1952 = vpop.f32.mrb[0].mxu0
        %v1953 = vadd.f32 %v1382, %v1952
        %v1954 = vpop.f32.mrb[0].mxu0
        %1955 = vmatprep.mubr.bf16.mxu0 0
        %1956 = vmatmul.mubr.bf16.gmra.mrb[0].mxu0 %v1312
        %v1957 = vpop.f32.mrb[0].mxu0
        %v1958 = vadd.f32 %v1382, %v1957
        %v1959 = vpop.f32.mrb[0].mxu0
        %v1960 = vpop.f32.mrb[0].mxu0
        %v1961 = vadd.f32 %v1382, %v1960
        %v1962 = vpop.f32.mrb[0].mxu0
        %1963 = vmatprep.mubr.bf16.mxu0 0
        %1964 = vmatmul.mubr.bf16.gmra.mrb[0].mxu0 %v1313
        %v1965 = vpop.f32.mrb[0].mxu0
        %v1966 = vadd.f32 %v1382, %v1965
        %v1967 = vpop.f32.mrb[0].mxu0
        %v1968 = vpop.f32.mrb[0].mxu0
        %v1969 = vadd.f32 %v1382, %v1968
        %v1970 = vpop.f32.mrb[0].mxu0
        %1971 = vmatprep.mubr.bf16.mxu0 0
        %1972 = vmatmul.mubr.bf16.gmra.mrb[0].mxu0 %v1314
        %v1973 = vpop.f32.mrb[0].mxu0
        %v1974 = vadd.f32 %v1382, %v1973
        %v1975 = vpop.f32.mrb[0].mxu0
        %v1976 = vpop.f32.mrb[0].mxu0
        %v1977 = vadd.f32 %v1382, %v1976
        %v1978 = vpop.f32.mrb[0].mxu0
        %1979 = vmatprep.mubr.bf16.mxu0 0
        %1980 = vmatmul.mubr.bf16.gmra.mrb[0].mxu0 %v1315
        %v1981 = vpop.f32.mrb[0].mxu0
        %v1982 = vadd.f32 %v1382, %v1981
        %v1983 = vpop.f32.mrb[0].mxu0
        %v1984 = vpop.f32.mrb[0].mxu0
        %v1985 = vadd.f32 %v1382, %v1984
        %v1986 = vpop.f32.mrb[0].mxu0
        %1987 = vmatprep.mubr.bf16.mxu0 0
        %1988 = vmatmul.mubr.bf16.gmra.mrb[0].mxu0 %v1316
        %v1989 = vpop.f32.mrb[0].mxu0
        %v1990 = vadd.f32 %v1382, %v1989
        %v1991 = vpop.f32.mrb[0].mxu0
        %v1992 = vpop.f32.mrb[0].mxu0
        %v1993 = vadd.f32 %v1382, %v1992
        %v1994 = vpop.f32.mrb[0].mxu0
        %1995 = vmatprep.mubr.bf16.mxu0 0
        %1996 = vmatmul.mubr.bf16.gmra.mrb[0].mxu0 %v1317
        %v1997 = vpop.f32.mrb[0].mxu0
        %v1998 = vadd.f32 %v1382, %v1997
        %v1999 = vpop.f32.mrb[0].mxu0
        %v2000 = vpop.f32.mrb[0].mxu0
        %v2001 = vadd.f32 %v1382, %v2000
        %v2002 = vpop.f32.mrb[0].mxu0
        %2003 = vmatprep.mubr.bf16.mxu0 0
        %2004 = vmatmul.mubr.bf16.gmra.mrb[0].mxu0 %v1318
        %v2005 = vpop.f32.mrb[0].mxu0
        %v2006 = vadd.f32 %v1382, %v2005
        %v2007 = vpop.f32.mrb[0].mxu0
        %v2008 = vpop.f32.mrb[0].mxu0
        %v2009 = vadd.f32 %v1382, %v2008
        %v2010 = vpop.f32.mrb[0].mxu0
        %2011 = vmatprep.mubr.bf16.mxu0 0
        %2012 = vmatmul.mubr.bf16.gmra.mrb[0].mxu0 %v1319
        %v2013 = vpop.f32.mrb[0].mxu0
        %v2014 = vadd.f32 %v1382, %v2013
        %v2015 = vpop.f32.mrb[0].mxu0
        %v2016 = vpop.f32.mrb[0].mxu0
        %v2017 = vadd.f32 %v1382, %v2016
        %v2018 = vpop.f32.mrb[0].mxu0
        %2019 = vmatprep.mubr.bf16.mxu0 0
        %2020 = vmatmul.mubr.bf16.gmra.mrb[0].mxu0 %v1320
        %v2021 = vpop.f32.mrb[0].mxu0
        %v2022 = vadd.f32 %v1382, %v2021
        %v2023 = vpop.f32.mrb[0].mxu0
        %v2024 = vpop.f32.mrb[0].mxu0
        %v2025 = vadd.f32 %v1382, %v2024
        %v2026 = vpop.f32.mrb[0].mxu0
        %2027 = vmatprep.mubr.bf16.mxu0 0
        %2028 = vmatmul.mubr.bf16.gmra.mrb[0].mxu0 %v1321
        %v2029 = vpop.f32.mrb[0].mxu0
        %v2030 = vadd.f32 %v1382, %v2029
        %v2031 = vpop.f32.mrb[0].mxu0
        %v2032 = vpop.f32.mrb[0].mxu0
        %v2033 = vadd.f32 %v1382, %v2032
        %v2034 = vpop.f32.mrb[0].mxu0
        %2035 = vmatprep.mubr.bf16.mxu0 0
        %2036 = vmatmul.mubr.bf16.gmra.mrb[0].mxu0 %v1322
        %v2037 = vpop.f32.mrb[0].mxu0
        %v2038 = vadd.f32 %v1382, %v2037
        %v2039 = vpop.f32.mrb[0].mxu0
        %v2040 = vpop.f32.mrb[0].mxu0
        %v2041 = vadd.f32 %v1382, %v2040
        %v2042 = vpop.f32.mrb[0].mxu0
        %2043 = vmatprep.mubr.bf16.mxu0 0
        %2044 = vmatmul.mubr.bf16.gmra.mrb[0].mxu0 %v1323
        %v2045 = vpop.f32.mrb[0].mxu0
        %v2046 = vadd.f32 %v1382, %v2045
        %v2047 = vpop.f32.mrb[0].mxu0
        %v2048 = vpop.f32.mrb[0].mxu0
        %v2049 = vadd.f32 %v1382, %v2048
        %v2050 = vpop.f32.mrb[0].mxu0
        %2051 = vmatprep.mubr.bf16.mxu0 0
        %2052 = vmatmul.mubr.bf16.gmra.mrb[0].mxu0 %v1324
        %v2053 = vpop.f32.mrb[0].mxu0
        %v2054 = vadd.f32 %v1382, %v2053
        %v2055 = vpop.f32.mrb[0].mxu0
        %v2056 = vpop.f32.mrb[0].mxu0
        %v2057 = vadd.f32 %v1382, %v2056
        %v2058 = vpop.f32.mrb[0].mxu0
        %2059 = vmatprep.mubr.bf16.mxu0 0
        %2060 = vmatmul.mubr.bf16.gmra.mrb[0].mxu0 %v1325
        %v2061 = vpop.f32.mrb[0].mxu0
        %v2062 = vadd.f32 %v1382, %v2061
        %v2063 = vpop.f32.mrb[0].mxu0
        %v2064 = vpop.f32.mrb[0].mxu0
        %v2065 = vadd.f32 %v1382, %v2064
        %v2066 = vpop.f32.mrb[0].mxu0
        %2067 = vmatprep.mubr.bf16.mxu0 0
        %2068 = vmatmul.mubr.bf16.gmra.mrb[0].mxu0 %v1326
        %v2069 = vpop.f32.mrb[0].mxu0
        %v2070 = vadd.f32 %v1382, %v2069
        %v2071 = vpop.f32.mrb[0].mxu0
        %v2072 = vpop.f32.mrb[0].mxu0
        %v2073 = vadd.f32 %v1382, %v2072
        %v2074 = vpop.f32.mrb[0].mxu0
        %2075 = vmatprep.mubr.bf16.mxu0 0
        %2076 = vmatmul.mubr.bf16.gmra.mrb[0].mxu0 %v1327
        %v2077 = vpop.f32.mrb[0].mxu0
        %v2078 = vadd.f32 %v1382, %v2077
        %v2079 = vpop.f32.mrb[0].mxu0
        %v2080 = vpop.f32.mrb[0].mxu0
        %v2081 = vadd.f32 %v1382, %v2080
        %v2082 = vpop.f32.mrb[0].mxu0
        %2083 = vmatprep.mubr.bf16.mxu0 0
        %2084 = vmatmul.mubr.bf16.gmra.mrb[0].mxu0 %v1328
        %v2085 = vpop.f32.mrb[0].mxu0
        %v2086 = vadd.f32 %v1382, %v2085
        %v2087 = vpop.f32.mrb[0].mxu0
        %v2088 = vpop.f32.mrb[0].mxu0
        %v2089 = vadd.f32 %v1382, %v2088
        %v2090 = vpop.f32.mrb[0].mxu0
        %2091 = vmatprep.mubr.bf16.mxu0 0
        %2092 = vmatmul.mubr.bf16.gmra.mrb[0].mxu0 %v1329
        %v2093 = vpop.f32.mrb[0].mxu0
        %v2094 = vadd.f32 %v1382, %v2093
        %v2095 = vpop.f32.mrb[0].mxu0
        %v2096 = vpop.f32.mrb[0].mxu0
        %v2097 = vadd.f32 %v1382, %v2096
        %v2098 = vpop.f32.mrb[0].mxu0
        %2099 = vmatprep.mubr.bf16.mxu0 0
        %2100 = vmatmul.mubr.bf16.gmra.mrb[0].mxu0 %v1330
        %v2101 = vpop.f32.mrb[0].mxu0
        %v2102 = vadd.f32 %v1382, %v2101
        %v2103 = vpop.f32.mrb[0].mxu0
        %v2104 = vpop.f32.mrb[0].mxu0
        %v2105 = vadd.f32 %v1382, %v2104
        %v2106 = vpop.f32.mrb[0].mxu0
        %2107 = vmatprep.mubr.bf16.mxu0 0
        %2108 = vmatmul.mubr.bf16.gmra.mrb[0].mxu0 %v1331
        %v2109 = vpop.f32.mrb[0].mxu0
        %v2110 = vadd.f32 %v1382, %v2109
        %v2111 = vpop.f32.mrb[0].mxu0
        %v2112 = vpop.f32.mrb[0].mxu0
        %v2113 = vadd.f32 %v1382, %v2112
        %v2114 = vpop.f32.mrb[0].mxu0
        %2115 = vmatprep.mubr.bf16.mxu0 0
        %2116 = vmatmul.mubr.bf16.gmra.mrb[0].mxu0 %v1332
        %v2117 = vpop.f32.mrb[0].mxu0
        %v2118 = vadd.f32 %v1382, %v2117
        %v2119 = vpop.f32.mrb[0].mxu0
        %v2120 = vpop.f32.mrb[0].mxu0
        %v2121 = vadd.f32 %v1382, %v2120
        %v2122 = vpop.f32.mrb[0].mxu0
        %2123 = vmatprep.mubr.bf16.mxu0 0
        %2124 = vmatmul.mubr.bf16.gmra.mrb[0].mxu0 %v1333
        %v2125 = vpop.f32.mrb[0].mxu0
        %v2126 = vadd.f32 %v1382, %v2125
        %v2127 = vpop.f32.mrb[0].mxu0
        %v2128 = vpop.f32.mrb[0].mxu0
        %v2129 = vadd.f32 %v1382, %v2128
        %v2130 = vpop.f32.mrb[0].mxu0
        %2131 = vmatprep.mubr.bf16.mxu0 0
        %2132 = vmatmul.mubr.bf16.gmra.mrb[0].mxu0 %v1334
        %v2133 = vpop.f32.mrb[0].mxu0
        %v2134 = vadd.f32 %v1382, %v2133
        %v2135 = vpop.f32.mrb[0].mxu0
        %v2136 = vpop.f32.mrb[0].mxu0
        %v2137 = vadd.f32 %v1382, %v2136
        %v2138 = vpop.f32.mrb[0].mxu0
        %2139 = vmatprep.mubr.bf16.mxu0 0
        %2140 = vmatmul.mubr.bf16.gmra.mrb[0].mxu0 %v1335
        %v2141 = vpop.f32.mrb[0].mxu0
        %v2142 = vadd.f32 %v1382, %v2141
        %v2143 = vpop.f32.mrb[0].mxu0
        %v2144 = vpop.f32.mrb[0].mxu0
        %v2145 = vadd.f32 %v1382, %v2144
        %v2146 = vpop.f32.mrb[0].mxu0
        %2147 = vmatprep.mubr.bf16.mxu0 0
        %2148 = vmatmul.mubr.bf16.gmra.mrb[0].mxu0 %v1336
        %v2149 = vpop.f32.mrb[0].mxu0
        %v2150 = vadd.f32 %v1382, %v2149
        %v2151 = vpop.f32.mrb[0].mxu0
        %v2152 = vpop.f32.mrb[0].mxu0
        %v2153 = vadd.f32 %v1382, %v2152
        %v2154 = vpop.f32.mrb[0].mxu0
        %2155 = vdwg.mxu0
        %v2156 = vmul.f32 %v1549, 0.17677669
        %v2157 = vmul.f32 %v1553, 0.17677669
        %v2158 = vmul.f32 %v1559, 0.17677669
        %v2159 = vmul.f32 %v1563, 0.17677669
        %v2160 = vmul.f32 %v1569, 0.17677669
        %v2161 = vmul.f32 %v1573, 0.17677669
        %v2162 = vmul.f32 %v1579, 0.17677669
        %v2163 = vmul.f32 %v1583, 0.17677669
        %v2164 = vmul.f32 %v1589, 0.17677669
        %v2165 = vmul.f32 %v1593, 0.17677669
        %v2166 = vmul.f32 %v1599, 0.17677669
        %v2167 = vmul.f32 %v1603, 0.17677669
        %v2168 = vmul.f32 %v1609, 0.17677669
        %v2169 = vmul.f32 %v1613, 0.17677669
        %v2170 = vmul.f32 %v1619, 0.17677669
        %v2171 = vmul.f32 %v1623, 0.17677669
        %v2172 = vmul.f32 %v1629, 0.17677669
        %v2173 = vmul.f32 %v1633, 0.17677669
        %v2174 = vmul.f32 %v1639, 0.17677669
        %v2175 = vmul.f32 %v1643, 0.17677669
        %v2176 = vmul.f32 %v1649, 0.17677669
        %v2177 = vmul.f32 %v1653, 0.17677669
        %v2178 = vmul.f32 %v1659, 0.17677669
        %v2179 = vmul.f32 %v1663, 0.17677669
        %v2180 = vmul.f32 %v1669, 0.17677669
        %v2181 = vmul.f32 %v1673, 0.17677669
        %v2182 = vmul.f32 %v1679, 0.17677669
        %v2183 = vmul.f32 %v1683, 0.17677669
        %v2184 = vmul.f32 %v1689, 0.17677669
        %v2185 = vmul.f32 %v1693, 0.17677669
        %v2186 = vmul.f32 %v1699, 0.17677669
        %v2187 = vmul.f32 %v1703, 0.17677669
        %v2188 = vmul.f32 %v1709, 0.17677669
        %v2189 = vmul.f32 %v1713, 0.17677669
        %v2190 = vmul.f32 %v1719, 0.17677669
        %v2191 = vmul.f32 %v1723, 0.17677669
        %v2192 = vmul.f32 %v1729, 0.17677669
        %v2193 = vmul.f32 %v1733, 0.17677669
        %v2194 = vmul.f32 %v1739, 0.17677669
        %v2195 = vmul.f32 %v1743, 0.17677669
        %v2196 = vmul.f32 %v1749, 0.17677669
        %v2197 = vmul.f32 %v1753, 0.17677669
        %v2198 = vmul.f32 %v1759, 0.17677669
        %v2199 = vmul.f32 %v1763, 0.17677669
        %v2200 = vmul.f32 %v1769, 0.17677669
        %v2201 = vmul.f32 %v1773, 0.17677669
        %v2202 = vmul.f32 %v1779, 0.17677669
        %v2203 = vmul.f32 %v1783, 0.17677669
        %v2204 = vmul.f32 %v1789, 0.17677669
        %v2205 = vmul.f32 %v1793, 0.17677669
        %v2206 = vmul.f32 %v1799, 0.17677669
        %v2207 = vmul.f32 %v1803, 0.17677669
        %v2208 = vmul.f32 %v1809, 0.17677669
        %v2209 = vmul.f32 %v1813, 0.17677669
        %v2210 = vmul.f32 %v1819, 0.17677669
        %v2211 = vmul.f32 %v1823, 0.17677669
        %v2212 = vmul.f32 %v1829, 0.17677669
        %v2213 = vmul.f32 %v1833, 0.17677669
        %v2214 = vmul.f32 %v1839, 0.17677669
        %v2215 = vmul.f32 %v1843, 0.17677669
        %v2216 = vmul.f32 %v1849, 0.17677669
        %v2217 = vmul.f32 %v1853, 0.17677669
        %v2218 = vmul.f32 %v1859, 0.17677669
        %v2219 = vmul.f32 %v1863, 0.17677669
        %v2220 = vpack.c.bf16 %v2157, %v2156
        %v2221 = vpack.c.bf16 %v2159, %v2158
        %v2222 = vpack.c.bf16 %v2161, %v2160
        %v2223 = vpack.c.bf16 %v2163, %v2162
        %v2224 = vpack.c.bf16 %v2165, %v2164
        %v2225 = vpack.c.bf16 %v2167, %v2166
        %v2226 = vpack.c.bf16 %v2169, %v2168
        %v2227 = vpack.c.bf16 %v2171, %v2170
        %v2228 = vpack.c.bf16 %v2173, %v2172
        %v2229 = vpack.c.bf16 %v2175, %v2174
        %v2230 = vpack.c.bf16 %v2177, %v2176
        %v2231 = vpack.c.bf16 %v2179, %v2178
        %v2232 = vpack.c.bf16 %v2181, %v2180
        %v2233 = vpack.c.bf16 %v2183, %v2182
        %v2234 = vpack.c.bf16 %v2185, %v2184
        %v2235 = vpack.c.bf16 %v2187, %v2186
        %v2236 = vpack.c.bf16 %v2189, %v2188
        %v2237 = vpack.c.bf16 %v2191, %v2190
        %v2238 = vpack.c.bf16 %v2193, %v2192
        %v2239 = vpack.c.bf16 %v2195, %v2194
        %v2240 = vpack.c.bf16 %v2197, %v2196
        %v2241 = vpack.c.bf16 %v2199, %v2198
        %v2242 = vpack.c.bf16 %v2201, %v2200
        %v2243 = vpack.c.bf16 %v2203, %v2202
        %v2244 = vpack.c.bf16 %v2205, %v2204
        %v2245 = vpack.c.bf16 %v2207, %v2206
        %v2246 = vpack.c.bf16 %v2209, %v2208
        %v2247 = vpack.c.bf16 %v2211, %v2210
        %v2248 = vpack.c.bf16 %v2213, %v2212
        %v2249 = vpack.c.bf16 %v2215, %v2214
        %v2250 = vpack.c.bf16 %v2217, %v2216
        %v2251 = vpack.c.bf16 %v2219, %v2218
        %v2284 = vunpack.c.l.b16 %v2220
        %v2285 = vunpack.c.h.b16 %v2220
        %v2286 = vunpack.c.l.b16 %v2221
        %v2287 = vunpack.c.h.b16 %v2221
        %v2288 = vunpack.c.l.b16 %v2222
        %v2289 = vunpack.c.h.b16 %v2222
        %v2290 = vunpack.c.l.b16 %v2223
        %v2291 = vunpack.c.h.b16 %v2223
        %v2292 = vunpack.c.l.b16 %v2224
        %v2293 = vunpack.c.h.b16 %v2224
        %v2294 = vunpack.c.l.b16 %v2225
        %v2295 = vunpack.c.h.b16 %v2225
        %v2296 = vunpack.c.l.b16 %v2226
        %v2297 = vunpack.c.h.b16 %v2226
        %v2298 = vunpack.c.l.b16 %v2227
        %v2299 = vunpack.c.h.b16 %v2227
        %v2300 = vunpack.c.l.b16 %v2228
        %v2301 = vunpack.c.h.b16 %v2228
        %v2302 = vunpack.c.l.b16 %v2229
        %v2303 = vunpack.c.h.b16 %v2229
        %v2304 = vunpack.c.l.b16 %v2230
        %v2305 = vunpack.c.h.b16 %v2230
        %v2306 = vunpack.c.l.b16 %v2231
        %v2307 = vunpack.c.h.b16 %v2231
        %v2308 = vunpack.c.l.b16 %v2232
        %v2309 = vunpack.c.h.b16 %v2232
        %v2310 = vunpack.c.l.b16 %v2233
        %v2311 = vunpack.c.h.b16 %v2233
        %v2312 = vunpack.c.l.b16 %v2234
        %v2313 = vunpack.c.h.b16 %v2234
        %v2314 = vunpack.c.l.b16 %v2235
        %v2315 = vunpack.c.h.b16 %v2235
        %v2316 = vunpack.c.l.b16 %v2236
        %v2317 = vunpack.c.h.b16 %v2236
        %v2318 = vunpack.c.l.b16 %v2237
        %v2319 = vunpack.c.h.b16 %v2237
        %v2320 = vunpack.c.l.b16 %v2238
        %v2321 = vunpack.c.h.b16 %v2238
        %v2322 = vunpack.c.l.b16 %v2239
        %v2323 = vunpack.c.h.b16 %v2239
        %v2324 = vunpack.c.l.b16 %v2240
        %v2325 = vunpack.c.h.b16 %v2240
        %v2326 = vunpack.c.l.b16 %v2241
        %v2327 = vunpack.c.h.b16 %v2241
        %v2328 = vunpack.c.l.b16 %v2242
        %v2329 = vunpack.c.h.b16 %v2242
        %v2330 = vunpack.c.l.b16 %v2243
        %v2331 = vunpack.c.h.b16 %v2243
        %v2332 = vunpack.c.l.b16 %v2244
        %v2333 = vunpack.c.h.b16 %v2244
        %v2334 = vunpack.c.l.b16 %v2245
        %v2335 = vunpack.c.h.b16 %v2245
        %v2336 = vunpack.c.l.b16 %v2246
        %v2337 = vunpack.c.h.b16 %v2246
        %v2338 = vunpack.c.l.b16 %v2247
        %v2339 = vunpack.c.h.b16 %v2247
        %v2340 = vunpack.c.l.b16 %v2248
        %v2341 = vunpack.c.h.b16 %v2248
        %v2342 = vunpack.c.l.b16 %v2249
        %v2343 = vunpack.c.h.b16 %v2249
        %v2344 = vunpack.c.l.b16 %v2250
        %v2345 = vunpack.c.h.b16 %v2250
        %v2346 = vunpack.c.l.b16 %v2251
        %v2347 = vunpack.c.h.b16 %v2251
        %v2348 = vpack.c.b16 %v2284, %v2284
        %v2349 = vpack.c.b16 %v2285, %v2285
        %v2350 = vpack.c.b16 %v2286, %v2286
        %v2351 = vpack.c.b16 %v2287, %v2287
        %v2352 = vpack.c.b16 %v2288, %v2288
        %v2353 = vpack.c.b16 %v2289, %v2289
        %v2354 = vpack.c.b16 %v2290, %v2290
        %v2355 = vpack.c.b16 %v2291, %v2291
        %v2356 = vpack.c.b16 %v2292, %v2292
        %v2357 = vpack.c.b16 %v2293, %v2293
        %v2358 = vpack.c.b16 %v2294, %v2294
        %v2359 = vpack.c.b16 %v2295, %v2295
        %v2360 = vpack.c.b16 %v2296, %v2296
        %v2361 = vpack.c.b16 %v2297, %v2297
        %v2362 = vpack.c.b16 %v2298, %v2298
        %v2363 = vpack.c.b16 %v2299, %v2299
        %v2364 = vpack.c.b16 %v2300, %v2300
        %v2365 = vpack.c.b16 %v2301, %v2301
        %v2366 = vpack.c.b16 %v2302, %v2302
        %v2367 = vpack.c.b16 %v2303, %v2303
        %v2368 = vpack.c.b16 %v2304, %v2304
        %v2369 = vpack.c.b16 %v2305, %v2305
        %v2370 = vpack.c.b16 %v2306, %v2306
        %v2371 = vpack.c.b16 %v2307, %v2307
        %v2372 = vpack.c.b16 %v2308, %v2308
        %v2373 = vpack.c.b16 %v2309, %v2309
        %v2374 = vpack.c.b16 %v2310, %v2310
        %v2375 = vpack.c.b16 %v2311, %v2311
        %v2376 = vpack.c.b16 %v2312, %v2312
        %v2377 = vpack.c.b16 %v2313, %v2313
        %v2378 = vpack.c.b16 %v2314, %v2314
        %v2379 = vpack.c.b16 %v2315, %v2315
        %v2380 = vpack.c.b16 %v2316, %v2316
        %v2381 = vpack.c.b16 %v2317, %v2317
        %v2382 = vpack.c.b16 %v2318, %v2318
        %v2383 = vpack.c.b16 %v2319, %v2319
        %v2384 = vpack.c.b16 %v2320, %v2320
        %v2385 = vpack.c.b16 %v2321, %v2321
        %v2386 = vpack.c.b16 %v2322, %v2322
        %v2387 = vpack.c.b16 %v2323, %v2323
        %v2388 = vpack.c.b16 %v2324, %v2324
        %v2389 = vpack.c.b16 %v2325, %v2325
        %v2390 = vpack.c.b16 %v2326, %v2326
        %v2391 = vpack.c.b16 %v2327, %v2327
        %v2392 = vpack.c.b16 %v2328, %v2328
        %v2393 = vpack.c.b16 %v2329, %v2329
        %v2394 = vpack.c.b16 %v2330, %v2330
        %v2395 = vpack.c.b16 %v2331, %v2331
        %v2396 = vpack.c.b16 %v2332, %v2332
        %v2397 = vpack.c.b16 %v2333, %v2333
        %v2398 = vpack.c.b16 %v2334, %v2334
        %v2399 = vpack.c.b16 %v2335, %v2335
        %v2400 = vpack.c.b16 %v2336, %v2336
        %v2401 = vpack.c.b16 %v2337, %v2337
        %v2402 = vpack.c.b16 %v2338, %v2338
        %v2403 = vpack.c.b16 %v2339, %v2339
        %v2404 = vpack.c.b16 %v2340, %v2340
        %v2405 = vpack.c.b16 %v2341, %v2341
        %v2406 = vpack.c.b16 %v2342, %v2342
        %v2407 = vpack.c.b16 %v2343, %v2343
        %v2408 = vpack.c.b16 %v2344, %v2344
        %v2409 = vpack.c.b16 %v2345, %v2345
        %v2410 = vpack.c.b16 %v2346, %v2346
        %v2411 = vpack.c.b16 %v2347, %v2347
        %2476 = vst [vmem:[%s374] sm:$0xf] %v2348
        %2477 = vst [vmem:[%s374 + $0x4] sm:$0xf] %v2349
        %2478 = vst [vmem:[%s374 + $0x8] sm:$0xf] %v2350
        %2479 = vst [vmem:[%s374 + $0xc] sm:$0xf] %v2351
        %2480 = vst [vmem:[%s374 + $0x10] sm:$0xf] %v2352
        %2481 = vst [vmem:[%s374 + $0x14] sm:$0xf] %v2353
        %2482 = vst [vmem:[%s374 + $0x18] sm:$0xf] %v2354
        %2483 = vst [vmem:[%s374 + $0x1c] sm:$0xf] %v2355
        %2484 = vst [vmem:[%s374 + $0x20] sm:$0xf] %v2356
        %2485 = vst [vmem:[%s374 + $0x24] sm:$0xf] %v2357
        %2486 = vst [vmem:[%s374 + $0x28] sm:$0xf] %v2358
        %2487 = vst [vmem:[%s374 + $0x2c] sm:$0xf] %v2359
        %2488 = vst [vmem:[%s374 + $0x30] sm:$0xf] %v2360
        %2489 = vst [vmem:[%s374 + $0x34] sm:$0xf] %v2361
        %2490 = vst [vmem:[%s374 + $0x38] sm:$0xf] %v2362
        %2491 = vst [vmem:[%s374 + $0x3c] sm:$0xf] %v2363
        %2492 = vst [vmem:[%s374 + $0x40] sm:$0xf] %v2364
        %2493 = vst [vmem:[%s374 + $0x44] sm:$0xf] %v2365
        %2494 = vst [vmem:[%s374 + $0x48] sm:$0xf] %v2366
        %2495 = vst [vmem:[%s374 + $0x4c] sm:$0xf] %v2367
        %2496 = vst [vmem:[%s374 + $0x50] sm:$0xf] %v2368
        %2497 = vst [vmem:[%s374 + $0x54] sm:$0xf] %v2369
        %2498 = vst [vmem:[%s374 + $0x58] sm:$0xf] %v2370
        %2499 = vst [vmem:[%s374 + $0x5c] sm:$0xf] %v2371
        %2500 = vst [vmem:[%s374 + $0x60] sm:$0xf] %v2372
        %2501 = vst [vmem:[%s374 + $0x64] sm:$0xf] %v2373
        %2502 = vst [vmem:[%s374 + $0x68] sm:$0xf] %v2374
        %2503 = vst [vmem:[%s374 + $0x6c] sm:$0xf] %v2375
        %2504 = vst [vmem:[%s374 + $0x70] sm:$0xf] %v2376
        %2505 = vst [vmem:[%s374 + $0x74] sm:$0xf] %v2377
        %2506 = vst [vmem:[%s374 + $0x78] sm:$0xf] %v2378
        %2507 = vst [vmem:[%s374 + $0x7c] sm:$0xf] %v2379
        %2508 = vst [vmem:[%s374 + $0x80] sm:$0xf] %v2380
        %2509 = vst [vmem:[%s374 + $0x84] sm:$0xf] %v2381
        %2510 = vst [vmem:[%s374 + $0x88] sm:$0xf] %v2382
        %2511 = vst [vmem:[%s374 + $0x8c] sm:$0xf] %v2383
        %2512 = vst [vmem:[%s374 + $0x90] sm:$0xf] %v2384
        %2513 = vst [vmem:[%s374 + $0x94] sm:$0xf] %v2385
        %2514 = vst [vmem:[%s374 + $0x98] sm:$0xf] %v2386
        %2515 = vst [vmem:[%s374 + $0x9c] sm:$0xf] %v2387
        %2516 = vst [vmem:[%s374 + $0xa0] sm:$0xf] %v2388
        %2517 = vst [vmem:[%s374 + $0xa4] sm:$0xf] %v2389
        %2518 = vst [vmem:[%s374 + $0xa8] sm:$0xf] %v2390
        %2519 = vst [vmem:[%s374 + $0xac] sm:$0xf] %v2391
        %2520 = vst [vmem:[%s374 + $0xb0] sm:$0xf] %v2392
        %2521 = vst [vmem:[%s374 + $0xb4] sm:$0xf] %v2393
        %2522 = vst [vmem:[%s374 + $0xb8] sm:$0xf] %v2394
        %2523 = vst [vmem:[%s374 + $0xbc] sm:$0xf] %v2395
        %2524 = vst [vmem:[%s374 + $0xc0] sm:$0xf] %v2396
        %2525 = vst [vmem:[%s374 + $0xc4] sm:$0xf] %v2397
        %2526 = vst [vmem:[%s374 + $0xc8] sm:$0xf] %v2398
        %2527 = vst [vmem:[%s374 + $0xcc] sm:$0xf] %v2399
        %2528 = vst [vmem:[%s374 + $0xd0] sm:$0xf] %v2400
        %2529 = vst [vmem:[%s374 + $0xd4] sm:$0xf] %v2401
        %2530 = vst [vmem:[%s374 + $0xd8] sm:$0xf] %v2402
        %2531 = vst [vmem:[%s374 + $0xdc] sm:$0xf] %v2403
        %2532 = vst [vmem:[%s374 + $0xe0] sm:$0xf] %v2404
        %2533 = vst [vmem:[%s374 + $0xe4] sm:$0xf] %v2405
        %2534 = vst [vmem:[%s374 + $0xe8] sm:$0xf] %v2406
        %2535 = vst [vmem:[%s374 + $0xec] sm:$0xf] %v2407
        %2536 = vst [vmem:[%s374 + $0xf0] sm:$0xf] %v2408
        %2537 = vst [vmem:[%s374 + $0xf4] sm:$0xf] %v2409
        %2538 = vst [vmem:[%s374 + $0xf8] sm:$0xf] %v2410
        %2539 = vst [vmem:[%s374 + $0xfc] sm:$0xf] %v2411
        %2540 = vxpose.xlu0.b32.start [1/16] %v1551, 128
        %2541 = vxpose.xlu0.b32.cont [2/16] %v1555, 128
        %2542 = vxpose.xlu0.b32.cont [3/16] %v1561, 128
        %2543 = vxpose.xlu0.b32.cont [4/16] %v1565, 128
        %2544 = vxpose.xlu0.b32.cont [5/16] %v1571, 128
        %2545 = vxpose.xlu0.b32.cont [6/16] %v1575, 128
        %2546 = vxpose.xlu0.b32.cont [7/16] %v1581, 128
        %2547 = vxpose.xlu0.b32.cont [8/16] %v1585, 128
        %2548 = vxpose.xlu0.b32.cont [9/16] %v1591, 128
        %2549 = vxpose.xlu0.b32.cont [10/16] %v1595, 128
        %2550 = vxpose.xlu0.b32.cont [11/16] %v1601, 128
        %2551 = vxpose.xlu0.b32.cont [12/16] %v1605, 128
        %2552 = vxpose.xlu0.b32.cont [13/16] %v1611, 128
        %2553 = vxpose.xlu0.b32.cont [14/16] %v1615, 128
        %2554 = vxpose.xlu0.b32.cont [15/16] %v1621, 128
        %2555 = vxpose.xlu0.b32.end [16/16] %v1625, 128
        %v2556 = vpop.trf.xlu0
        %v2557 = vpop.trf.xlu0
        %v2558 = vpop.trf.xlu0
        %v2559 = vpop.trf.xlu0
        %v2560 = vpop.trf.xlu0
        %v2561 = vpop.trf.xlu0
        %v2562 = vpop.trf.xlu0
        %v2563 = vpop.trf.xlu0
        %v2564 = vpop.trf.xlu0
        %v2565 = vpop.trf.xlu0
        %v2566 = vpop.trf.xlu0
        %v2567 = vpop.trf.xlu0
        %v2568 = vpop.trf.xlu0
        %v2569 = vpop.trf.xlu0
        %v2570 = vpop.trf.xlu0
        %v2571 = vpop.trf.xlu0
        %2572 = vxpose.xlu0.b32.start [1/16] %v1631, 128
        %2573 = vxpose.xlu0.b32.cont [2/16] %v1635, 128
        %2574 = vxpose.xlu0.b32.cont [3/16] %v1641, 128
        %2575 = vxpose.xlu0.b32.cont [4/16] %v1645, 128
        %2576 = vxpose.xlu0.b32.cont [5/16] %v1651, 128
        %2577 = vxpose.xlu0.b32.cont [6/16] %v1655, 128
        %2578 = vxpose.xlu0.b32.cont [7/16] %v1661, 128
        %2579 = vxpose.xlu0.b32.cont [8/16] %v1665, 128
        %2580 = vxpose.xlu0.b32.cont [9/16] %v1671, 128
        %2581 = vxpose.xlu0.b32.cont [10/16] %v1675, 128
        %2582 = vxpose.xlu0.b32.cont [11/16] %v1681, 128
        %2583 = vxpose.xlu0.b32.cont [12/16] %v1685, 128
        %2584 = vxpose.xlu0.b32.cont [13/16] %v1691, 128
        %2585 = vxpose.xlu0.b32.cont [14/16] %v1695, 128
        %2586 = vxpose.xlu0.b32.cont [15/16] %v1701, 128
        %2587 = vxpose.xlu0.b32.end [16/16] %v1705, 128
        %v2588 = vpop.trf.xlu0
        %v2589 = vpop.trf.xlu0
        %v2590 = vpop.trf.xlu0
        %v2591 = vpop.trf.xlu0
        %v2592 = vpop.trf.xlu0
        %v2593 = vpop.trf.xlu0
        %v2594 = vpop.trf.xlu0
        %v2595 = vpop.trf.xlu0
        %v2596 = vpop.trf.xlu0
        %v2597 = vpop.trf.xlu0
        %v2598 = vpop.trf.xlu0
        %v2599 = vpop.trf.xlu0
        %v2600 = vpop.trf.xlu0
        %v2601 = vpop.trf.xlu0
        %v2602 = vpop.trf.xlu0
        %v2603 = vpop.trf.xlu0
        %2604 = vxpose.xlu0.b32.start [1/16] %v1711, 128
        %2605 = vxpose.xlu0.b32.cont [2/16] %v1715, 128
        %2606 = vxpose.xlu0.b32.cont [3/16] %v1721, 128
        %2607 = vxpose.xlu0.b32.cont [4/16] %v1725, 128
        %2608 = vxpose.xlu0.b32.cont [5/16] %v1731, 128
        %2609 = vxpose.xlu0.b32.cont [6/16] %v1735, 128
        %2610 = vxpose.xlu0.b32.cont [7/16] %v1741, 128
        %2611 = vxpose.xlu0.b32.cont [8/16] %v1745, 128
        %2612 = vxpose.xlu0.b32.cont [9/16] %v1751, 128
        %2613 = vxpose.xlu0.b32.cont [10/16] %v1755, 128
        %2614 = vxpose.xlu0.b32.cont [11/16] %v1761, 128
        %2615 = vxpose.xlu0.b32.cont [12/16] %v1765, 128
        %2616 = vxpose.xlu0.b32.cont [13/16] %v1771, 128
        %2617 = vxpose.xlu0.b32.cont [14/16] %v1775, 128
        %2618 = vxpose.xlu0.b32.cont [15/16] %v1781, 128
        %2619 = vxpose.xlu0.b32.end [16/16] %v1785, 128
        %v2620 = vpop.trf.xlu0
        %v2621 = vpop.trf.xlu0
        %v2622 = vpop.trf.xlu0
        %v2623 = vpop.trf.xlu0
        %v2624 = vpop.trf.xlu0
        %v2625 = vpop.trf.xlu0
        %v2626 = vpop.trf.xlu0
        %v2627 = vpop.trf.xlu0
        %v2628 = vpop.trf.xlu0
        %v2629 = vpop.trf.xlu0
        %v2630 = vpop.trf.xlu0
        %v2631 = vpop.trf.xlu0
        %v2632 = vpop.trf.xlu0
        %v2633 = vpop.trf.xlu0
        %v2634 = vpop.trf.xlu0
        %v2635 = vpop.trf.xlu0
        %2636 = vxpose.xlu0.b32.start [1/16] %v1791, 128
        %2637 = vxpose.xlu0.b32.cont [2/16] %v1795, 128
        %2638 = vxpose.xlu0.b32.cont [3/16] %v1801, 128
        %2639 = vxpose.xlu0.b32.cont [4/16] %v1805, 128
        %2640 = vxpose.xlu0.b32.cont [5/16] %v1811, 128
        %2641 = vxpose.xlu0.b32.cont [6/16] %v1815, 128
        %2642 = vxpose.xlu0.b32.cont [7/16] %v1821, 128
        %2643 = vxpose.xlu0.b32.cont [8/16] %v1825, 128
        %2644 = vxpose.xlu0.b32.cont [9/16] %v1831, 128
        %2645 = vxpose.xlu0.b32.cont [10/16] %v1835, 128
        %2646 = vxpose.xlu0.b32.cont [11/16] %v1841, 128
        %2647 = vxpose.xlu0.b32.cont [12/16] %v1845, 128
        %2648 = vxpose.xlu0.b32.cont [13/16] %v1851, 128
        %2649 = vxpose.xlu0.b32.cont [14/16] %v1855, 128
        %2650 = vxpose.xlu0.b32.cont [15/16] %v1861, 128
        %2651 = vxpose.xlu0.b32.end [16/16] %v1865, 128
        %v2652 = vpop.trf.xlu0
        %v2653 = vpop.trf.xlu0
        %v2654 = vpop.trf.xlu0
        %v2655 = vpop.trf.xlu0
        %v2656 = vpop.trf.xlu0
        %v2657 = vpop.trf.xlu0
        %v2658 = vpop.trf.xlu0
        %v2659 = vpop.trf.xlu0
        %v2660 = vpop.trf.xlu0
        %v2661 = vpop.trf.xlu0
        %v2662 = vpop.trf.xlu0
        %v2663 = vpop.trf.xlu0
        %v2664 = vpop.trf.xlu0
        %v2665 = vpop.trf.xlu0
        %v2666 = vpop.trf.xlu0
        %v2667 = vpop.trf.xlu0
        %v2668 = vpack.c.bf16 %v2557, %v2556
        %v2669 = vpack.c.bf16 %v2589, %v2588
        %v2670 = vpack.c.bf16 %v2621, %v2620
        %v2671 = vpack.c.bf16 %v2653, %v2652
        %v2672 = vpack.c.bf16 %v2559, %v2558
        %v2673 = vpack.c.bf16 %v2591, %v2590
        %v2674 = vpack.c.bf16 %v2623, %v2622
        %v2675 = vpack.c.bf16 %v2655, %v2654
        %v2676 = vpack.c.bf16 %v2561, %v2560
        %v2677 = vpack.c.bf16 %v2593, %v2592
        %v2678 = vpack.c.bf16 %v2625, %v2624
        %v2679 = vpack.c.bf16 %v2657, %v2656
        %v2680 = vpack.c.bf16 %v2563, %v2562
        %v2681 = vpack.c.bf16 %v2595, %v2594
        %v2682 = vpack.c.bf16 %v2627, %v2626
        %v2683 = vpack.c.bf16 %v2659, %v2658
        %v2684 = vpack.c.bf16 %v2565, %v2564
        %v2685 = vpack.c.bf16 %v2597, %v2596
        %v2686 = vpack.c.bf16 %v2629, %v2628
        %v2687 = vpack.c.bf16 %v2661, %v2660
        %v2688 = vpack.c.bf16 %v2567, %v2566
        %v2689 = vpack.c.bf16 %v2599, %v2598
        %v2690 = vpack.c.bf16 %v2631, %v2630
        %v2691 = vpack.c.bf16 %v2663, %v2662
        %v2692 = vpack.c.bf16 %v2569, %v2568
        %v2693 = vpack.c.bf16 %v2601, %v2600
        %v2694 = vpack.c.bf16 %v2633, %v2632
        %v2695 = vpack.c.bf16 %v2665, %v2664
        %v2696 = vpack.c.bf16 %v2571, %v2570
        %v2697 = vpack.c.bf16 %v2603, %v2602
        %v2698 = vpack.c.bf16 %v2635, %v2634
        %v2699 = vpack.c.bf16 %v2667, %v2666
        %v2732 = vunpack.c.l.b16 %v2668
        %v2733 = vunpack.c.l.b16 %v2669
        %v2734 = vunpack.c.l.b16 %v2670
        %v2735 = vunpack.c.l.b16 %v2671
        %v2736 = vunpack.c.h.b16 %v2668
        %v2737 = vunpack.c.h.b16 %v2669
        %v2738 = vunpack.c.h.b16 %v2670
        %v2739 = vunpack.c.h.b16 %v2671
        %v2740 = vunpack.c.l.b16 %v2672
        %v2741 = vunpack.c.l.b16 %v2673
        %v2742 = vunpack.c.l.b16 %v2674
        %v2743 = vunpack.c.l.b16 %v2675
        %v2744 = vunpack.c.h.b16 %v2672
        %v2745 = vunpack.c.h.b16 %v2673
        %v2746 = vunpack.c.h.b16 %v2674
        %v2747 = vunpack.c.h.b16 %v2675
        %v2748 = vunpack.c.l.b16 %v2676
        %v2749 = vunpack.c.l.b16 %v2677
        %v2750 = vunpack.c.l.b16 %v2678
        %v2751 = vunpack.c.l.b16 %v2679
        %v2752 = vunpack.c.h.b16 %v2676
        %v2753 = vunpack.c.h.b16 %v2677
        %v2754 = vunpack.c.h.b16 %v2678
        %v2755 = vunpack.c.h.b16 %v2679
        %v2756 = vunpack.c.l.b16 %v2680
        %v2757 = vunpack.c.l.b16 %v2681
        %v2758 = vunpack.c.l.b16 %v2682
        %v2759 = vunpack.c.l.b16 %v2683
        %v2760 = vunpack.c.h.b16 %v2680
        %v2761 = vunpack.c.h.b16 %v2681
        %v2762 = vunpack.c.h.b16 %v2682
        %v2763 = vunpack.c.h.b16 %v2683
        %v2764 = vunpack.c.l.b16 %v2684
        %v2765 = vunpack.c.l.b16 %v2685
        %v2766 = vunpack.c.l.b16 %v2686
        %v2767 = vunpack.c.l.b16 %v2687
        %v2768 = vunpack.c.h.b16 %v2684
        %v2769 = vunpack.c.h.b16 %v2685
        %v2770 = vunpack.c.h.b16 %v2686
        %v2771 = vunpack.c.h.b16 %v2687
        %v2772 = vunpack.c.l.b16 %v2688
        %v2773 = vunpack.c.l.b16 %v2689
        %v2774 = vunpack.c.l.b16 %v2690
        %v2775 = vunpack.c.l.b16 %v2691
        %v2776 = vunpack.c.h.b16 %v2688
        %v2777 = vunpack.c.h.b16 %v2689
        %v2778 = vunpack.c.h.b16 %v2690
        %v2779 = vunpack.c.h.b16 %v2691
        %v2780 = vunpack.c.l.b16 %v2692
        %v2781 = vunpack.c.l.b16 %v2693
        %v2782 = vunpack.c.l.b16 %v2694
        %v2783 = vunpack.c.l.b16 %v2695
        %v2784 = vunpack.c.h.b16 %v2692
        %v2785 = vunpack.c.h.b16 %v2693
        %v2786 = vunpack.c.h.b16 %v2694
        %v2787 = vunpack.c.h.b16 %v2695
        %v2788 = vunpack.c.l.b16 %v2696
        %v2789 = vunpack.c.l.b16 %v2697
        %v2790 = vunpack.c.l.b16 %v2698
        %v2791 = vunpack.c.l.b16 %v2699
        %v2792 = vunpack.c.h.b16 %v2696
        %v2793 = vunpack.c.h.b16 %v2697
        %v2794 = vunpack.c.h.b16 %v2698
        %v2795 = vunpack.c.h.b16 %v2699
        %v2796 = vpack.c.b16 %v2733, %v2732
        %v2797 = vpack.c.b16 %v2735, %v2734
        %v2798 = vpack.c.b16 %v2737, %v2736
        %v2799 = vpack.c.b16 %v2739, %v2738
        %v2800 = vpack.c.b16 %v2741, %v2740
        %v2801 = vpack.c.b16 %v2743, %v2742
        %v2802 = vpack.c.b16 %v2745, %v2744
        %v2803 = vpack.c.b16 %v2747, %v2746
        %v2804 = vpack.c.b16 %v2749, %v2748
        %v2805 = vpack.c.b16 %v2751, %v2750
        %v2806 = vpack.c.b16 %v2753, %v2752
        %v2807 = vpack.c.b16 %v2755, %v2754
        %v2808 = vpack.c.b16 %v2757, %v2756
        %v2809 = vpack.c.b16 %v2759, %v2758
        %v2810 = vpack.c.b16 %v2761, %v2760
        %v2811 = vpack.c.b16 %v2763, %v2762
        %v2812 = vpack.c.b16 %v2765, %v2764
        %v2813 = vpack.c.b16 %v2767, %v2766
        %v2814 = vpack.c.b16 %v2769, %v2768
        %v2815 = vpack.c.b16 %v2771, %v2770
        %v2816 = vpack.c.b16 %v2773, %v2772
        %v2817 = vpack.c.b16 %v2775, %v2774
        %v2818 = vpack.c.b16 %v2777, %v2776
        %v2819 = vpack.c.b16 %v2779, %v2778
        %v2820 = vpack.c.b16 %v2781, %v2780
        %v2821 = vpack.c.b16 %v2783, %v2782
        %v2822 = vpack.c.b16 %v2785, %v2784
        %v2823 = vpack.c.b16 %v2787, %v2786
        %v2824 = vpack.c.b16 %v2789, %v2788
        %v2825 = vpack.c.b16 %v2791, %v2790
        %v2826 = vpack.c.b16 %v2793, %v2792
        %v2827 = vpack.c.b16 %v2795, %v2794
        %2860 = vst [vmem:[%s381] sm:$0xff] %v2796
        %2861 = vst [vmem:[%s381 + $0x8] sm:$0xff] %v2797
        %2862 = vst [vmem:[%s381 + $0x10] sm:$0xff] %v2798
        %2863 = vst [vmem:[%s381 + $0x18] sm:$0xff] %v2799
        %2864 = vst [vmem:[%s381 + $0x20] sm:$0xff] %v2800
        %2865 = vst [vmem:[%s381 + $0x28] sm:$0xff] %v2801
        %2866 = vst [vmem:[%s381 + $0x30] sm:$0xff] %v2802
        %2867 = vst [vmem:[%s381 + $0x38] sm:$0xff] %v2803
        %2868 = vst [vmem:[%s381 + $0x40] sm:$0xff] %v2804
        %2869 = vst [vmem:[%s381 + $0x48] sm:$0xff] %v2805
        %2870 = vst [vmem:[%s381 + $0x50] sm:$0xff] %v2806
        %2871 = vst [vmem:[%s381 + $0x58] sm:$0xff] %v2807
        %2872 = vst [vmem:[%s381 + $0x60] sm:$0xff] %v2808
        %2873 = vst [vmem:[%s381 + $0x68] sm:$0xff] %v2809
        %2874 = vst [vmem:[%s381 + $0x70] sm:$0xff] %v2810
        %2875 = vst [vmem:[%s381 + $0x78] sm:$0xff] %v2811
        %2876 = vst [vmem:[%s381 + $0x80] sm:$0xff] %v2812
        %2877 = vst [vmem:[%s381 + $0x88] sm:$0xff] %v2813
        %2878 = vst [vmem:[%s381 + $0x90] sm:$0xff] %v2814
        %2879 = vst [vmem:[%s381 + $0x98] sm:$0xff] %v2815
        %2880 = vst [vmem:[%s381 + $0xa0] sm:$0xff] %v2816
        %2881 = vst [vmem:[%s381 + $0xa8] sm:$0xff] %v2817
        %2882 = vst [vmem:[%s381 + $0xb0] sm:$0xff] %v2818
        %2883 = vst [vmem:[%s381 + $0xb8] sm:$0xff] %v2819
        %2884 = vst [vmem:[%s381 + $0xc0] sm:$0xff] %v2820
        %2885 = vst [vmem:[%s381 + $0xc8] sm:$0xff] %v2821
        %2886 = vst [vmem:[%s381 + $0xd0] sm:$0xff] %v2822
        %2887 = vst [vmem:[%s381 + $0xd8] sm:$0xff] %v2823
        %2888 = vst [vmem:[%s381 + $0xe0] sm:$0xff] %v2824
        %2889 = vst [vmem:[%s381 + $0xe8] sm:$0xff] %v2825
        %2890 = vst [vmem:[%s381 + $0xf0] sm:$0xff] %v2826
        %2891 = vst [vmem:[%s381 + $0xf8] sm:$0xff] %v2827
        %v2892 = vpack.c.bf16 %v1905, %v1902
        %v2893 = vpack.c.bf16 %v1913, %v1910
        %v2894 = vpack.c.bf16 %v1921, %v1918
        %v2895 = vpack.c.bf16 %v1929, %v1926
        %v2896 = vpack.c.bf16 %v1937, %v1934
        %v2897 = vpack.c.bf16 %v1945, %v1942
        %v2898 = vpack.c.bf16 %v1953, %v1950
        %v2899 = vpack.c.bf16 %v1961, %v1958
        %v2900 = vpack.c.bf16 %v1969, %v1966
        %v2901 = vpack.c.bf16 %v1977, %v1974
        %v2902 = vpack.c.bf16 %v1985, %v1982
        %v2903 = vpack.c.bf16 %v1993, %v1990
        %v2904 = vpack.c.bf16 %v2001, %v1998
        %v2905 = vpack.c.bf16 %v2009, %v2006
        %v2906 = vpack.c.bf16 %v2017, %v2014
        %v2907 = vpack.c.bf16 %v2025, %v2022
        %v2908 = vpack.c.bf16 %v2033, %v2030
        %v2909 = vpack.c.bf16 %v2041, %v2038
        %v2910 = vpack.c.bf16 %v2049, %v2046
        %v2911 = vpack.c.bf16 %v2057, %v2054
        %v2912 = vpack.c.bf16 %v2065, %v2062
        %v2913 = vpack.c.bf16 %v2073, %v2070
        %v2914 = vpack.c.bf16 %v2081, %v2078
        %v2915 = vpack.c.bf16 %v2089, %v2086
        %v2916 = vpack.c.bf16 %v2097, %v2094
        %v2917 = vpack.c.bf16 %v2105, %v2102
        %v2918 = vpack.c.bf16 %v2113, %v2110
        %v2919 = vpack.c.bf16 %v2121, %v2118
        %v2920 = vpack.c.bf16 %v2129, %v2126
        %v2921 = vpack.c.bf16 %v2137, %v2134
        %v2922 = vpack.c.bf16 %v2145, %v2142
        %v2923 = vpack.c.bf16 %v2153, %v2150
        %v2956 = vunpack.c.l.b16 %v2892
        %v2957 = vunpack.c.h.b16 %v2892
        %v2958 = vunpack.c.l.b16 %v2893
        %v2959 = vunpack.c.h.b16 %v2893
        %v2960 = vunpack.c.l.b16 %v2894
        %v2961 = vunpack.c.h.b16 %v2894
        %v2962 = vunpack.c.l.b16 %v2895
        %v2963 = vunpack.c.h.b16 %v2895
        %v2964 = vunpack.c.l.b16 %v2896
        %v2965 = vunpack.c.h.b16 %v2896
        %v2966 = vunpack.c.l.b16 %v2897
        %v2967 = vunpack.c.h.b16 %v2897
        %v2968 = vunpack.c.l.b16 %v2898
        %v2969 = vunpack.c.h.b16 %v2898
        %v2970 = vunpack.c.l.b16 %v2899
        %v2971 = vunpack.c.h.b16 %v2899
        %v2972 = vunpack.c.l.b16 %v2900
        %v2973 = vunpack.c.h.b16 %v2900
        %v2974 = vunpack.c.l.b16 %v2901
        %v2975 = vunpack.c.h.b16 %v2901
        %v2976 = vunpack.c.l.b16 %v2902
        %v2977 = vunpack.c.h.b16 %v2902
        %v2978 = vunpack.c.l.b16 %v2903
        %v2979 = vunpack.c.h.b16 %v2903
        %v2980 = vunpack.c.l.b16 %v2904
        %v2981 = vunpack.c.h.b16 %v2904
        %v2982 = vunpack.c.l.b16 %v2905
        %v2983 = vunpack.c.h.b16 %v2905
        %v2984 = vunpack.c.l.b16 %v2906
        %v2985 = vunpack.c.h.b16 %v2906
        %v2986 = vunpack.c.l.b16 %v2907
        %v2987 = vunpack.c.h.b16 %v2907
        %v2988 = vunpack.c.l.b16 %v2908
        %v2989 = vunpack.c.h.b16 %v2908
        %v2990 = vunpack.c.l.b16 %v2909
        %v2991 = vunpack.c.h.b16 %v2909
        %v2992 = vunpack.c.l.b16 %v2910
        %v2993 = vunpack.c.h.b16 %v2910
        %v2994 = vunpack.c.l.b16 %v2911
        %v2995 = vunpack.c.h.b16 %v2911
        %v2996 = vunpack.c.l.b16 %v2912
        %v2997 = vunpack.c.h.b16 %v2912
        %v2998 = vunpack.c.l.b16 %v2913
        %v2999 = vunpack.c.h.b16 %v2913
        %v3000 = vunpack.c.l.b16 %v2914
        %v3001 = vunpack.c.h.b16 %v2914
        %v3002 = vunpack.c.l.b16 %v2915
        %v3003 = vunpack.c.h.b16 %v2915
        %v3004 = vunpack.c.l.b16 %v2916
        %v3005 = vunpack.c.h.b16 %v2916
        %v3006 = vunpack.c.l.b16 %v2917
        %v3007 = vunpack.c.h.b16 %v2917
        %v3008 = vunpack.c.l.b16 %v2918
        %v3009 = vunpack.c.h.b16 %v2918
        %v3010 = vunpack.c.l.b16 %v2919
        %v3011 = vunpack.c.h.b16 %v2919
        %v3012 = vunpack.c.l.b16 %v2920
        %v3013 = vunpack.c.h.b16 %v2920
        %v3014 = vunpack.c.l.b16 %v2921
        %v3015 = vunpack.c.h.b16 %v2921
        %v3016 = vunpack.c.l.b16 %v2922
        %v3017 = vunpack.c.h.b16 %v2922
        %v3018 = vunpack.c.l.b16 %v2923
        %v3019 = vunpack.c.h.b16 %v2923
        %v3020 = vpack.c.b16 %v2956, %v2956
        %v3021 = vpack.c.b16 %v2957, %v2957
        %v3022 = vpack.c.b16 %v2958, %v2958
        %v3023 = vpack.c.b16 %v2959, %v2959
        %v3024 = vpack.c.b16 %v2960, %v2960
        %v3025 = vpack.c.b16 %v2961, %v2961
        %v3026 = vpack.c.b16 %v2962, %v2962
        %v3027 = vpack.c.b16 %v2963, %v2963
        %v3028 = vpack.c.b16 %v2964, %v2964
        %v3029 = vpack.c.b16 %v2965, %v2965
        %v3030 = vpack.c.b16 %v2966, %v2966
        %v3031 = vpack.c.b16 %v2967, %v2967
        %v3032 = vpack.c.b16 %v2968, %v2968
        %v3033 = vpack.c.b16 %v2969, %v2969
        %v3034 = vpack.c.b16 %v2970, %v2970
        %v3035 = vpack.c.b16 %v2971, %v2971
        %v3036 = vpack.c.b16 %v2972, %v2972
        %v3037 = vpack.c.b16 %v2973, %v2973
        %v3038 = vpack.c.b16 %v2974, %v2974
        %v3039 = vpack.c.b16 %v2975, %v2975
        %v3040 = vpack.c.b16 %v2976, %v2976
        %v3041 = vpack.c.b16 %v2977, %v2977
        %v3042 = vpack.c.b16 %v2978, %v2978
        %v3043 = vpack.c.b16 %v2979, %v2979
        %v3044 = vpack.c.b16 %v2980, %v2980
        %v3045 = vpack.c.b16 %v2981, %v2981
        %v3046 = vpack.c.b16 %v2982, %v2982
        %v3047 = vpack.c.b16 %v2983, %v2983
        %v3048 = vpack.c.b16 %v2984, %v2984
        %v3049 = vpack.c.b16 %v2985, %v2985
        %v3050 = vpack.c.b16 %v2986, %v2986
        %v3051 = vpack.c.b16 %v2987, %v2987
        %v3052 = vpack.c.b16 %v2988, %v2988
        %v3053 = vpack.c.b16 %v2989, %v2989
        %v3054 = vpack.c.b16 %v2990, %v2990
        %v3055 = vpack.c.b16 %v2991, %v2991
        %v3056 = vpack.c.b16 %v2992, %v2992
        %v3057 = vpack.c.b16 %v2993, %v2993
        %v3058 = vpack.c.b16 %v2994, %v2994
        %v3059 = vpack.c.b16 %v2995, %v2995
        %v3060 = vpack.c.b16 %v2996, %v2996
        %v3061 = vpack.c.b16 %v2997, %v2997
        %v3062 = vpack.c.b16 %v2998, %v2998
        %v3063 = vpack.c.b16 %v2999, %v2999
        %v3064 = vpack.c.b16 %v3000, %v3000
        %v3065 = vpack.c.b16 %v3001, %v3001
        %v3066 = vpack.c.b16 %v3002, %v3002
        %v3067 = vpack.c.b16 %v3003, %v3003
        %v3068 = vpack.c.b16 %v3004, %v3004
        %v3069 = vpack.c.b16 %v3005, %v3005
        %v3070 = vpack.c.b16 %v3006, %v3006
        %v3071 = vpack.c.b16 %v3007, %v3007
        %v3072 = vpack.c.b16 %v3008, %v3008
        %v3073 = vpack.c.b16 %v3009, %v3009
        %v3074 = vpack.c.b16 %v3010, %v3010
        %v3075 = vpack.c.b16 %v3011, %v3011
        %v3076 = vpack.c.b16 %v3012, %v3012
        %v3077 = vpack.c.b16 %v3013, %v3013
        %v3078 = vpack.c.b16 %v3014, %v3014
        %v3079 = vpack.c.b16 %v3015, %v3015
        %v3080 = vpack.c.b16 %v3016, %v3016
        %v3081 = vpack.c.b16 %v3017, %v3017
        %v3082 = vpack.c.b16 %v3018, %v3018
        %v3083 = vpack.c.b16 %v3019, %v3019
        %3148 = vst [vmem:[%s388] sm:$0xf] %v3020
        %3149 = vst [vmem:[%s388 + $0x4] sm:$0xf] %v3021
        %3150 = vst [vmem:[%s388 + $0x8] sm:$0xf] %v3022
        %3151 = vst [vmem:[%s388 + $0xc] sm:$0xf] %v3023
        %3152 = vst [vmem:[%s388 + $0x10] sm:$0xf] %v3024
        %3153 = vst [vmem:[%s388 + $0x14] sm:$0xf] %v3025
        %3154 = vst [vmem:[%s388 + $0x18] sm:$0xf] %v3026
        %3155 = vst [vmem:[%s388 + $0x1c] sm:$0xf] %v3027
        %3156 = vst [vmem:[%s388 + $0x20] sm:$0xf] %v3028
        %3157 = vst [vmem:[%s388 + $0x24] sm:$0xf] %v3029
        %3158 = vst [vmem:[%s388 + $0x28] sm:$0xf] %v3030
        %3159 = vst [vmem:[%s388 + $0x2c] sm:$0xf] %v3031
        %3160 = vst [vmem:[%s388 + $0x30] sm:$0xf] %v3032
        %3161 = vst [vmem:[%s388 + $0x34] sm:$0xf] %v3033
        %3162 = vst [vmem:[%s388 + $0x38] sm:$0xf] %v3034
        %3163 = vst [vmem:[%s388 + $0x3c] sm:$0xf] %v3035
        %3164 = vst [vmem:[%s388 + $0x40] sm:$0xf] %v3036
        %3165 = vst [vmem:[%s388 + $0x44] sm:$0xf] %v3037
        %3166 = vst [vmem:[%s388 + $0x48] sm:$0xf] %v3038
        %3167 = vst [vmem:[%s388 + $0x4c] sm:$0xf] %v3039
        %3168 = vst [vmem:[%s388 + $0x50] sm:$0xf] %v3040
        %3169 = vst [vmem:[%s388 + $0x54] sm:$0xf] %v3041
        %3170 = vst [vmem:[%s388 + $0x58] sm:$0xf] %v3042
        %3171 = vst [vmem:[%s388 + $0x5c] sm:$0xf] %v3043
        %3172 = vst [vmem:[%s388 + $0x60] sm:$0xf] %v3044
        %3173 = vst [vmem:[%s388 + $0x64] sm:$0xf] %v3045
        %3174 = vst [vmem:[%s388 + $0x68] sm:$0xf] %v3046
        %3175 = vst [vmem:[%s388 + $0x6c] sm:$0xf] %v3047
        %3176 = vst [vmem:[%s388 + $0x70] sm:$0xf] %v3048
        %3177 = vst [vmem:[%s388 + $0x74] sm:$0xf] %v3049
        %3178 = vst [vmem:[%s388 + $0x78] sm:$0xf] %v3050
        %3179 = vst [vmem:[%s388 + $0x7c] sm:$0xf] %v3051
        %3180 = vst [vmem:[%s388 + $0x80] sm:$0xf] %v3052
        %3181 = vst [vmem:[%s388 + $0x84] sm:$0xf] %v3053
        %3182 = vst [vmem:[%s388 + $0x88] sm:$0xf] %v3054
        %3183 = vst [vmem:[%s388 + $0x8c] sm:$0xf] %v3055
        %3184 = vst [vmem:[%s388 + $0x90] sm:$0xf] %v3056
        %3185 = vst [vmem:[%s388 + $0x94] sm:$0xf] %v3057
        %3186 = vst [vmem:[%s388 + $0x98] sm:$0xf] %v3058
        %3187 = vst [vmem:[%s388 + $0x9c] sm:$0xf] %v3059
        %3188 = vst [vmem:[%s388 + $0xa0] sm:$0xf] %v3060
        %3189 = vst [vmem:[%s388 + $0xa4] sm:$0xf] %v3061
        %3190 = vst [vmem:[%s388 + $0xa8] sm:$0xf] %v3062
        %3191 = vst [vmem:[%s388 + $0xac] sm:$0xf] %v3063
        %3192 = vst [vmem:[%s388 + $0xb0] sm:$0xf] %v3064
        %3193 = vst [vmem:[%s388 + $0xb4] sm:$0xf] %v3065
        %3194 = vst [vmem:[%s388 + $0xb8] sm:$0xf] %v3066
        %3195 = vst [vmem:[%s388 + $0xbc] sm:$0xf] %v3067
        %3196 = vst [vmem:[%s388 + $0xc0] sm:$0xf] %v3068
        %3197 = vst [vmem:[%s388 + $0xc4] sm:$0xf] %v3069
        %3198 = vst [vmem:[%s388 + $0xc8] sm:$0xf] %v3070
        %3199 = vst [vmem:[%s388 + $0xcc] sm:$0xf] %v3071
        %3200 = vst [vmem:[%s388 + $0xd0] sm:$0xf] %v3072
        %3201 = vst [vmem:[%s388 + $0xd4] sm:$0xf] %v3073
        %3202 = vst [vmem:[%s388 + $0xd8] sm:$0xf] %v3074
        %3203 = vst [vmem:[%s388 + $0xdc] sm:$0xf] %v3075
        %3204 = vst [vmem:[%s388 + $0xe0] sm:$0xf] %v3076
        %3205 = vst [vmem:[%s388 + $0xe4] sm:$0xf] %v3077
        %3206 = vst [vmem:[%s388 + $0xe8] sm:$0xf] %v3078
        %3207 = vst [vmem:[%s388 + $0xec] sm:$0xf] %v3079
        %3208 = vst [vmem:[%s388 + $0xf0] sm:$0xf] %v3080
        %3209 = vst [vmem:[%s388 + $0xf4] sm:$0xf] %v3081
        %3210 = vst [vmem:[%s388 + $0xf8] sm:$0xf] %v3082
        %3211 = vst [vmem:[%s388 + $0xfc] sm:$0xf] %v3083
        %s3212 = sand.u32 %s164, 1
        %s3213 = scalar_lea.sflag [#allocation4], %s3212
        %s3214 = sand.u32 %s164, 1
        %s3215 = smul.addr %s3214, 256
        %s3216 = scalar_lea.vmem [#allocation11], %s3215
        %s3217 = sand.u32 %s30, 1
        %s3218 = scalar_lea.sflag [#allocation13], %s3217
        %s3219 = sand.u32 %s192, 1
        %s3220 = smul.addr %s3219, 256
        %s3221 = scalar_lea.vmem [#allocation12], %s3220
        %s3222 = sand.u32 %s30, 1
        %s3223 = scalar_lea.sflag [#allocation13], %s3222
        %s3224 = sand.u32 %s220, 1
        %s3225 = smul.addr %s3224, 256
        %s3226 = scalar_lea.vmem [#allocation14], %s3225
        // Predicated region
        $region61: #{tpu_custom_call.1} parent=39 // pred_check
          %p3227 = pneg %p174
        $region62: #{tpu_custom_call.1} parent=39 // pred_check_branch
          %3229 = sbr.rel (%p3227) target = $region64
        $region63: #{tpu_custom_call.1} parent=39 // pred_region
          %s3230 = smul.u32 64, %s35
          %s3232 = ssub.s32 4096, 4096
          %3233 = vsyncadd %s3213, %s3232
          %s3234 = smul.addr %s34, 64
          %s3235 = sadd.s32 %s3230, %s3234
          %s3236 = smul.addr %s3235, 64
          %s3237 = scalar_lea.hbm %s5, %s3236
          %s3238 = sshll.u32 %s3216, 4
          %s3239 = int_to_ptr.vmem [resolvable:$true] %s3238
          %3244 = dma.vmem_to_hbm [thread:$0]  %s3239, 4096, %s3237, %s3213, 64, 64, 4
        $region64: #{tpu_custom_call.1} parent=39 // pred_fallthru
          _
        // Predicated region
        $region65: #{tpu_custom_call.1} parent=39 // pred_check
          %p3245 = pneg %p202
        $region66: #{tpu_custom_call.1} parent=39 // pred_check_branch
          %3247 = sbr.rel (%p3245) target = $region68
        $region67: #{tpu_custom_call.1} parent=39 // pred_region
          %s3248 = smul.u32 4, %s35
          %s3250 = ssub.s32 4096, 4096
          %3251 = vsyncadd %s3218, %s3250
          %s3252 = smul.addr %s34, 64
          %s3253 = sadd.s32 %s3248, %s3252
          %s3254 = smul.addr %s3253, 64
          %s3255 = scalar_lea.hbm %s6, %s3254
          %s3256 = sshll.u32 %s3221, 4
          %s3257 = int_to_ptr.vmem [resolvable:$true] %s3256
          %3262 = dma.vmem_to_hbm [thread:$0]  %s3257, 4096, %s3255, %s3218, 256, 256, 16
        $region68: #{tpu_custom_call.1} parent=39 // pred_fallthru
          _
        // Predicated region
        $region69: #{tpu_custom_call.1} parent=39 // pred_check
          %p3263 = pneg %p230
        $region70: #{tpu_custom_call.1} parent=39 // pred_check_branch
          %3265 = sbr.rel (%p3263) target = $region72
        $region71: #{tpu_custom_call.1} parent=39 // pred_region
          %s3266 = smul.u32 64, %s35
          %s3268 = ssub.s32 4096, 4096
          %3269 = vsyncadd %s3223, %s3268
          %s3270 = smul.addr %s34, 64
          %s3271 = sadd.s32 %s3266, %s3270
          %s3272 = smul.addr %s3271, 64
          %s3273 = scalar_lea.hbm %s7, %s3272
          %s3274 = sshll.u32 %s3226, 4
          %s3275 = int_to_ptr.vmem [resolvable:$true] %s3274
          %3280 = dma.vmem_to_hbm [thread:$0]  %s3275, 4096, %s3273, %s3223, 64, 64, 4
        $region72: #{tpu_custom_call.1} parent=39 // pred_fallthru
          _
      $region40: #{tpu_custom_call.1} parent=5 // pred_fallthru
        _
      %p3281 = scmp.le.s32.totalorder 2, %s25
      // Predicated region
      $region73: #{tpu_custom_call.1} parent=5 // pred_check
        %p3282 = pneg %p3281
      $region74: #{tpu_custom_call.1} parent=5 // pred_check_branch
        %3284 = sbr.rel (%p3282) target = $region76
      $region75: #{tpu_custom_call.1} parent=5 // pred_region
        %s3285 = ssub.s32 %s25, 2
        // Predicated region
        $region77: #{tpu_custom_call.1} parent=75 // pred_check
          %p3286 = pneg %p180
        $region78: #{tpu_custom_call.1} parent=75 // pred_check_branch
          %3288 = sbr.rel (%p3286) target = $region80
        $region79: #{tpu_custom_call.1} parent=75 // pred_region
          %s3289 = sand.u32 %s165, 1
          %s3290 = scalar_lea.sflag [#allocation4], %s3289
          %s3291 = sand.u32 %s165, 1
          %s3292 = smul.addr %s3291, 256
          %s3293 = scalar_lea.vmem [#allocation11], %s3292
          %3294 = dma.done %s3290, 4096
        $region80: #{tpu_custom_call.1} parent=75 // pred_fallthru
          _
        // Predicated region
        $region81: #{tpu_custom_call.1} parent=75 // pred_check
          %p3295 = pneg %p208
        $region82: #{tpu_custom_call.1} parent=75 // pred_check_branch
          %3297 = sbr.rel (%p3295) target = $region84
        $region83: #{tpu_custom_call.1} parent=75 // pred_region
          %s3298 = sand.u32 %s31, 1
          %s3299 = scalar_lea.sflag [#allocation13], %s3298
          %s3300 = sand.u32 %s193, 1
          %s3301 = smul.addr %s3300, 256
          %s3302 = scalar_lea.vmem [#allocation12], %s3301
          %3303 = dma.done %s3299, 4096
        $region84: #{tpu_custom_call.1} parent=75 // pred_fallthru
          _
        // Predicated region
        $region85: #{tpu_custom_call.1} parent=75 // pred_check
          %p3304 = pneg %p236
        $region86: #{tpu_custom_call.1} parent=75 // pred_check_branch
          %3306 = sbr.rel (%p3304) target = $region88
        $region87: #{tpu_custom_call.1} parent=75 // pred_region
          %s3307 = sand.u32 %s31, 1
          %s3308 = scalar_lea.sflag [#allocation13], %s3307
          %s3309 = sand.u32 %s221, 1
          %s3310 = smul.addr %s3309, 256
          %s3311 = scalar_lea.vmem [#allocation14], %s3310
          %3312 = dma.done %s3308, 4096
        $region88: #{tpu_custom_call.1} parent=75 // pred_fallthru
          _
      $region76: #{tpu_custom_call.1} parent=5 // pred_fallthru
        _
    $region6: #{tpu_custom_call.1} parent=1 // loop_footer
      %s29 = sadd.s32 1, %s25
    $region7: #{tpu_custom_call.1} parent=1 // loop_footer_branch
      %24 = sbr.rel target = $region3
    $region8: #{tpu_custom_call.1} parent=1 // loop_exit
      _
    %3313 = vsyncpa [#allocation3], 1
    %s3314 = scalar_lea.sflag [#allocation3], 1
    %3315 = vsyncpa %s3314, 1
    %3316 = vsyncpa [#allocation6], 1
    %3317 = vsyncpa [#allocation9], 1
    %3318 = vsyncpa [#allocation4], 1
    %s3319 = scalar_lea.sflag [#allocation4], 1
    %3320 = vsyncpa %s3319, 1
    %3321 = vsyncpa [#allocation13], 1
    %s3322 = scalar_lea.sflag [#allocation13], 1
    %3323 = vsyncpa %s3322, 1

</llo_original>
